<compile_context>
chip_gen: v6e
topology: v6e:2x2x1
jax: 0.10.0
libtpu: 0.0.40
codegen_flags: <defaults>
</compile_context>

<pallas_src>
import functools

import jax
import jax.numpy as jnp
from jax.experimental import pallas as pl
from jax.experimental.pallas import tpu as pltpu

NUM_CLASSES = 10      # stands in for args.num_classes
LANE = 128            # lane-dense output width
ROW_ALIGN = 32        # row-tile alignment (covers f32/bf16 sublane packing)


# ------------------------------ small helpers -------------------------------

def _round_up(x, m):
    return ((x + m - 1) // m) * m


def _cparams(grid_rank):
    return pltpu.CompilerParams(
        dimension_semantics=("parallel",) * grid_rank,
        vmem_limit_bytes=32 * 1024 * 1024,
    )


def _pick_row_tile(m, target=512, min_steps=2, align=ROW_ALIGN):
    """Pooled rows per grid step: multiple of `align`, <= target, and at least
    `min_steps` grid steps when possible (keeps both v7x TensorCores busy)."""
    t = min(target, _round_up(m, align))
    if m > align and pl.cdiv(m, t) < min_steps:
        t = _round_up(pl.cdiv(m, min_steps), align)
    return max(t, align)


def _pick_batch_tile(batch, target=512, min_steps=2, align=ROW_ALIGN):
    """Batch rows per MLP grid step (full batch when tiny)."""
    if batch <= 8:
        return batch
    t = min(target, _round_up(batch, align))
    if pl.cdiv(batch, t) < min_steps:
        t = _round_up(pl.cdiv(batch, min_steps), align)
    return max(t, align)


def _permute_fc1_rows_chw_to_hwc(w_chw, c, h, w):
    """One-time reorder of fc1 rows so it consumes an NHWC (H,W,C) flatten while
    keeping PyTorch view(-1, C*H*W) semantics exactly."""
    n_out = w_chw.shape[1]
    return (w_chw.reshape(c, h, w, n_out)
            .transpose(1, 2, 0, 3)
            .reshape(c * h * w, n_out))


# ----------------------------- Pallas kernels -------------------------------

def _conv_bias_relu_pool_kernel(p_ref, w_ref, b_ref, o_ref, *, mt):
    """Fused im2col-GEMM + 2x2 max-pool + bias + ReLU.

    p_ref: (4*mt, K_pad) bf16 patch rows.  The 4 blocks of `mt` rows are the 4
           pooling partners (dh, dw) in {0,1}^2 of the same mt pooled positions
           (sublane-aligned, so the slices below are pure VPU work).
    w_ref: (K_pad, 128) bf16, VMEM-resident.   b_ref: (1, 128) f32.
    o_ref: (mt, 128) bf16 pooled output rows.
    """
    acc = jnp.dot(p_ref[...], w_ref[...],
                  preferred_element_type=jnp.float32)          # (4*mt, 128) f32
    pooled = jnp.maximum(
        jnp.maximum(acc[0 * mt:1 * mt, :], acc[1 * mt:2 * mt, :]),
        jnp.maximum(acc[2 * mt:3 * mt, :], acc[3 * mt:4 * mt, :]))
    # relu(max_i(a_i) + b) == max_i(relu(a_i + b)) : pool first, then bias+ReLU.
    o_ref[...] = jnp.maximum(pooled + b_ref[...], 0.0).astype(o_ref.dtype)


def _mlp_head_kernel(x_ref, w1_ref, b1_ref, w2_ref, b2_ref, o_ref):
    """fc1 + ReLU + fc2 + log_softmax.  Padded logit columns already carry a
    -1e30 bias (and zero weight columns), so no in-kernel masking is needed."""
    h = jnp.dot(x_ref[...], w1_ref[...], preferred_element_type=jnp.float32)
    h = jnp.maximum(h + b1_ref[...], 0.0)                        # (TB, 128) f32
    logits = jnp.dot(h.astype(w2_ref.dtype), w2_ref[...],
                     preferred_element_type=jnp.float32) + b2_ref[...]
    m = jnp.max(logits, axis=-1, keepdims=True)
    s = logits - m
    lse = jnp.log(jnp.sum(jnp.exp(s), axis=-1, keepdims=True))
    o_ref[...] = s - lse


# ------------------------------- model glue ---------------------------------

def conv_bias_relu_maxpool(x_nhwc, wgt, bias_vec):
    """x: (B,H,W,Cin) bf16; wgt: (Cout,Cin,k,k) PyTorch layout; bias: (Cout,).
    Returns pooled NHWC activation (B, Hp, Wp, Cout) bf16."""
    B, H, W, Cin = x_nhwc.shape
    Cout, _, k, _ = wgt.shape
    K = k * k * Cin
    K_pad = _round_up(K, 8)
    Ho, Wo = H - k + 1, W - k + 1
    Hp, Wp = Ho // 2, Wo // 2
    M = B * Hp * Wp                                   # pooled output positions

    # ---- XLA-side im2col, grouped by pooling partner (bf16). ----
    cols = []
    for kh in range(k):
        for kw in range(k):
            cols.append(x_nhwc[:, kh:kh + Ho, kw:kw + Wo, :])   # (B, Ho, Wo, Cin)
    p = jnp.stack(cols, axis=3).reshape(B, Ho, Wo, K)           # (kh,kw,cin) feats
    p = p[:, :2 * Hp, :2 * Wp, :]                               # drop odd edge
    p = p.reshape(B, Hp, 2, Wp, 2, K)
    p = jnp.transpose(p, (2, 4, 0, 1, 3, 5)).reshape(4, M, K)   # partner-major
    p = p.astype(jnp.bfloat16)

    Mt = _pick_row_tile(M)
    grid = pl.cdiv(M, Mt)
    M_pad = grid * Mt
    p = jnp.pad(p, ((0, 0), (0, M_pad - M), (0, K_pad - K)))
    # Reorder so each grid tile holds its 4 partner blocks contiguously:
    # (4, grid, Mt, K) -> (grid, 4, Mt, K) -> (grid*4*Mt, K)
    p = jnp.transpose(p.reshape(4, grid, Mt, K_pad), (1, 0, 2, 3))
    p = p.reshape(grid * 4 * Mt, K_pad)

    # Weight -> (K_pad, 128): rows ordered (kh, kw, cin); padded K and lanes.
    w2 = jnp.transpose(wgt, (2, 3, 1, 0)).reshape(K, Cout)
    w2 = jnp.pad(w2, ((0, K_pad - K), (0, LANE - Cout))).astype(jnp.bfloat16)
    b2 = jnp.pad(bias_vec, (0, LANE - Cout)).astype(jnp.float32).reshape(1, LANE)

    kern = functools.partial(_conv_bias_relu_pool_kernel, mt=Mt)
    out = pl.pallas_call(
        kern,
        out_shape=jax.ShapeDtypeStruct((M_pad, LANE), jnp.bfloat16),
        grid=(grid,),
        in_specs=[
            pl.BlockSpec((4 * Mt, K_pad), lambda i: (i, 0)),
            pl.BlockSpec((K_pad, LANE), lambda i: (0, 0)),   # resident weight
            pl.BlockSpec((1, LANE), lambda i: (0, 0)),       # resident bias
        ],
        out_specs=pl.BlockSpec((Mt, LANE), lambda i: (i, 0)),
        compiler_params=_cparams(1),
    )(p, w2, b2)

    out = out[:M].reshape(B, Hp, Wp, LANE)[..., :Cout]        # drop pad rows/lanes
    return out


def mlp_head_logsoftmax(x, w1, b1, w2, b2, num_classes):
    """x: (B, D); w1: (D,128); w2: (128,num_classes). Returns (B, num_classes)."""
    B, D = x.shape
    H = w1.shape[1]

    TB = _pick_batch_tile(B)
    grid = pl.cdiv(B, TB)
    B_pad = grid * TB
    x = x.astype(jnp.bfloat16)
    if B_pad > B:
        x = jnp.pad(x, ((0, B_pad - B), (0, 0)))

    w1 = w1.astype(jnp.bfloat16)
    w2p = jnp.pad(w2, ((0, 0), (0, LANE - num_classes))).astype(jnp.bfloat16)
    b1r = b1.astype(jnp.float32).reshape(1, H)
    # Padded logit columns: zero weight columns + (-1e30) bias => log_softmax
    # ignores them (exp underflows to 0), no in-kernel mask constant needed.
    b2r = jnp.pad(b2.astype(jnp.float32), (0, LANE - num_classes),
                  constant_values=-1e30).reshape(1, LANE)

    out = pl.pallas_call(
        _mlp_head_kernel,
        out_shape=jax.ShapeDtypeStruct((B_pad, LANE), jnp.float32),
        grid=(grid,),
        in_specs=[
            pl.BlockSpec((TB, D), lambda i: (i, 0)),
            pl.BlockSpec((D, H), lambda i: (0, 0)),           # resident fc1 w
            pl.BlockSpec((1, H), lambda i: (0, 0)),
            pl.BlockSpec((H, LANE), lambda i: (0, 0)),        # resident fc2 w
            pl.BlockSpec((1, LANE), lambda i: (0, 0)),
        ],
        out_specs=pl.BlockSpec((TB, LANE), lambda i: (i, 0)),
        compiler_params=_cparams(1),
    )(x, w1, b1r, w2p, b2r)
    return out[:B, :num_classes]


def init_params(key):
    """Deterministic PyTorch-style (uniform +-1/sqrt(fan_in)) initialization."""
    ks = jax.random.split(key, 8)

    def u(k, shape, fan_in):
        bound = 1.0 / jnp.sqrt(fan_in)
        return jax.random.uniform(k, shape, jnp.float32, -bound, bound)

    to_linear = 64 * 5 * 5   # computed by convs() on a 3x32x32 probe in __init__
    fc1_w_chw = u(ks[4], (to_linear, 128), to_linear)   # PyTorch (C,H,W) row order
    return {
        "conv1_w": u(ks[0], (32, 3, 5, 5), 3 * 5 * 5),
        "conv1_b": u(ks[1], (32,), 3 * 5 * 5),
        "conv2_w": u(ks[2], (64, 32, 5, 5), 32 * 5 * 5),
        "conv2_b": u(ks[3], (64,), 32 * 5 * 5),
        # One-time row permutation so fc1 consumes the NHWC (H,W,C) flatten.
        "fc1_w": _permute_fc1_rows_chw_to_hwc(fc1_w_chw, 64, 5, 5),
        "fc1_b": u(ks[5], (128,), to_linear),
        "fc2_w": u(ks[6], (128, NUM_CLASSES), 128),
        "fc2_b": u(ks[7], (NUM_CLASSES,), 128),
    }


def forward(x_nchw, params):
    # Go NHWC (and bf16) once at the input; activations stay NHWC + bf16.
    x = jnp.transpose(x_nchw, (0, 2, 3, 1)).astype(jnp.bfloat16)  # (B,32,32,3)
    x = conv_bias_relu_maxpool(x, params["conv1_w"], params["conv1_b"])
    # dropout1: identity at inference                               (B,14,14,32)
    x = conv_bias_relu_maxpool(x, params["conv2_w"], params["conv2_b"])
    # dropout2: identity at inference                               (B, 5, 5,64)
    B = x.shape[0]
    x = x.reshape(B, -1)   # NHWC flatten; fc1 rows pre-permuted to match (B,1600)
    return mlp_head_logsoftmax(x, params["fc1_w"], params["fc1_b"],
                               params["fc2_w"], params["fc2_b"], NUM_CLASSES)


if __name__ == "__main__":
    key = jax.random.PRNGKey(0)
    k_x, k_p = jax.random.split(key)
    # The module's conv arithmetic (fc1 in = 1600) fixes the input to 3x32x32.
    x = jax.random.normal(k_x, (2, 3, 32, 32), jnp.float32)
    params = init_params(k_p)

    out = jax.block_until_ready(jax.jit(forward)(x, params))

    assert out.shape == (2, NUM_CLASSES), out.shape
    # log_softmax rows must log-sum-exp to ~0 over the real classes.
    row_lse = jax.nn.logsumexp(out, axis=1)
    assert jnp.allclose(row_lse, 0.0, atol=2e-3), row_lse
    assert bool(jnp.all(jnp.isfinite(out))), "non-finite log-probs"
    print("KERNEL_OK")
</pallas_src>

<mosaic_0001>
module attributes {stable_mosaic.version = 11 : i64} {
  func.func @_conv_bias_relu_pool_kernel(%arg0: i32, %arg1: memref<896x80xbf16, #tpu.memory_space<vmem>>, %arg2: memref<80x128xbf16, #tpu.memory_space<vmem>>, %arg3: memref<1x128xf32, #tpu.memory_space<vmem>>, %arg4: memref<224x128xbf16, #tpu.memory_space<vmem>>) attributes {dimension_semantics = [#tpu.dimension_semantics<parallel>], iteration_bounds = array<i64: 2>, scalar_prefetch = 0 : i64, scratch_operands = 0 : i64, tpu.core_type = #tpu.core_type<tc>, window_params = [{transform_indices = @transform_0, window_bounds = array<i64: 896, 80>}, {pipeline_mode = #tpu.pipeline_mode<synchronous>, transform_indices = @transform_1, window_bounds = array<i64: 80, 128>}, {pipeline_mode = #tpu.pipeline_mode<synchronous>, transform_indices = @transform_2, window_bounds = array<i64: 1, 128>}, {transform_indices = @transform_3, window_bounds = array<i64: 224, 128>}]} {
    %c0 = arith.constant 0 : index
    %c0_0 = arith.constant 0 : index
    %0 = vector.load %arg1[%c0, %c0_0] : memref<896x80xbf16, #tpu.memory_space<vmem>>, vector<896x80xbf16>
    %c0_1 = arith.constant 0 : index
    %c0_2 = arith.constant 0 : index
    %1 = vector.load %arg2[%c0_1, %c0_2] : memref<80x128xbf16, #tpu.memory_space<vmem>>, vector<80x128xbf16>
    %cst = arith.constant dense<0.000000e+00> : vector<896x128xf32>
    %2 = tpu.matmul %0, %1, %cst {dimension_numbers = #tpu.dot_dimension_numbers<[1], [0], [0], [1], [0, 0, 1, 1], [], []>} : vector<896x80xbf16>, vector<80x128xbf16>, vector<896x128xf32> -> vector<896x128xf32>
    %3 = vector.extract_strided_slice %2 {offsets = [0, 0], sizes = [224, 128], strides = [1, 1]} : vector<896x128xf32> to vector<224x128xf32>
    %4 = vector.extract_strided_slice %2 {offsets = [224, 0], sizes = [224, 128], strides = [1, 1]} : vector<896x128xf32> to vector<224x128xf32>
    %5 = arith.maximumf %3, %4 : vector<224x128xf32>
    %6 = vector.extract_strided_slice %2 {offsets = [448, 0], sizes = [224, 128], strides = [1, 1]} : vector<896x128xf32> to vector<224x128xf32>
    %7 = vector.extract_strided_slice %2 {offsets = [672, 0], sizes = [224, 128], strides = [1, 1]} : vector<896x128xf32> to vector<224x128xf32>
    %8 = arith.maximumf %6, %7 : vector<224x128xf32>
    %9 = arith.maximumf %5, %8 : vector<224x128xf32>
    %c0_3 = arith.constant 0 : index
    %c0_4 = arith.constant 0 : index
    %10 = vector.load %arg3[%c0_3, %c0_4] : memref<1x128xf32, #tpu.memory_space<vmem>>, vector<1x128xf32>
    %11 = vector.broadcast %10 : vector<1x128xf32> to vector<224x128xf32>
    %12 = arith.addf %9, %11 : vector<224x128xf32>
    %cst_5 = arith.constant 0.000000e+00 : f32
    %13 = vector.broadcast %cst_5 : f32 to vector<224x128xf32>
    %14 = arith.maximumf %12, %13 : vector<224x128xf32>
    %15 = arith.truncf %14 : vector<224x128xf32> to vector<224x128xbf16>
    %c0_6 = arith.constant 0 : index
    %c0_7 = arith.constant 0 : index
    %16 = vector.load %arg4[%c0_6, %c0_7] : memref<224x128xbf16, #tpu.memory_space<vmem>>, vector<224x128xbf16>
    tpu.vector_store %arg4[%c0_6, %c0_7], %15 {strides = array<i32>} : memref<224x128xbf16, #tpu.memory_space<vmem>>, vector<224x128xbf16>,
    return
  }
  func.func @transform_0(%arg0: i32) -> (i32, i32) {
    %c0_i32 = arith.constant 0 : i32
    %c0_i32_0 = arith.constant 0 : i32
    return %arg0, %c0_i32 : i32, i32
  }
  func.func @transform_1(%arg0: i32) -> (i32, i32) {
    %c0_i32 = arith.constant 0 : i32
    %c0_i32_0 = arith.constant 0 : i32
    %c0_i32_1 = arith.constant 0 : i32
    return %c0_i32, %c0_i32_0 : i32, i32
  }
  func.func @transform_2(%arg0: i32) -> (i32, i32) {
    %c0_i32 = arith.constant 0 : i32
    %c0_i32_0 = arith.constant 0 : i32
    %c0_i32_1 = arith.constant 0 : i32
    return %c0_i32, %c0_i32_0 : i32, i32
  }
  func.func @transform_3(%arg0: i32) -> (i32, i32) {
    %c0_i32 = arith.constant 0 : i32
    %c0_i32_0 = arith.constant 0 : i32
    return %arg0, %c0_i32 : i32, i32
  }
}

module attributes {stable_mosaic.version = 11 : i64} {
  func.func @_conv_bias_relu_pool_kernel(%arg0: i32, %arg1: memref<128x800xbf16, #tpu.memory_space<vmem>>, %arg2: memref<800x128xbf16, #tpu.memory_space<vmem>>, %arg3: memref<1x128xf32, #tpu.memory_space<vmem>>, %arg4: memref<32x128xbf16, #tpu.memory_space<vmem>>) attributes {dimension_semantics = [#tpu.dimension_semantics<parallel>], iteration_bounds = array<i64: 2>, scalar_prefetch = 0 : i64, scratch_operands = 0 : i64, tpu.core_type = #tpu.core_type<tc>, window_params = [{transform_indices = @transform_0, window_bounds = array<i64: 128, 800>}, {pipeline_mode = #tpu.pipeline_mode<synchronous>, transform_indices = @transform_1, window_bounds = array<i64: 800, 128>}, {pipeline_mode = #tpu.pipeline_mode<synchronous>, transform_indices = @transform_2, window_bounds = array<i64: 1, 128>}, {transform_indices = @transform_3, window_bounds = array<i64: 32, 128>}]} {
    %c0 = arith.constant 0 : index
    %c0_0 = arith.constant 0 : index
    %0 = vector.load %arg1[%c0, %c0_0] : memref<128x800xbf16, #tpu.memory_space<vmem>>, vector<128x800xbf16>
    %c0_1 = arith.constant 0 : index
    %c0_2 = arith.constant 0 : index
    %1 = vector.load %arg2[%c0_1, %c0_2] : memref<800x128xbf16, #tpu.memory_space<vmem>>, vector<800x128xbf16>
    %cst = arith.constant dense<0.000000e+00> : vector<128x128xf32>
    %2 = tpu.matmul %0, %1, %cst {dimension_numbers = #tpu.dot_dimension_numbers<[1], [0], [0], [1], [0, 0, 1, 1], [], []>} : vector<128x800xbf16>, vector<800x128xbf16>, vector<128x128xf32> -> vector<128x128xf32>
    %3 = vector.extract_strided_slice %2 {offsets = [0, 0], sizes = [32, 128], strides = [1, 1]} : vector<128x128xf32> to vector<32x128xf32>
    %4 = vector.extract_strided_slice %2 {offsets = [32, 0], sizes = [32, 128], strides = [1, 1]} : vector<128x128xf32> to vector<32x128xf32>
    %5 = arith.maximumf %3, %4 : vector<32x128xf32>
    %6 = vector.extract_strided_slice %2 {offsets = [64, 0], sizes = [32, 128], strides = [1, 1]} : vector<128x128xf32> to vector<32x128xf32>
    %7 = vector.extract_strided_slice %2 {offsets = [96, 0], sizes = [32, 128], strides = [1, 1]} : vector<128x128xf32> to vector<32x128xf32>
    %8 = arith.maximumf %6, %7 : vector<32x128xf32>
    %9 = arith.maximumf %5, %8 : vector<32x128xf32>
    %c0_3 = arith.constant 0 : index
    %c0_4 = arith.constant 0 : index
    %10 = vector.load %arg3[%c0_3, %c0_4] : memref<1x128xf32, #tpu.memory_space<vmem>>, vector<1x128xf32>
    %11 = vector.broadcast %10 : vector<1x128xf32> to vector<32x128xf32>
    %12 = arith.addf %9, %11 : vector<32x128xf32>
    %cst_5 = arith.constant 0.000000e+00 : f32
    %13 = vector.broadcast %cst_5 : f32 to vector<32x128xf32>
    %14 = arith.maximumf %12, %13 : vector<32x128xf32>
    %15 = arith.truncf %14 : vector<32x128xf32> to vector<32x128xbf16>
    %c0_6 = arith.constant 0 : index
    %c0_7 = arith.constant 0 : index
    %16 = vector.load %arg4[%c0_6, %c0_7] : memref<32x128xbf16, #tpu.memory_space<vmem>>, vector<32x128xbf16>
    tpu.vector_store %arg4[%c0_6, %c0_7], %15 {strides = array<i32>} : memref<32x128xbf16, #tpu.memory_space<vmem>>, vector<32x128xbf16>,
    return
  }
  func.func @transform_0(%arg0: i32) -> (i32, i32) {
    %c0_i32 = arith.constant 0 : i32
    %c0_i32_0 = arith.constant 0 : i32
    return %arg0, %c0_i32 : i32, i32
  }
  func.func @transform_1(%arg0: i32) -> (i32, i32) {
    %c0_i32 = arith.constant 0 : i32
    %c0_i32_0 = arith.constant 0 : i32
    %c0_i32_1 = arith.constant 0 : i32
    return %c0_i32, %c0_i32_0 : i32, i32
  }
  func.func @transform_2(%arg0: i32) -> (i32, i32) {
    %c0_i32 = arith.constant 0 : i32
    %c0_i32_0 = arith.constant 0 : i32
    %c0_i32_1 = arith.constant 0 : i32
    return %c0_i32, %c0_i32_0 : i32, i32
  }
  func.func @transform_3(%arg0: i32) -> (i32, i32) {
    %c0_i32 = arith.constant 0 : i32
    %c0_i32_0 = arith.constant 0 : i32
    return %arg0, %c0_i32 : i32, i32
  }
}

module attributes {stable_mosaic.version = 11 : i64} {
  func.func @_mlp_head_kernel(%arg0: i32, %arg1: memref<2x1600xbf16, #tpu.memory_space<vmem>>, %arg2: memref<1600x128xbf16, #tpu.memory_space<vmem>>, %arg3: memref<1x128xf32, #tpu.memory_space<vmem>>, %arg4: memref<128x128xbf16, #tpu.memory_space<vmem>>, %arg5: memref<1x128xf32, #tpu.memory_space<vmem>>, %arg6: memref<2x128xf32, #tpu.memory_space<vmem>>) attributes {dimension_semantics = [#tpu.dimension_semantics<parallel>], iteration_bounds = array<i64: 1>, scalar_prefetch = 0 : i64, scratch_operands = 0 : i64, tpu.core_type = #tpu.core_type<tc>, window_params = [{transform_indices = @transform_0, window_bounds = array<i64: 2, 1600>}, {pipeline_mode = #tpu.pipeline_mode<synchronous>, transform_indices = @transform_1, window_bounds = array<i64: 1600, 128>}, {pipeline_mode = #tpu.pipeline_mode<synchronous>, transform_indices = @transform_2, window_bounds = array<i64: 1, 128>}, {pipeline_mode = #tpu.pipeline_mode<synchronous>, transform_indices = @transform_3, window_bounds = array<i64: 128, 128>}, {pipeline_mode = #tpu.pipeline_mode<synchronous>, transform_indices = @transform_4, window_bounds = array<i64: 1, 128>}, {transform_indices = @transform_5, window_bounds = array<i64: 2, 128>}]} {
    %c0 = arith.constant 0 : index
    %c0_0 = arith.constant 0 : index
    %0 = vector.load %arg1[%c0, %c0_0] : memref<2x1600xbf16, #tpu.memory_space<vmem>>, vector<2x1600xbf16>
    %c0_1 = arith.constant 0 : index
    %c0_2 = arith.constant 0 : index
    %1 = vector.load %arg2[%c0_1, %c0_2] : memref<1600x128xbf16, #tpu.memory_space<vmem>>, vector<1600x128xbf16>
    %cst = arith.constant dense<0.000000e+00> : vector<2x128xf32>
    %2 = tpu.matmul %0, %1, %cst {dimension_numbers = #tpu.dot_dimension_numbers<[1], [0], [0], [1], [0, 0, 1, 1], [], []>} : vector<2x1600xbf16>, vector<1600x128xbf16>, vector<2x128xf32> -> vector<2x128xf32>
    %c0_3 = arith.constant 0 : index
    %c0_4 = arith.constant 0 : index
    %3 = vector.load %arg3[%c0_3, %c0_4] : memref<1x128xf32, #tpu.memory_space<vmem>>, vector<1x128xf32>
    %4 = vector.broadcast %3 : vector<1x128xf32> to vector<2x128xf32>
    %5 = arith.addf %2, %4 : vector<2x128xf32>
    %cst_5 = arith.constant 0.000000e+00 : f32
    %6 = vector.broadcast %cst_5 : f32 to vector<2x128xf32>
    %7 = arith.maximumf %5, %6 : vector<2x128xf32>
    %8 = arith.truncf %7 : vector<2x128xf32> to vector<2x128xbf16>
    %c0_6 = arith.constant 0 : index
    %c0_7 = arith.constant 0 : index
    %9 = vector.load %arg4[%c0_6, %c0_7] : memref<128x128xbf16, #tpu.memory_space<vmem>>, vector<128x128xbf16>
    %cst_8 = arith.constant dense<0.000000e+00> : vector<2x128xf32>
    %10 = tpu.matmul %8, %9, %cst_8 {dimension_numbers = #tpu.dot_dimension_numbers<[1], [0], [0], [1], [0, 0, 1, 1], [], []>} : vector<2x128xbf16>, vector<128x128xbf16>, vector<2x128xf32> -> vector<2x128xf32>
    %c0_9 = arith.constant 0 : index
    %c0_10 = arith.constant 0 : index
    %11 = vector.load %arg5[%c0_9, %c0_10] : memref<1x128xf32, #tpu.memory_space<vmem>>, vector<1x128xf32>
    %12 = vector.broadcast %11 : vector<1x128xf32> to vector<2x128xf32>
    %13 = arith.addf %10, %12 : vector<2x128xf32>
    %cst_11 = arith.constant dense<0xFF800000> : vector<2xf32>
    %14 = vector.multi_reduction <maximumf>, %13, %cst_11 [1] : vector<2x128xf32> to vector<2xf32>
    %15 = vector.shape_cast %14 : vector<2xf32> to vector<2x1xf32>
    %16 = vector.broadcast %15 : vector<2x1xf32> to vector<2x128xf32>
    %17 = arith.subf %13, %16 : vector<2x128xf32>
    %18 = math.exp %17 : vector<2x128xf32>
    %cst_12 = arith.constant dense<0.000000e+00> : vector<2xf32>
    %19 = vector.multi_reduction <add>, %18, %cst_12 [1] : vector<2x128xf32> to vector<2xf32>
    %20 = vector.shape_cast %19 : vector<2xf32> to vector<2x1xf32>
    %21 = math.log %20 : vector<2x1xf32>
    %22 = vector.broadcast %21 : vector<2x1xf32> to vector<2x128xf32>
    %23 = arith.subf %17, %22 : vector<2x128xf32>
    %c0_13 = arith.constant 0 : index
    %c0_14 = arith.constant 0 : index
    %24 = vector.load %arg6[%c0_13, %c0_14] : memref<2x128xf32, #tpu.memory_space<vmem>>, vector<2x128xf32>
    tpu.vector_store %arg6[%c0_13, %c0_14], %23 {strides = array<i32>} : memref<2x128xf32, #tpu.memory_space<vmem>>, vector<2x128xf32>,
    return
  }
  func.func @transform_0(%arg0: i32) -> (i32, i32) {
    %c0_i32 = arith.constant 0 : i32
    %c0_i32_0 = arith.constant 0 : i32
    return %arg0, %c0_i32 : i32, i32
  }
  func.func @transform_1(%arg0: i32) -> (i32, i32) {
    %c0_i32 = arith.constant 0 : i32
    %c0_i32_0 = arith.constant 0 : i32
    %c0_i32_1 = arith.constant 0 : i32
    return %c0_i32, %c0_i32_0 : i32, i32
  }
  func.func @transform_2(%arg0: i32) -> (i32, i32) {
    %c0_i32 = arith.constant 0 : i32
    %c0_i32_0 = arith.constant 0 : i32
    %c0_i32_1 = arith.constant 0 : i32
    return %c0_i32, %c0_i32_0 : i32, i32
  }
  func.func @transform_3(%arg0: i32) -> (i32, i32) {
    %c0_i32 = arith.constant 0 : i32
    %c0_i32_0 = arith.constant 0 : i32
    %c0_i32_1 = arith.constant 0 : i32
    return %c0_i32, %c0_i32_0 : i32, i32
  }
  func.func @transform_4(%arg0: i32) -> (i32, i32) {
    %c0_i32 = arith.constant 0 : i32
    %c0_i32_0 = arith.constant 0 : i32
    %c0_i32_1 = arith.constant 0 : i32
    return %c0_i32, %c0_i32_0 : i32, i32
  }
  func.func @transform_5(%arg0: i32) -> (i32, i32) {
    %c0_i32 = arith.constant 0 : i32
    %c0_i32_0 = arith.constant 0 : i32
    return %arg0, %c0_i32 : i32, i32
  }
}

</mosaic_0001>

<llo_original>
// kernel: forward.3
$region0: #{forward.3}
  #allocation0 [shape = 'u32[]', space=smem, size = 0x4, offset = 0x4, fixed_abs, tag = 'smem constant byte address 0x4 - core index']
  #allocation1 [shape = 'u32[144,128]{1,0:T(1,128)}', space=vmem, size = 0x12000, scoped, tag = 'internal scratch']
  %s0 = inlined_call_operand.vmem [shape: bf16[1792,80], index: 0, kind: input, shape index: {}]
  %s1 = inlined_call_operand.vmem [shape: bf16[80,128], index: 1, kind: input, shape index: {}]
  %s2 = inlined_call_operand.vmem [shape: f32[1,128], index: 2, kind: input, shape index: {}]
  %s3 = inlined_call_operand.vmem [shape: bf16[448,128], index: 3, kind: output, shape index: {}]
  %s4 = sld [smem:[#allocation0]]
  $region45: #{forward.3} parent=0
    _
  %s6 = ssub.s32 1, %s4
  %s7 = scalar_select 0, %s6, %s4
  loop: start=0, step=1, limit=4
  $region2: #{forward.3} parent=0 // loop_pre_header
    _
  $region3: #{forward.3} parent=0 // loop_header
    %s9 = sphi 0, %s13
    %p10 = scmp.ge.s32.totalorder %s9, 4
    %s19 = sphi 0, %s21
    %s22 = sphi 0, %s19
    %s23 = sphi 0, %s22
    %s39 = sphi 0, %s23
    %s43 = sphi 0, %s43
    %s45 = sphi 0, %s43
    %s46 = sphi 0, %s45
    %s60 = sphi 0, %s46
    %s64 = sphi 0, %s64
    %s66 = sphi 0, %s64
    %s67 = sphi 0, %s66
    %s81 = sphi 0, %s67
    %s87 = sphi 0, %s89
    %s90 = sphi 0, %s87
    %s91 = sphi 0, %s90
    %s107 = sphi 0, %s91
  $region4: #{forward.3} parent=0 // loop_header_branch
    %12 = sbr.rel (%p10) target = $region8
  $region5: #{forward.3} parent=0 // loop_body
    %s14 = ssub.s32 %s9, 1
    %s15 = ssub.s32 %s9, 2
    %s16 = sadd.s32 %s9, 1
    %s17 = ssub.s32 %s9, %s16
    %p18 = scmp.eq.s32.totalorder %s17, 0
    %s20 = sadd.s32 %s19, 1
    %s21 = scalar_select %p18, %s19, %s20
    %p24 = pneg %p18
    %p25 = scmp.eq.s32.totalorder %s9, 1
    %p26 = por %p24, %p25
    %p27 = scmp.ne.s32.totalorder %s19, %s22
    %p28 = scmp.eq.s32.totalorder %s9, 0
    %p29 = por %p27, %p28
    %p30 = scmp.ne.s32.totalorder %s19, %s22
    %p31 = scmp.eq.s32.totalorder %s14, 1
    %p32 = por %p30, %p31
    %p33 = scmp.ne.s32.totalorder %s22, %s23
    %p34 = scmp.eq.s32.totalorder %s14, 0
    %p35 = por %p33, %p34
    %p36 = scmp.ne.s32.totalorder %s22, %s23
    %p37 = scmp.eq.s32.totalorder %s15, 1
    %p38 = por %p36, %p37
    %p40 = scmp.ne.s32.totalorder %s23, %s39
    %p41 = scmp.eq.s32.totalorder %s15, 0
    %p42 = por %p40, %p41
    %s44 = sadd.s32 %s43, 1
    %p47 = scmp.eq.s32.totalorder %s9, 1
    %p48 = scmp.ne.s32.totalorder %s43, %s45
    %p49 = scmp.eq.s32.totalorder %s9, 0
    %p50 = por %p48, %p49
    %p51 = scmp.ne.s32.totalorder %s43, %s45
    %p52 = scmp.eq.s32.totalorder %s14, 1
    %p53 = por %p51, %p52
    %p54 = scmp.ne.s32.totalorder %s45, %s46
    %p55 = scmp.eq.s32.totalorder %s14, 0
    %p56 = por %p54, %p55
    %p57 = scmp.ne.s32.totalorder %s45, %s46
    %p58 = scmp.eq.s32.totalorder %s15, 1
    %p59 = por %p57, %p58
    %p61 = scmp.ne.s32.totalorder %s46, %s60
    %p62 = scmp.eq.s32.totalorder %s15, 0
    %p63 = por %p61, %p62
    %s65 = sadd.s32 %s64, 1
    %p68 = scmp.eq.s32.totalorder %s9, 1
    %p69 = scmp.ne.s32.totalorder %s64, %s66
    %p70 = scmp.eq.s32.totalorder %s9, 0
    %p71 = por %p69, %p70
    %p72 = scmp.ne.s32.totalorder %s64, %s66
    %p73 = scmp.eq.s32.totalorder %s14, 1
    %p74 = por %p72, %p73
    %p75 = scmp.ne.s32.totalorder %s66, %s67
    %p76 = scmp.eq.s32.totalorder %s14, 0
    %p77 = por %p75, %p76
    %p78 = scmp.ne.s32.totalorder %s66, %s67
    %p79 = scmp.eq.s32.totalorder %s15, 1
    %p80 = por %p78, %p79
    %p82 = scmp.ne.s32.totalorder %s67, %s81
    %p83 = scmp.eq.s32.totalorder %s15, 0
    %p84 = por %p82, %p83
    %s85 = ssub.s32 %s9, %s16
    %p86 = scmp.eq.s32.totalorder %s85, 0
    %s88 = sadd.s32 %s87, 1
    %s89 = scalar_select %p86, %s87, %s88
    %p92 = pneg %p86
    %p93 = scmp.eq.s32.totalorder %s9, 1
    %p94 = por %p92, %p93
    %p95 = scmp.ne.s32.totalorder %s87, %s90
    %p96 = scmp.eq.s32.totalorder %s9, 0
    %p97 = por %p95, %p96
    %p98 = scmp.ne.s32.totalorder %s87, %s90
    %p99 = scmp.eq.s32.totalorder %s14, 1
    %p100 = por %p98, %p99
    %p101 = scmp.ne.s32.totalorder %s90, %s91
    %p102 = scmp.eq.s32.totalorder %s14, 0
    %p103 = por %p101, %p102
    %p104 = scmp.ne.s32.totalorder %s90, %s91
    %p105 = scmp.eq.s32.totalorder %s15, 1
    %p106 = por %p104, %p105
    %p108 = scmp.ne.s32.totalorder %s91, %s107
    %p109 = scmp.eq.s32.totalorder %s15, 0
    %p110 = por %p108, %p109
    %p111 = scmp.le.s32.totalorder 1, %s9
    %p112 = scmp.lt.s32.totalorder %s9, 3
    %p113 = pnand %p111, %p112
    %p114 = pneg %p113
    // Predicated region
    $region9: #{forward.3} parent=5 // pred_check
      _
    $region10: #{forward.3} parent=5 // pred_check_branch
      %116 = sbr.rel (%p113) target = $region12
    $region11: #{forward.3} parent=5 // pred_region
      %s117 = ssub.s32 %s9, 1
      // Predicated region
      $region13: #{forward.3} parent=11 // pred_check
        %p118 = pneg %p56
      $region14: #{forward.3} parent=11 // pred_check_branch
        %120 = sbr.rel (%p118) target = $region16
      $region15: #{forward.3} parent=11 // pred_region
        _
      $region16: #{forward.3} parent=11 // pred_fallthru
        _
      // Predicated region
      $region17: #{forward.3} parent=11 // pred_check
        %p121 = pneg %p77
      $region18: #{forward.3} parent=11 // pred_check_branch
        %123 = sbr.rel (%p121) target = $region20
      $region19: #{forward.3} parent=11 // pred_region
        _
      $region20: #{forward.3} parent=11 // pred_fallthru
        _
    $region12: #{forward.3} parent=5 // pred_fallthru
      _
    %p124 = scmp.lt.s32.totalorder %s9, 2
    // Predicated region
    $region21: #{forward.3} parent=5 // pred_check
      %p125 = pneg %p124
    $region22: #{forward.3} parent=5 // pred_check_branch
      %127 = sbr.rel (%p125) target = $region24
    $region23: #{forward.3} parent=5 // pred_region
      // Predicated region
      $region25: #{forward.3} parent=23 // pred_check
        %p128 = pneg %p29
      $region26: #{forward.3} parent=23 // pred_check_branch
        %130 = sbr.rel (%p128) target = $region28
      $region27: #{forward.3} parent=23 // pred_region
        %s131 = smul.u32 112, %s9
        %p132 = scmp.lt.s32.totalorder %s131, 223
        %s133 = scalar_select %p132, %s131, 223
        %s134 = smul.addr %s133, 4
        %s135 = scalar_lea.vmem %s0, %s134
        %s136 = smul.u32 112, %s9
      $region28: #{forward.3} parent=23 // pred_fallthru
        _
    $region24: #{forward.3} parent=5 // pred_fallthru
      _
    %p137 = scmp.le.s32.totalorder 1, %s9
    %p138 = scmp.lt.s32.totalorder %s9, 3
    %p139 = pnand %p137, %p138
    %p140 = pneg %p139
    // Predicated region
    $region29: #{forward.3} parent=5 // pred_check
      _
    $region30: #{forward.3} parent=5 // pred_check_branch
      %142 = sbr.rel (%p139) target = $region32
    $region31: #{forward.3} parent=5 // pred_region
      %s143 = ssub.s32 %s9, 1
      %s144 = smul.u32 112, %s14
      %p145 = scmp.lt.s32.totalorder %s144, 223
      %s146 = scalar_select %p145, %s144, 223
      %s147 = smul.addr %s146, 4
      %s148 = scalar_lea.vmem %s0, %s147
      %p149 = pneg %p35
      %p150 = pneg %p32
      %p151 = pneg %p56
      %p152 = pneg %p53
      %p153 = pneg %p77
      %p154 = pneg %p74
      %p155 = pneg %p103
      %p156 = pneg %p100
      %s157 = smul.u32 28, %s14
      %p158 = scmp.lt.s32.totalorder %s157, 55
      %s159 = scalar_select %p158, %s157, 55
      %s160 = smul.addr %s159, 4
      %s161 = scalar_lea.vmem %s3, %s160
      %s162 = smul.u32 112, %s14
      %p163 = scmp.lt.s32.totalorder %s162, 223
      %s164 = scalar_select %p163, %s162, 223
      %s165 = smul.addr %s164, 4
      %s166 = scalar_lea.vmem %s0, %s165
      %s167 = smul.u32 112, %s14
      %s168 = smul.u32 28, %s14
      %p169 = scmp.lt.s32.totalorder %s168, 55
      %s170 = scalar_select %p169, %s168, 55
      %s171 = smul.addr %s170, 4
      %s172 = scalar_lea.vmem %s3, %s171
      %s173 = smul.u32 28, %s14
      %v175 = vld [vmem:[%s166] sm:$0xf]
      %v176 = vld [vmem:[%s166 + $0x4] sm:$0xf]
      %v177 = vld [vmem:[%s166 + $0x8] sm:$0xf]
      %v178 = vld [vmem:[%s166 + $0xc] sm:$0xf]
      %v179 = vld [vmem:[%s166 + $0x10] sm:$0xf]
      %v180 = vld [vmem:[%s166 + $0x14] sm:$0xf]
      %v181 = vld [vmem:[%s166 + $0x18] sm:$0xf]
      %v182 = vld [vmem:[%s166 + $0x1c] sm:$0xf]
      %v183 = vld [vmem:[%s166 + $0x20] sm:$0xf]
      %v184 = vld [vmem:[%s166 + $0x24] sm:$0xf]
      %v185 = vld [vmem:[%s166 + $0x28] sm:$0xf]
      %v186 = vld [vmem:[%s166 + $0x2c] sm:$0xf]
      %v187 = vld [vmem:[%s166 + $0x30] sm:$0xf]
      %v188 = vld [vmem:[%s166 + $0x34] sm:$0xf]
      %v189 = vld [vmem:[%s166 + $0x38] sm:$0xf]
      %v190 = vld [vmem:[%s166 + $0x3c] sm:$0xf]
      %v191 = vld [vmem:[%s166 + $0x40] sm:$0xf]
      %v192 = vld [vmem:[%s166 + $0x44] sm:$0xf]
      %v193 = vld [vmem:[%s166 + $0x48] sm:$0xf]
      %v194 = vld [vmem:[%s166 + $0x4c] sm:$0xf]
      %v195 = vld [vmem:[%s166 + $0x50] sm:$0xf]
      %v196 = vld [vmem:[%s166 + $0x54] sm:$0xf]
      %v197 = vld [vmem:[%s166 + $0x58] sm:$0xf]
      %v198 = vld [vmem:[%s166 + $0x5c] sm:$0xf]
      %v199 = vld [vmem:[%s166 + $0x60] sm:$0xf]
      %v200 = vld [vmem:[%s166 + $0x64] sm:$0xf]
      %v201 = vld [vmem:[%s166 + $0x68] sm:$0xf]
      %v202 = vld [vmem:[%s166 + $0x6c] sm:$0xf]
      %v203 = vld [vmem:[%s166 + $0x70] sm:$0xf]
      %v204 = vld [vmem:[%s166 + $0x74] sm:$0xf]
      %v205 = vld [vmem:[%s166 + $0x78] sm:$0xf]
      %v206 = vld [vmem:[%s166 + $0x7c] sm:$0xf]
      %v207 = vld [vmem:[%s166 + $0x80] sm:$0xf]
      %v208 = vld [vmem:[%s166 + $0x84] sm:$0xf]
      %v209 = vld [vmem:[%s166 + $0x88] sm:$0xf]
      %v210 = vld [vmem:[%s166 + $0x8c] sm:$0xf]
      %v211 = vld [vmem:[%s166 + $0x90] sm:$0xf]
      %v212 = vld [vmem:[%s166 + $0x94] sm:$0xf]
      %v213 = vld [vmem:[%s166 + $0x98] sm:$0xf]
      %v214 = vld [vmem:[%s166 + $0x9c] sm:$0xf]
      %v215 = vld [vmem:[%s166 + $0xa0] sm:$0xf]
      %v216 = vld [vmem:[%s166 + $0xa4] sm:$0xf]
      %v217 = vld [vmem:[%s166 + $0xa8] sm:$0xf]
      %v218 = vld [vmem:[%s166 + $0xac] sm:$0xf]
      %v219 = vld [vmem:[%s166 + $0xb0] sm:$0xf]
      %v220 = vld [vmem:[%s166 + $0xb4] sm:$0xf]
      %v221 = vld [vmem:[%s166 + $0xb8] sm:$0xf]
      %v222 = vld [vmem:[%s166 + $0xbc] sm:$0xf]
      %v223 = vld [vmem:[%s166 + $0xc0] sm:$0xf]
      %v224 = vld [vmem:[%s166 + $0xc4] sm:$0xf]
      %v225 = vld [vmem:[%s166 + $0xc8] sm:$0xf]
      %v226 = vld [vmem:[%s166 + $0xcc] sm:$0xf]
      %v227 = vld [vmem:[%s166 + $0xd0] sm:$0xf]
      %v228 = vld [vmem:[%s166 + $0xd4] sm:$0xf]
      %v229 = vld [vmem:[%s166 + $0xd8] sm:$0xf]
      %v230 = vld [vmem:[%s166 + $0xdc] sm:$0xf]
      %v231 = vld [vmem:[%s166 + $0xe0] sm:$0xf]
      %v232 = vld [vmem:[%s166 + $0xe4] sm:$0xf]
      %v233 = vld [vmem:[%s166 + $0xe8] sm:$0xf]
      %v234 = vld [vmem:[%s166 + $0xec] sm:$0xf]
      %v235 = vld [vmem:[%s166 + $0xf0] sm:$0xf]
      %v236 = vld [vmem:[%s166 + $0xf4] sm:$0xf]
      %v237 = vld [vmem:[%s166 + $0xf8] sm:$0xf]
      %v238 = vld [vmem:[%s166 + $0xfc] sm:$0xf]
      %v239 = vld [vmem:[%s166 + $0x100] sm:$0xf]
      %v240 = vld [vmem:[%s166 + $0x104] sm:$0xf]
      %v241 = vld [vmem:[%s166 + $0x108] sm:$0xf]
      %v242 = vld [vmem:[%s166 + $0x10c] sm:$0xf]
      %v243 = vld [vmem:[%s166 + $0x110] sm:$0xf]
      %v244 = vld [vmem:[%s166 + $0x114] sm:$0xf]
      %v245 = vld [vmem:[%s166 + $0x118] sm:$0xf]
      %v246 = vld [vmem:[%s166 + $0x11c] sm:$0xf]
      %v247 = vld [vmem:[%s166 + $0x120] sm:$0xf]
      %v248 = vld [vmem:[%s166 + $0x124] sm:$0xf]
      %v249 = vld [vmem:[%s166 + $0x128] sm:$0xf]
      %v250 = vld [vmem:[%s166 + $0x12c] sm:$0xf]
      %v251 = vld [vmem:[%s166 + $0x130] sm:$0xf]
      %v252 = vld [vmem:[%s166 + $0x134] sm:$0xf]
      %v253 = vld [vmem:[%s166 + $0x138] sm:$0xf]
      %v254 = vld [vmem:[%s166 + $0x13c] sm:$0xf]
      %v255 = vld [vmem:[%s166 + $0x140] sm:$0xf]
      %v256 = vld [vmem:[%s166 + $0x144] sm:$0xf]
      %v257 = vld [vmem:[%s166 + $0x148] sm:$0xf]
      %v258 = vld [vmem:[%s166 + $0x14c] sm:$0xf]
      %v259 = vld [vmem:[%s166 + $0x150] sm:$0xf]
      %v260 = vld [vmem:[%s166 + $0x154] sm:$0xf]
      %v261 = vld [vmem:[%s166 + $0x158] sm:$0xf]
      %v262 = vld [vmem:[%s166 + $0x15c] sm:$0xf]
      %v263 = vld [vmem:[%s166 + $0x160] sm:$0xf]
      %v264 = vld [vmem:[%s166 + $0x164] sm:$0xf]
      %v265 = vld [vmem:[%s166 + $0x168] sm:$0xf]
      %v266 = vld [vmem:[%s166 + $0x16c] sm:$0xf]
      %v267 = vld [vmem:[%s166 + $0x170] sm:$0xf]
      %v268 = vld [vmem:[%s166 + $0x174] sm:$0xf]
      %v269 = vld [vmem:[%s166 + $0x178] sm:$0xf]
      %v270 = vld [vmem:[%s166 + $0x17c] sm:$0xf]
      %v271 = vld [vmem:[%s166 + $0x180] sm:$0xf]
      %v272 = vld [vmem:[%s166 + $0x184] sm:$0xf]
      %v273 = vld [vmem:[%s166 + $0x188] sm:$0xf]
      %v274 = vld [vmem:[%s166 + $0x18c] sm:$0xf]
      %v275 = vld [vmem:[%s166 + $0x190] sm:$0xf]
      %v276 = vld [vmem:[%s166 + $0x194] sm:$0xf]
      %v277 = vld [vmem:[%s166 + $0x198] sm:$0xf]
      %v278 = vld [vmem:[%s166 + $0x19c] sm:$0xf]
      %v279 = vld [vmem:[%s166 + $0x1a0] sm:$0xf]
      %v280 = vld [vmem:[%s166 + $0x1a4] sm:$0xf]
      %v281 = vld [vmem:[%s166 + $0x1a8] sm:$0xf]
      %v282 = vld [vmem:[%s166 + $0x1ac] sm:$0xf]
      %v283 = vld [vmem:[%s166 + $0x1b0] sm:$0xf]
      %v284 = vld [vmem:[%s166 + $0x1b4] sm:$0xf]
      %v285 = vld [vmem:[%s166 + $0x1b8] sm:$0xf]
      %v286 = vld [vmem:[%s166 + $0x1bc] sm:$0xf]
      %v287 = vld [vmem:[%s1] sm:$0xf]
      %v288 = vld [vmem:[%s1 + $0x4] sm:$0xf]
      %v289 = vld [vmem:[%s1 + $0x8] sm:$0xf]
      %v290 = vld [vmem:[%s1 + $0xc] sm:$0xf]
      %v291 = vld [vmem:[%s1 + $0x10] sm:$0xf]
      %v292 = vld [vmem:[%s1 + $0x14] sm:$0xf]
      %v293 = vld [vmem:[%s1 + $0x18] sm:$0xf]
      %v294 = vld [vmem:[%s1 + $0x1c] sm:$0xf]
      %v295 = vld [vmem:[%s1 + $0x20] sm:$0xf]
      %v296 = vld [vmem:[%s1 + $0x24] sm:$0xf]
      %v409 = vunpack.c.l.b16 %v175
      %v410 = vunpack.c.l.b16 %v176
      %v411 = vunpack.c.l.b16 %v177
      %v412 = vunpack.c.l.b16 %v178
      %v413 = vunpack.c.l.b16 %v179
      %v414 = vunpack.c.l.b16 %v180
      %v415 = vunpack.c.l.b16 %v181
      %v416 = vunpack.c.l.b16 %v182
      %v417 = vunpack.c.l.b16 %v183
      %v418 = vunpack.c.l.b16 %v184
      %v419 = vunpack.c.l.b16 %v185
      %v420 = vunpack.c.l.b16 %v186
      %v421 = vunpack.c.l.b16 %v187
      %v422 = vunpack.c.l.b16 %v188
      %v423 = vunpack.c.l.b16 %v189
      %v424 = vunpack.c.l.b16 %v190
      %v425 = vunpack.c.l.b16 %v191
      %v426 = vunpack.c.l.b16 %v192
      %v427 = vunpack.c.l.b16 %v193
      %v428 = vunpack.c.l.b16 %v194
      %v429 = vunpack.c.l.b16 %v195
      %v430 = vunpack.c.l.b16 %v196
      %v431 = vunpack.c.l.b16 %v197
      %v432 = vunpack.c.l.b16 %v198
      %v433 = vunpack.c.l.b16 %v199
      %v434 = vunpack.c.l.b16 %v200
      %v435 = vunpack.c.l.b16 %v201
      %v436 = vunpack.c.l.b16 %v202
      %v437 = vunpack.c.l.b16 %v203
      %v438 = vunpack.c.l.b16 %v204
      %v439 = vunpack.c.l.b16 %v205
      %v440 = vunpack.c.l.b16 %v206
      %v441 = vunpack.c.l.b16 %v207
      %v442 = vunpack.c.l.b16 %v208
      %v443 = vunpack.c.l.b16 %v209
      %v444 = vunpack.c.l.b16 %v210
      %v445 = vunpack.c.l.b16 %v211
      %v446 = vunpack.c.l.b16 %v212
      %v447 = vunpack.c.l.b16 %v213
      %v448 = vunpack.c.l.b16 %v214
      %v449 = vunpack.c.l.b16 %v215
      %v450 = vunpack.c.l.b16 %v216
      %v451 = vunpack.c.l.b16 %v217
      %v452 = vunpack.c.l.b16 %v218
      %v453 = vunpack.c.l.b16 %v219
      %v454 = vunpack.c.l.b16 %v220
      %v455 = vunpack.c.l.b16 %v221
      %v456 = vunpack.c.l.b16 %v222
      %v457 = vunpack.c.l.b16 %v223
      %v458 = vunpack.c.l.b16 %v224
      %v459 = vunpack.c.l.b16 %v225
      %v460 = vunpack.c.l.b16 %v226
      %v461 = vunpack.c.l.b16 %v227
      %v462 = vunpack.c.l.b16 %v228
      %v463 = vunpack.c.l.b16 %v229
      %v464 = vunpack.c.l.b16 %v230
      %v465 = vunpack.c.l.b16 %v231
      %v466 = vunpack.c.l.b16 %v232
      %v467 = vunpack.c.l.b16 %v233
      %v468 = vunpack.c.l.b16 %v234
      %v469 = vunpack.c.l.b16 %v235
      %v470 = vunpack.c.l.b16 %v236
      %v471 = vunpack.c.l.b16 %v237
      %v472 = vunpack.c.l.b16 %v238
      %v473 = vunpack.c.l.b16 %v239
      %v474 = vunpack.c.l.b16 %v240
      %v475 = vunpack.c.l.b16 %v241
      %v476 = vunpack.c.l.b16 %v242
      %v477 = vunpack.c.l.b16 %v243
      %v478 = vunpack.c.l.b16 %v244
      %v479 = vunpack.c.l.b16 %v245
      %v480 = vunpack.c.l.b16 %v246
      %v481 = vunpack.c.l.b16 %v247
      %v482 = vunpack.c.l.b16 %v248
      %v483 = vunpack.c.l.b16 %v249
      %v484 = vunpack.c.l.b16 %v250
      %v485 = vunpack.c.l.b16 %v251
      %v486 = vunpack.c.l.b16 %v252
      %v487 = vunpack.c.l.b16 %v253
      %v488 = vunpack.c.l.b16 %v254
      %v489 = vunpack.c.l.b16 %v255
      %v490 = vunpack.c.l.b16 %v256
      %v491 = vunpack.c.l.b16 %v257
      %v492 = vunpack.c.l.b16 %v258
      %v493 = vunpack.c.l.b16 %v259
      %v494 = vunpack.c.l.b16 %v260
      %v495 = vunpack.c.l.b16 %v261
      %v496 = vunpack.c.l.b16 %v262
      %v497 = vunpack.c.l.b16 %v263
      %v498 = vunpack.c.l.b16 %v264
      %v499 = vunpack.c.l.b16 %v265
      %v500 = vunpack.c.l.b16 %v266
      %v501 = vunpack.c.l.b16 %v267
      %v502 = vunpack.c.l.b16 %v268
      %v503 = vunpack.c.l.b16 %v269
      %v504 = vunpack.c.l.b16 %v270
      %v505 = vunpack.c.l.b16 %v271
      %v506 = vunpack.c.l.b16 %v272
      %v507 = vunpack.c.l.b16 %v273
      %v508 = vunpack.c.l.b16 %v274
      %v509 = vunpack.c.l.b16 %v275
      %v510 = vunpack.c.l.b16 %v276
      %v511 = vunpack.c.l.b16 %v277
      %v512 = vunpack.c.l.b16 %v278
      %v513 = vunpack.c.l.b16 %v279
      %v514 = vunpack.c.l.b16 %v280
      %v515 = vunpack.c.l.b16 %v281
      %v516 = vunpack.c.l.b16 %v282
      %v517 = vunpack.c.l.b16 %v283
      %v518 = vunpack.c.l.b16 %v284
      %v519 = vunpack.c.l.b16 %v285
      %v520 = vunpack.c.l.b16 %v286
      %v521 = vpack.c.b16 %v410, %v409
      %v522 = vpack.c.b16 %v412, %v411
      %v523 = vpack.c.b16 %v414, %v413
      %v524 = vpack.c.b16 %v416, %v415
      %v525 = vpack.c.b16 %v418, %v417
      %v526 = vpack.c.b16 %v420, %v419
      %v527 = vpack.c.b16 %v422, %v421
      %v528 = vpack.c.b16 %v424, %v423
      %v529 = vpack.c.b16 %v426, %v425
      %v530 = vpack.c.b16 %v428, %v427
      %v531 = vpack.c.b16 %v430, %v429
      %v532 = vpack.c.b16 %v432, %v431
      %v533 = vpack.c.b16 %v434, %v433
      %v534 = vpack.c.b16 %v436, %v435
      %v535 = vpack.c.b16 %v438, %v437
      %v536 = vpack.c.b16 %v440, %v439
      %v537 = vpack.c.b16 %v442, %v441
      %v538 = vpack.c.b16 %v444, %v443
      %v539 = vpack.c.b16 %v446, %v445
      %v540 = vpack.c.b16 %v448, %v447
      %v541 = vpack.c.b16 %v450, %v449
      %v542 = vpack.c.b16 %v452, %v451
      %v543 = vpack.c.b16 %v454, %v453
      %v544 = vpack.c.b16 %v456, %v455
      %v545 = vpack.c.b16 %v458, %v457
      %v546 = vpack.c.b16 %v460, %v459
      %v547 = vpack.c.b16 %v462, %v461
      %v548 = vpack.c.b16 %v464, %v463
      %v549 = vpack.c.b16 %v466, %v465
      %v550 = vpack.c.b16 %v468, %v467
      %v551 = vpack.c.b16 %v470, %v469
      %v552 = vpack.c.b16 %v472, %v471
      %v553 = vpack.c.b16 %v474, %v473
      %v554 = vpack.c.b16 %v476, %v475
      %v555 = vpack.c.b16 %v478, %v477
      %v556 = vpack.c.b16 %v480, %v479
      %v557 = vpack.c.b16 %v482, %v481
      %v558 = vpack.c.b16 %v484, %v483
      %v559 = vpack.c.b16 %v486, %v485
      %v560 = vpack.c.b16 %v488, %v487
      %v561 = vpack.c.b16 %v490, %v489
      %v562 = vpack.c.b16 %v492, %v491
      %v563 = vpack.c.b16 %v494, %v493
      %v564 = vpack.c.b16 %v496, %v495
      %v565 = vpack.c.b16 %v498, %v497
      %v566 = vpack.c.b16 %v500, %v499
      %v567 = vpack.c.b16 %v502, %v501
      %v568 = vpack.c.b16 %v504, %v503
      %v569 = vpack.c.b16 %v506, %v505
      %v570 = vpack.c.b16 %v508, %v507
      %v571 = vpack.c.b16 %v510, %v509
      %v572 = vpack.c.b16 %v512, %v511
      %v573 = vpack.c.b16 %v514, %v513
      %v574 = vpack.c.b16 %v516, %v515
      %v575 = vpack.c.b16 %v518, %v517
      %v576 = vpack.c.b16 %v520, %v519
      %v587 = vunpack.c.l.b16 %v287
      %v588 = vunpack.c.l.b16 %v288
      %v589 = vunpack.c.l.b16 %v289
      %v590 = vunpack.c.l.b16 %v290
      %v591 = vunpack.c.l.b16 %v291
      %v592 = vunpack.c.l.b16 %v292
      %v593 = vunpack.c.l.b16 %v293
      %v594 = vunpack.c.l.b16 %v294
      %v595 = vunpack.c.l.b16 %v295
      %v596 = vunpack.c.l.b16 %v296
      %v597 = vpack.c.b16 %v588, %v587
      %v598 = vpack.c.b16 %v590, %v589
      %v599 = vpack.c.b16 %v592, %v591
      %v600 = vpack.c.b16 %v594, %v593
      %v601 = vpack.c.b16 %v596, %v595
      %vm607 = vcmask 654336
      %v609 = vsel %vm607, %v521, 0
      %v612 = vsel %vm607, %v522, 0
      %v615 = vsel %vm607, %v523, 0
      %v618 = vsel %vm607, %v524, 0
      %v621 = vsel %vm607, %v525, 0
      %v624 = vsel %vm607, %v526, 0
      %v627 = vsel %vm607, %v527, 0
      %v630 = vsel %vm607, %v528, 0
      %v633 = vsel %vm607, %v529, 0
      %v636 = vsel %vm607, %v530, 0
      %v639 = vsel %vm607, %v531, 0
      %v642 = vsel %vm607, %v532, 0
      %v645 = vsel %vm607, %v533, 0
      %v648 = vsel %vm607, %v534, 0
      %v651 = vsel %vm607, %v535, 0
      %v654 = vsel %vm607, %v536, 0
      %v657 = vsel %vm607, %v537, 0
      %v660 = vsel %vm607, %v538, 0
      %v663 = vsel %vm607, %v539, 0
      %v666 = vsel %vm607, %v540, 0
      %v669 = vsel %vm607, %v541, 0
      %v672 = vsel %vm607, %v542, 0
      %v675 = vsel %vm607, %v543, 0
      %v678 = vsel %vm607, %v544, 0
      %v681 = vsel %vm607, %v545, 0
      %v684 = vsel %vm607, %v546, 0
      %v687 = vsel %vm607, %v547, 0
      %v690 = vsel %vm607, %v548, 0
      %v693 = vsel %vm607, %v549, 0
      %v696 = vsel %vm607, %v550, 0
      %v699 = vsel %vm607, %v551, 0
      %v702 = vsel %vm607, %v552, 0
      %v705 = vsel %vm607, %v553, 0
      %v708 = vsel %vm607, %v554, 0
      %v711 = vsel %vm607, %v555, 0
      %v714 = vsel %vm607, %v556, 0
      %v717 = vsel %vm607, %v557, 0
      %v720 = vsel %vm607, %v558, 0
      %v723 = vsel %vm607, %v559, 0
      %v726 = vsel %vm607, %v560, 0
      %v729 = vsel %vm607, %v561, 0
      %v732 = vsel %vm607, %v562, 0
      %v735 = vsel %vm607, %v563, 0
      %v738 = vsel %vm607, %v564, 0
      %v741 = vsel %vm607, %v565, 0
      %v744 = vsel %vm607, %v566, 0
      %v747 = vsel %vm607, %v567, 0
      %v750 = vsel %vm607, %v568, 0
      %v753 = vsel %vm607, %v569, 0
      %v756 = vsel %vm607, %v570, 0
      %v759 = vsel %vm607, %v571, 0
      %v762 = vsel %vm607, %v572, 0
      %v765 = vsel %vm607, %v573, 0
      %v768 = vsel %vm607, %v574, 0
      %v771 = vsel %vm607, %v575, 0
      %v774 = vsel %vm607, %v576, 0
      %776 = vmatprep.subr.bf16.mxu0 0
      %777 = vmatpush1.bf16.msra.mxu0 0
      %778 = vmatprep.subr.bf16.mxu0 0
      %779 = vmatpush1.bf16.msra.mxu0 0
      %780 = vmatprep.subr.bf16.mxu0 0
      %781 = vmatpush1.bf16.msra.mxu0 0
      %782 = vmatprep.subr.bf16.mxu0 0
      %783 = vmatpush1.bf16.msra.mxu0 %v601
      %784 = vmatprep.subr.bf16.mxu0 0
      %785 = vmatpush1.bf16.msra.mxu0 %v600
      %786 = vmatprep.subr.bf16.mxu0 0
      %787 = vmatpush1.bf16.msra.mxu0 %v599
      %788 = vmatprep.subr.bf16.mxu0 0
      %789 = vmatpush1.bf16.msra.mxu0 %v598
      %790 = vmatprep.subr.bf16.mxu0 0
      %791 = vmatpush1.bf16.msra.mxu0 %v597
      %792 = vmatprep.subr.bf16.mxu0 0
      %793 = vmatpush2.bf16.msra.mxu0 0
      %794 = vmatprep.subr.bf16.mxu0 0
      %795 = vmatpush2.bf16.msra.mxu0 0
      %796 = vmatprep.subr.bf16.mxu0 0
      %797 = vmatpush2.bf16.msra.mxu0 0
      %798 = vmatprep.subr.bf16.mxu0 0
      %799 = vmatpush2.bf16.msra.mxu0 0
      %800 = vmatprep.subr.bf16.mxu0 0
      %801 = vmatpush2.bf16.msra.mxu0 0
      %802 = vmatprep.subr.bf16.mxu0 0
      %803 = vmatpush2.bf16.msra.mxu0 0
      %804 = vmatprep.subr.bf16.mxu0 0
      %805 = vmatpush2.bf16.msra.mxu0 0
      %806 = vmatprep.subr.bf16.mxu0 0
      %807 = vmatpush2.bf16.msra.mxu0 0
      %808 = vmatprep.mubr.bf16.mxu0 0
      %809 = vmatmul.mubr.bf16.gmra.mxu0 %v609
      %v810 = vpop.f32.mrf.mxu0
      %v811 = vadd.f32 0.0, %v810
      %v812 = vpop.f32.mrf.mxu0
      %v813 = vpop.f32.mrf.mxu0
      %v814 = vadd.f32 0.0, %v813
      %v815 = vpop.f32.mrf.mxu0
      %816 = vmatprep.mubr.bf16.mxu0 0
      %817 = vmatmul.mubr.bf16.gmra.mxu0 %v612
      %v818 = vpop.f32.mrf.mxu0
      %v819 = vadd.f32 0.0, %v818
      %v820 = vpop.f32.mrf.mxu0
      %v821 = vpop.f32.mrf.mxu0
      %v822 = vadd.f32 0.0, %v821
      %v823 = vpop.f32.mrf.mxu0
      %824 = vmatprep.mubr.bf16.mxu0 0
      %825 = vmatmul.mubr.bf16.gmra.mxu0 %v615
      %v826 = vpop.f32.mrf.mxu0
      %v827 = vadd.f32 0.0, %v826
      %v828 = vpop.f32.mrf.mxu0
      %v829 = vpop.f32.mrf.mxu0
      %v830 = vadd.f32 0.0, %v829
      %v831 = vpop.f32.mrf.mxu0
      %832 = vmatprep.mubr.bf16.mxu0 0
      %833 = vmatmul.mubr.bf16.gmra.mxu0 %v618
      %v834 = vpop.f32.mrf.mxu0
      %v835 = vadd.f32 0.0, %v834
      %v836 = vpop.f32.mrf.mxu0
      %v837 = vpop.f32.mrf.mxu0
      %v838 = vadd.f32 0.0, %v837
      %v839 = vpop.f32.mrf.mxu0
      %840 = vmatprep.mubr.bf16.mxu0 0
      %841 = vmatmul.mubr.bf16.gmra.mxu0 %v621
      %v842 = vpop.f32.mrf.mxu0
      %v843 = vadd.f32 0.0, %v842
      %v844 = vpop.f32.mrf.mxu0
      %v845 = vpop.f32.mrf.mxu0
      %v846 = vadd.f32 0.0, %v845
      %v847 = vpop.f32.mrf.mxu0
      %848 = vmatprep.mubr.bf16.mxu0 0
      %849 = vmatmul.mubr.bf16.gmra.mxu0 %v624
      %v850 = vpop.f32.mrf.mxu0
      %v851 = vadd.f32 0.0, %v850
      %v852 = vpop.f32.mrf.mxu0
      %v853 = vpop.f32.mrf.mxu0
      %v854 = vadd.f32 0.0, %v853
      %v855 = vpop.f32.mrf.mxu0
      %856 = vmatprep.mubr.bf16.mxu0 0
      %857 = vmatmul.mubr.bf16.gmra.mxu0 %v627
      %v858 = vpop.f32.mrf.mxu0
      %v859 = vadd.f32 0.0, %v858
      %v860 = vpop.f32.mrf.mxu0
      %v861 = vpop.f32.mrf.mxu0
      %v862 = vadd.f32 0.0, %v861
      %v863 = vpop.f32.mrf.mxu0
      %864 = vmatprep.mubr.bf16.mxu0 0
      %865 = vmatmul.mubr.bf16.gmra.mxu0 %v630
      %v866 = vpop.f32.mrf.mxu0
      %v867 = vadd.f32 0.0, %v866
      %v868 = vpop.f32.mrf.mxu0
      %v869 = vpop.f32.mrf.mxu0
      %v870 = vadd.f32 0.0, %v869
      %v871 = vpop.f32.mrf.mxu0
      %872 = vmatprep.mubr.bf16.mxu0 0
      %873 = vmatmul.mubr.bf16.gmra.mxu0 %v633
      %v874 = vpop.f32.mrf.mxu0
      %v875 = vadd.f32 0.0, %v874
      %v876 = vpop.f32.mrf.mxu0
      %v877 = vpop.f32.mrf.mxu0
      %v878 = vadd.f32 0.0, %v877
      %v879 = vpop.f32.mrf.mxu0
      %880 = vmatprep.mubr.bf16.mxu0 0
      %881 = vmatmul.mubr.bf16.gmra.mxu0 %v636
      %v882 = vpop.f32.mrf.mxu0
      %v883 = vadd.f32 0.0, %v882
      %v884 = vpop.f32.mrf.mxu0
      %v885 = vpop.f32.mrf.mxu0
      %v886 = vadd.f32 0.0, %v885
      %v887 = vpop.f32.mrf.mxu0
      %888 = vmatprep.mubr.bf16.mxu0 0
      %889 = vmatmul.mubr.bf16.gmra.mxu0 %v639
      %v890 = vpop.f32.mrf.mxu0
      %v891 = vadd.f32 0.0, %v890
      %v892 = vpop.f32.mrf.mxu0
      %v893 = vpop.f32.mrf.mxu0
      %v894 = vadd.f32 0.0, %v893
      %v895 = vpop.f32.mrf.mxu0
      %896 = vmatprep.mubr.bf16.mxu0 0
      %897 = vmatmul.mubr.bf16.gmra.mxu0 %v642
      %v898 = vpop.f32.mrf.mxu0
      %v899 = vadd.f32 0.0, %v898
      %v900 = vpop.f32.mrf.mxu0
      %v901 = vpop.f32.mrf.mxu0
      %v902 = vadd.f32 0.0, %v901
      %v903 = vpop.f32.mrf.mxu0
      %904 = vmatprep.mubr.bf16.mxu0 0
      %905 = vmatmul.mubr.bf16.gmra.mxu0 %v645
      %v906 = vpop.f32.mrf.mxu0
      %v907 = vadd.f32 0.0, %v906
      %v908 = vpop.f32.mrf.mxu0
      %v909 = vpop.f32.mrf.mxu0
      %v910 = vadd.f32 0.0, %v909
      %v911 = vpop.f32.mrf.mxu0
      %912 = vmatprep.mubr.bf16.mxu0 0
      %913 = vmatmul.mubr.bf16.gmra.mxu0 %v648
      %v914 = vpop.f32.mrf.mxu0
      %v915 = vadd.f32 0.0, %v914
      %v916 = vpop.f32.mrf.mxu0
      %v917 = vpop.f32.mrf.mxu0
      %v918 = vadd.f32 0.0, %v917
      %v919 = vpop.f32.mrf.mxu0
      %920 = vmatprep.mubr.bf16.mxu0 0
      %921 = vmatmul.mubr.bf16.gmra.mxu0 %v651
      %v922 = vpop.f32.mrf.mxu0
      %v923 = vadd.f32 0.0, %v922
      %v924 = vpop.f32.mrf.mxu0
      %v925 = vpop.f32.mrf.mxu0
      %v926 = vadd.f32 0.0, %v925
      %v927 = vpop.f32.mrf.mxu0
      %928 = vmatprep.mubr.bf16.mxu0 0
      %929 = vmatmul.mubr.bf16.gmra.mxu0 %v654
      %v930 = vpop.f32.mrf.mxu0
      %v931 = vadd.f32 0.0, %v930
      %v932 = vpop.f32.mrf.mxu0
      %v933 = vpop.f32.mrf.mxu0
      %v934 = vadd.f32 0.0, %v933
      %v935 = vpop.f32.mrf.mxu0
      %936 = vmatprep.mubr.bf16.mxu0 0
      %937 = vmatmul.mubr.bf16.gmra.mxu0 %v657
      %v938 = vpop.f32.mrf.mxu0
      %v939 = vadd.f32 0.0, %v938
      %v940 = vpop.f32.mrf.mxu0
      %v941 = vpop.f32.mrf.mxu0
      %v942 = vadd.f32 0.0, %v941
      %v943 = vpop.f32.mrf.mxu0
      %944 = vmatprep.mubr.bf16.mxu0 0
      %945 = vmatmul.mubr.bf16.gmra.mxu0 %v660
      %v946 = vpop.f32.mrf.mxu0
      %v947 = vadd.f32 0.0, %v946
      %v948 = vpop.f32.mrf.mxu0
      %v949 = vpop.f32.mrf.mxu0
      %v950 = vadd.f32 0.0, %v949
      %v951 = vpop.f32.mrf.mxu0
      %952 = vmatprep.mubr.bf16.mxu0 0
      %953 = vmatmul.mubr.bf16.gmra.mxu0 %v663
      %v954 = vpop.f32.mrf.mxu0
      %v955 = vadd.f32 0.0, %v954
      %v956 = vpop.f32.mrf.mxu0
      %v957 = vpop.f32.mrf.mxu0
      %v958 = vadd.f32 0.0, %v957
      %v959 = vpop.f32.mrf.mxu0
      %960 = vmatprep.mubr.bf16.mxu0 0
      %961 = vmatmul.mubr.bf16.gmra.mxu0 %v666
      %v962 = vpop.f32.mrf.mxu0
      %v963 = vadd.f32 0.0, %v962
      %v964 = vpop.f32.mrf.mxu0
      %v965 = vpop.f32.mrf.mxu0
      %v966 = vadd.f32 0.0, %v965
      %v967 = vpop.f32.mrf.mxu0
      %968 = vmatprep.mubr.bf16.mxu0 0
      %969 = vmatmul.mubr.bf16.gmra.mxu0 %v669
      %v970 = vpop.f32.mrf.mxu0
      %v971 = vadd.f32 0.0, %v970
      %v972 = vpop.f32.mrf.mxu0
      %v973 = vpop.f32.mrf.mxu0
      %v974 = vadd.f32 0.0, %v973
      %v975 = vpop.f32.mrf.mxu0
      %976 = vmatprep.mubr.bf16.mxu0 0
      %977 = vmatmul.mubr.bf16.gmra.mxu0 %v672
      %v978 = vpop.f32.mrf.mxu0
      %v979 = vadd.f32 0.0, %v978
      %v980 = vpop.f32.mrf.mxu0
      %v981 = vpop.f32.mrf.mxu0
      %v982 = vadd.f32 0.0, %v981
      %v983 = vpop.f32.mrf.mxu0
      %984 = vmatprep.mubr.bf16.mxu0 0
      %985 = vmatmul.mubr.bf16.gmra.mxu0 %v675
      %v986 = vpop.f32.mrf.mxu0
      %v987 = vadd.f32 0.0, %v986
      %v988 = vpop.f32.mrf.mxu0
      %v989 = vpop.f32.mrf.mxu0
      %v990 = vadd.f32 0.0, %v989
      %v991 = vpop.f32.mrf.mxu0
      %992 = vmatprep.mubr.bf16.mxu0 0
      %993 = vmatmul.mubr.bf16.gmra.mxu0 %v678
      %v994 = vpop.f32.mrf.mxu0
      %v995 = vadd.f32 0.0, %v994
      %v996 = vpop.f32.mrf.mxu0
      %v997 = vpop.f32.mrf.mxu0
      %v998 = vadd.f32 0.0, %v997
      %v999 = vpop.f32.mrf.mxu0
      %1000 = vmatprep.mubr.bf16.mxu0 0
      %1001 = vmatmul.mubr.bf16.gmra.mxu0 %v681
      %v1002 = vpop.f32.mrf.mxu0
      %v1003 = vadd.f32 0.0, %v1002
      %v1004 = vpop.f32.mrf.mxu0
      %v1005 = vpop.f32.mrf.mxu0
      %v1006 = vadd.f32 0.0, %v1005
      %v1007 = vpop.f32.mrf.mxu0
      %1008 = vmatprep.mubr.bf16.mxu0 0
      %1009 = vmatmul.mubr.bf16.gmra.mxu0 %v684
      %v1010 = vpop.f32.mrf.mxu0
      %v1011 = vadd.f32 0.0, %v1010
      %v1012 = vpop.f32.mrf.mxu0
      %v1013 = vpop.f32.mrf.mxu0
      %v1014 = vadd.f32 0.0, %v1013
      %v1015 = vpop.f32.mrf.mxu0
      %1016 = vmatprep.mubr.bf16.mxu0 0
      %1017 = vmatmul.mubr.bf16.gmra.mxu0 %v687
      %v1018 = vpop.f32.mrf.mxu0
      %v1019 = vadd.f32 0.0, %v1018
      %v1020 = vpop.f32.mrf.mxu0
      %v1021 = vpop.f32.mrf.mxu0
      %v1022 = vadd.f32 0.0, %v1021
      %v1023 = vpop.f32.mrf.mxu0
      %1024 = vmatprep.mubr.bf16.mxu0 0
      %1025 = vmatmul.mubr.bf16.gmra.mxu0 %v690
      %v1026 = vpop.f32.mrf.mxu0
      %v1027 = vadd.f32 0.0, %v1026
      %v1028 = vpop.f32.mrf.mxu0
      %v1029 = vpop.f32.mrf.mxu0
      %v1030 = vadd.f32 0.0, %v1029
      %v1031 = vpop.f32.mrf.mxu0
      %1032 = vmatprep.mubr.bf16.mxu0 0
      %1033 = vmatmul.mubr.bf16.gmra.mxu0 %v693
      %v1034 = vpop.f32.mrf.mxu0
      %v1035 = vadd.f32 0.0, %v1034
      %v1036 = vpop.f32.mrf.mxu0
      %v1037 = vpop.f32.mrf.mxu0
      %v1038 = vadd.f32 0.0, %v1037
      %v1039 = vpop.f32.mrf.mxu0
      %1040 = vmatprep.mubr.bf16.mxu0 0
      %1041 = vmatmul.mubr.bf16.gmra.mxu0 %v696
      %v1042 = vpop.f32.mrf.mxu0
      %v1043 = vadd.f32 0.0, %v1042
      %v1044 = vpop.f32.mrf.mxu0
      %v1045 = vpop.f32.mrf.mxu0
      %v1046 = vadd.f32 0.0, %v1045
      %v1047 = vpop.f32.mrf.mxu0
      %1048 = vmatprep.mubr.bf16.mxu0 0
      %1049 = vmatmul.mubr.bf16.gmra.mxu0 %v699
      %v1050 = vpop.f32.mrf.mxu0
      %v1051 = vadd.f32 0.0, %v1050
      %v1052 = vpop.f32.mrf.mxu0
      %v1053 = vpop.f32.mrf.mxu0
      %v1054 = vadd.f32 0.0, %v1053
      %v1055 = vpop.f32.mrf.mxu0
      %1056 = vmatprep.mubr.bf16.mxu0 0
      %1057 = vmatmul.mubr.bf16.gmra.mxu0 %v702
      %v1058 = vpop.f32.mrf.mxu0
      %v1059 = vadd.f32 0.0, %v1058
      %v1060 = vpop.f32.mrf.mxu0
      %v1061 = vpop.f32.mrf.mxu0
      %v1062 = vadd.f32 0.0, %v1061
      %v1063 = vpop.f32.mrf.mxu0
      %1064 = vmatprep.mubr.bf16.mxu0 0
      %1065 = vmatmul.mubr.bf16.gmra.mxu0 %v705
      %v1066 = vpop.f32.mrf.mxu0
      %v1067 = vadd.f32 0.0, %v1066
      %v1068 = vpop.f32.mrf.mxu0
      %v1069 = vpop.f32.mrf.mxu0
      %v1070 = vadd.f32 0.0, %v1069
      %v1071 = vpop.f32.mrf.mxu0
      %1072 = vmatprep.mubr.bf16.mxu0 0
      %1073 = vmatmul.mubr.bf16.gmra.mxu0 %v708
      %v1074 = vpop.f32.mrf.mxu0
      %v1075 = vadd.f32 0.0, %v1074
      %v1076 = vpop.f32.mrf.mxu0
      %v1077 = vpop.f32.mrf.mxu0
      %v1078 = vadd.f32 0.0, %v1077
      %v1079 = vpop.f32.mrf.mxu0
      %1080 = vmatprep.mubr.bf16.mxu0 0
      %1081 = vmatmul.mubr.bf16.gmra.mxu0 %v711
      %v1082 = vpop.f32.mrf.mxu0
      %v1083 = vadd.f32 0.0, %v1082
      %v1084 = vpop.f32.mrf.mxu0
      %v1085 = vpop.f32.mrf.mxu0
      %v1086 = vadd.f32 0.0, %v1085
      %v1087 = vpop.f32.mrf.mxu0
      %1088 = vmatprep.mubr.bf16.mxu0 0
      %1089 = vmatmul.mubr.bf16.gmra.mxu0 %v714
      %v1090 = vpop.f32.mrf.mxu0
      %v1091 = vadd.f32 0.0, %v1090
      %v1092 = vpop.f32.mrf.mxu0
      %v1093 = vpop.f32.mrf.mxu0
      %v1094 = vadd.f32 0.0, %v1093
      %v1095 = vpop.f32.mrf.mxu0
      %1096 = vmatprep.mubr.bf16.mxu0 0
      %1097 = vmatmul.mubr.bf16.gmra.mxu0 %v717
      %v1098 = vpop.f32.mrf.mxu0
      %v1099 = vadd.f32 0.0, %v1098
      %v1100 = vpop.f32.mrf.mxu0
      %v1101 = vpop.f32.mrf.mxu0
      %v1102 = vadd.f32 0.0, %v1101
      %v1103 = vpop.f32.mrf.mxu0
      %1104 = vmatprep.mubr.bf16.mxu0 0
      %1105 = vmatmul.mubr.bf16.gmra.mxu0 %v720
      %v1106 = vpop.f32.mrf.mxu0
      %v1107 = vadd.f32 0.0, %v1106
      %v1108 = vpop.f32.mrf.mxu0
      %v1109 = vpop.f32.mrf.mxu0
      %v1110 = vadd.f32 0.0, %v1109
      %v1111 = vpop.f32.mrf.mxu0
      %1112 = vmatprep.mubr.bf16.mxu0 0
      %1113 = vmatmul.mubr.bf16.gmra.mxu0 %v723
      %v1114 = vpop.f32.mrf.mxu0
      %v1115 = vadd.f32 0.0, %v1114
      %v1116 = vpop.f32.mrf.mxu0
      %v1117 = vpop.f32.mrf.mxu0
      %v1118 = vadd.f32 0.0, %v1117
      %v1119 = vpop.f32.mrf.mxu0
      %1120 = vmatprep.mubr.bf16.mxu0 0
      %1121 = vmatmul.mubr.bf16.gmra.mxu0 %v726
      %v1122 = vpop.f32.mrf.mxu0
      %v1123 = vadd.f32 0.0, %v1122
      %v1124 = vpop.f32.mrf.mxu0
      %v1125 = vpop.f32.mrf.mxu0
      %v1126 = vadd.f32 0.0, %v1125
      %v1127 = vpop.f32.mrf.mxu0
      %1128 = vmatprep.mubr.bf16.mxu0 0
      %1129 = vmatmul.mubr.bf16.gmra.mxu0 %v729
      %v1130 = vpop.f32.mrf.mxu0
      %v1131 = vadd.f32 0.0, %v1130
      %v1132 = vpop.f32.mrf.mxu0
      %v1133 = vpop.f32.mrf.mxu0
      %v1134 = vadd.f32 0.0, %v1133
      %v1135 = vpop.f32.mrf.mxu0
      %1136 = vmatprep.mubr.bf16.mxu0 0
      %1137 = vmatmul.mubr.bf16.gmra.mxu0 %v732
      %v1138 = vpop.f32.mrf.mxu0
      %v1139 = vadd.f32 0.0, %v1138
      %v1140 = vpop.f32.mrf.mxu0
      %v1141 = vpop.f32.mrf.mxu0
      %v1142 = vadd.f32 0.0, %v1141
      %v1143 = vpop.f32.mrf.mxu0
      %1144 = vmatprep.mubr.bf16.mxu0 0
      %1145 = vmatmul.mubr.bf16.gmra.mxu0 %v735
      %v1146 = vpop.f32.mrf.mxu0
      %v1147 = vadd.f32 0.0, %v1146
      %v1148 = vpop.f32.mrf.mxu0
      %v1149 = vpop.f32.mrf.mxu0
      %v1150 = vadd.f32 0.0, %v1149
      %v1151 = vpop.f32.mrf.mxu0
      %1152 = vmatprep.mubr.bf16.mxu0 0
      %1153 = vmatmul.mubr.bf16.gmra.mxu0 %v738
      %v1154 = vpop.f32.mrf.mxu0
      %v1155 = vadd.f32 0.0, %v1154
      %v1156 = vpop.f32.mrf.mxu0
      %v1157 = vpop.f32.mrf.mxu0
      %v1158 = vadd.f32 0.0, %v1157
      %v1159 = vpop.f32.mrf.mxu0
      %1160 = vmatprep.mubr.bf16.mxu0 0
      %1161 = vmatmul.mubr.bf16.gmra.mxu0 %v741
      %v1162 = vpop.f32.mrf.mxu0
      %v1163 = vadd.f32 0.0, %v1162
      %v1164 = vpop.f32.mrf.mxu0
      %v1165 = vpop.f32.mrf.mxu0
      %v1166 = vadd.f32 0.0, %v1165
      %v1167 = vpop.f32.mrf.mxu0
      %1168 = vmatprep.mubr.bf16.mxu0 0
      %1169 = vmatmul.mubr.bf16.gmra.mxu0 %v744
      %v1170 = vpop.f32.mrf.mxu0
      %v1171 = vadd.f32 0.0, %v1170
      %v1172 = vpop.f32.mrf.mxu0
      %v1173 = vpop.f32.mrf.mxu0
      %v1174 = vadd.f32 0.0, %v1173
      %v1175 = vpop.f32.mrf.mxu0
      %1176 = vmatprep.mubr.bf16.mxu0 0
      %1177 = vmatmul.mubr.bf16.gmra.mxu0 %v747
      %v1178 = vpop.f32.mrf.mxu0
      %v1179 = vadd.f32 0.0, %v1178
      %v1180 = vpop.f32.mrf.mxu0
      %v1181 = vpop.f32.mrf.mxu0
      %v1182 = vadd.f32 0.0, %v1181
      %v1183 = vpop.f32.mrf.mxu0
      %1184 = vmatprep.mubr.bf16.mxu0 0
      %1185 = vmatmul.mubr.bf16.gmra.mxu0 %v750
      %v1186 = vpop.f32.mrf.mxu0
      %v1187 = vadd.f32 0.0, %v1186
      %v1188 = vpop.f32.mrf.mxu0
      %v1189 = vpop.f32.mrf.mxu0
      %v1190 = vadd.f32 0.0, %v1189
      %v1191 = vpop.f32.mrf.mxu0
      %1192 = vmatprep.mubr.bf16.mxu0 0
      %1193 = vmatmul.mubr.bf16.gmra.mxu0 %v753
      %v1194 = vpop.f32.mrf.mxu0
      %v1195 = vadd.f32 0.0, %v1194
      %v1196 = vpop.f32.mrf.mxu0
      %v1197 = vpop.f32.mrf.mxu0
      %v1198 = vadd.f32 0.0, %v1197
      %v1199 = vpop.f32.mrf.mxu0
      %1200 = vmatprep.mubr.bf16.mxu0 0
      %1201 = vmatmul.mubr.bf16.gmra.mxu0 %v756
      %v1202 = vpop.f32.mrf.mxu0
      %v1203 = vadd.f32 0.0, %v1202
      %v1204 = vpop.f32.mrf.mxu0
      %v1205 = vpop.f32.mrf.mxu0
      %v1206 = vadd.f32 0.0, %v1205
      %v1207 = vpop.f32.mrf.mxu0
      %1208 = vmatprep.mubr.bf16.mxu0 0
      %1209 = vmatmul.mubr.bf16.gmra.mxu0 %v759
      %v1210 = vpop.f32.mrf.mxu0
      %v1211 = vadd.f32 0.0, %v1210
      %v1212 = vpop.f32.mrf.mxu0
      %v1213 = vpop.f32.mrf.mxu0
      %v1214 = vadd.f32 0.0, %v1213
      %v1215 = vpop.f32.mrf.mxu0
      %1216 = vmatprep.mubr.bf16.mxu0 0
      %1217 = vmatmul.mubr.bf16.gmra.mxu0 %v762
      %v1218 = vpop.f32.mrf.mxu0
      %v1219 = vadd.f32 0.0, %v1218
      %v1220 = vpop.f32.mrf.mxu0
      %v1221 = vpop.f32.mrf.mxu0
      %v1222 = vadd.f32 0.0, %v1221
      %v1223 = vpop.f32.mrf.mxu0
      %1224 = vmatprep.mubr.bf16.mxu0 0
      %1225 = vmatmul.mubr.bf16.gmra.mxu0 %v765
      %v1226 = vpop.f32.mrf.mxu0
      %v1227 = vadd.f32 0.0, %v1226
      %v1228 = vpop.f32.mrf.mxu0
      %v1229 = vpop.f32.mrf.mxu0
      %v1230 = vadd.f32 0.0, %v1229
      %v1231 = vpop.f32.mrf.mxu0
      %1232 = vmatprep.mubr.bf16.mxu0 0
      %1233 = vmatmul.mubr.bf16.gmra.mxu0 %v768
      %v1234 = vpop.f32.mrf.mxu0
      %v1235 = vadd.f32 0.0, %v1234
      %v1236 = vpop.f32.mrf.mxu0
      %v1237 = vpop.f32.mrf.mxu0
      %v1238 = vadd.f32 0.0, %v1237
      %v1239 = vpop.f32.mrf.mxu0
      %1240 = vmatprep.mubr.bf16.mxu0 0
      %1241 = vmatmul.mubr.bf16.gmra.mxu0 %v771
      %v1242 = vpop.f32.mrf.mxu0
      %v1243 = vadd.f32 0.0, %v1242
      %v1244 = vpop.f32.mrf.mxu0
      %v1245 = vpop.f32.mrf.mxu0
      %v1246 = vadd.f32 0.0, %v1245
      %v1247 = vpop.f32.mrf.mxu0
      %1248 = vmatprep.mubr.bf16.mxu0 0
      %1249 = vmatmul.mubr.bf16.gmra.mxu0 %v774
      %v1250 = vpop.f32.mrf.mxu0
      %v1251 = vadd.f32 0.0, %v1250
      %v1252 = vpop.f32.mrf.mxu0
      %v1253 = vpop.f32.mrf.mxu0
      %v1254 = vadd.f32 0.0, %v1253
      %v1255 = vpop.f32.mrf.mxu0
      %1256 = vdwg.mxu0
      %v1257 = vmax.f32 %v811, %v923
      %v1258 = vmax.f32 %v814, %v926
      %v1259 = vmax.f32 %v819, %v931
      %v1260 = vmax.f32 %v822, %v934
      %v1261 = vmax.f32 %v827, %v939
      %v1262 = vmax.f32 %v830, %v942
      %v1263 = vmax.f32 %v835, %v947
      %v1264 = vmax.f32 %v838, %v950
      %v1265 = vmax.f32 %v843, %v955
      %v1266 = vmax.f32 %v846, %v958
      %v1267 = vmax.f32 %v851, %v963
      %v1268 = vmax.f32 %v854, %v966
      %v1269 = vmax.f32 %v859, %v971
      %v1270 = vmax.f32 %v862, %v974
      %v1271 = vmax.f32 %v867, %v979
      %v1272 = vmax.f32 %v870, %v982
      %v1273 = vmax.f32 %v875, %v987
      %v1274 = vmax.f32 %v878, %v990
      %v1275 = vmax.f32 %v883, %v995
      %v1276 = vmax.f32 %v886, %v998
      %v1277 = vmax.f32 %v891, %v1003
      %v1278 = vmax.f32 %v894, %v1006
      %v1279 = vmax.f32 %v899, %v1011
      %v1280 = vmax.f32 %v902, %v1014
      %v1281 = vmax.f32 %v907, %v1019
      %v1282 = vmax.f32 %v910, %v1022
      %v1283 = vmax.f32 %v915, %v1027
      %v1284 = vmax.f32 %v918, %v1030
      %v1285 = vmax.f32 %v1035, %v1147
      %v1286 = vmax.f32 %v1038, %v1150
      %v1287 = vmax.f32 %v1043, %v1155
      %v1288 = vmax.f32 %v1046, %v1158
      %v1289 = vmax.f32 %v1051, %v1163
      %v1290 = vmax.f32 %v1054, %v1166
      %v1291 = vmax.f32 %v1059, %v1171
      %v1292 = vmax.f32 %v1062, %v1174
      %v1293 = vmax.f32 %v1067, %v1179
      %v1294 = vmax.f32 %v1070, %v1182
      %v1295 = vmax.f32 %v1075, %v1187
      %v1296 = vmax.f32 %v1078, %v1190
      %v1297 = vmax.f32 %v1083, %v1195
      %v1298 = vmax.f32 %v1086, %v1198
      %v1299 = vmax.f32 %v1091, %v1203
      %v1300 = vmax.f32 %v1094, %v1206
      %v1301 = vmax.f32 %v1099, %v1211
      %v1302 = vmax.f32 %v1102, %v1214
      %v1303 = vmax.f32 %v1107, %v1219
      %v1304 = vmax.f32 %v1110, %v1222
      %v1305 = vmax.f32 %v1115, %v1227
      %v1306 = vmax.f32 %v1118, %v1230
      %v1307 = vmax.f32 %v1123, %v1235
      %v1308 = vmax.f32 %v1126, %v1238
      %v1309 = vmax.f32 %v1131, %v1243
      %v1310 = vmax.f32 %v1134, %v1246
      %v1311 = vmax.f32 %v1139, %v1251
      %v1312 = vmax.f32 %v1142, %v1254
      %v1313 = vmax.f32 %v1257, %v1285
      %v1314 = vmax.f32 %v1258, %v1286
      %v1315 = vmax.f32 %v1259, %v1287
      %v1316 = vmax.f32 %v1260, %v1288
      %v1317 = vmax.f32 %v1261, %v1289
      %v1318 = vmax.f32 %v1262, %v1290
      %v1319 = vmax.f32 %v1263, %v1291
      %v1320 = vmax.f32 %v1264, %v1292
      %v1321 = vmax.f32 %v1265, %v1293
      %v1322 = vmax.f32 %v1266, %v1294
      %v1323 = vmax.f32 %v1267, %v1295
      %v1324 = vmax.f32 %v1268, %v1296
      %v1325 = vmax.f32 %v1269, %v1297
      %v1326 = vmax.f32 %v1270, %v1298
      %v1327 = vmax.f32 %v1271, %v1299
      %v1328 = vmax.f32 %v1272, %v1300
      %v1329 = vmax.f32 %v1273, %v1301
      %v1330 = vmax.f32 %v1274, %v1302
      %v1331 = vmax.f32 %v1275, %v1303
      %v1332 = vmax.f32 %v1276, %v1304
      %v1333 = vmax.f32 %v1277, %v1305
      %v1334 = vmax.f32 %v1278, %v1306
      %v1335 = vmax.f32 %v1279, %v1307
      %v1336 = vmax.f32 %v1280, %v1308
      %v1337 = vmax.f32 %v1281, %v1309
      %v1338 = vmax.f32 %v1282, %v1310
      %v1339 = vmax.f32 %v1283, %v1311
      %v1340 = vmax.f32 %v1284, %v1312
      %v1341 = vld [vmem:[%s2] sm:$0x1]
      %v1343 = vlaneseq
      %v1344 = vshrl.u32 %v1343, 7
      %v1345 = vsub.s32 0, %v1344
      %v1346 = vrot.slane %v1341, %v1345
      %v1348 = vadd.f32 %v1313, %v1346
      %v1349 = vadd.f32 %v1314, %v1346
      %v1350 = vadd.f32 %v1315, %v1346
      %v1351 = vadd.f32 %v1316, %v1346
      %v1352 = vadd.f32 %v1317, %v1346
      %v1353 = vadd.f32 %v1318, %v1346
      %v1354 = vadd.f32 %v1319, %v1346
      %v1355 = vadd.f32 %v1320, %v1346
      %v1356 = vadd.f32 %v1321, %v1346
      %v1357 = vadd.f32 %v1322, %v1346
      %v1358 = vadd.f32 %v1323, %v1346
      %v1359 = vadd.f32 %v1324, %v1346
      %v1360 = vadd.f32 %v1325, %v1346
      %v1361 = vadd.f32 %v1326, %v1346
      %v1362 = vadd.f32 %v1327, %v1346
      %v1363 = vadd.f32 %v1328, %v1346
      %v1364 = vadd.f32 %v1329, %v1346
      %v1365 = vadd.f32 %v1330, %v1346
      %v1366 = vadd.f32 %v1331, %v1346
      %v1367 = vadd.f32 %v1332, %v1346
      %v1368 = vadd.f32 %v1333, %v1346
      %v1369 = vadd.f32 %v1334, %v1346
      %v1370 = vadd.f32 %v1335, %v1346
      %v1371 = vadd.f32 %v1336, %v1346
      %v1372 = vadd.f32 %v1337, %v1346
      %v1373 = vadd.f32 %v1338, %v1346
      %v1374 = vadd.f32 %v1339, %v1346
      %v1375 = vadd.f32 %v1340, %v1346
      %v1376 = vmax.f32 %v1348, 0.0
      %v1377 = vmax.f32 %v1349, 0.0
      %v1378 = vmax.f32 %v1350, 0.0
      %v1379 = vmax.f32 %v1351, 0.0
      %v1380 = vmax.f32 %v1352, 0.0
      %v1381 = vmax.f32 %v1353, 0.0
      %v1382 = vmax.f32 %v1354, 0.0
      %v1383 = vmax.f32 %v1355, 0.0
      %v1384 = vmax.f32 %v1356, 0.0
      %v1385 = vmax.f32 %v1357, 0.0
      %v1386 = vmax.f32 %v1358, 0.0
      %v1387 = vmax.f32 %v1359, 0.0
      %v1388 = vmax.f32 %v1360, 0.0
      %v1389 = vmax.f32 %v1361, 0.0
      %v1390 = vmax.f32 %v1362, 0.0
      %v1391 = vmax.f32 %v1363, 0.0
      %v1392 = vmax.f32 %v1364, 0.0
      %v1393 = vmax.f32 %v1365, 0.0
      %v1394 = vmax.f32 %v1366, 0.0
      %v1395 = vmax.f32 %v1367, 0.0
      %v1396 = vmax.f32 %v1368, 0.0
      %v1397 = vmax.f32 %v1369, 0.0
      %v1398 = vmax.f32 %v1370, 0.0
      %v1399 = vmax.f32 %v1371, 0.0
      %v1400 = vmax.f32 %v1372, 0.0
      %v1401 = vmax.f32 %v1373, 0.0
      %v1402 = vmax.f32 %v1374, 0.0
      %v1403 = vmax.f32 %v1375, 0.0
      %v1404 = vpack.c.bf16 %v1377, %v1376
      %v1405 = vpack.c.bf16 %v1379, %v1378
      %v1406 = vpack.c.bf16 %v1381, %v1380
      %v1407 = vpack.c.bf16 %v1383, %v1382
      %v1408 = vpack.c.bf16 %v1385, %v1384
      %v1409 = vpack.c.bf16 %v1387, %v1386
      %v1410 = vpack.c.bf16 %v1389, %v1388
      %v1411 = vpack.c.bf16 %v1391, %v1390
      %v1412 = vpack.c.bf16 %v1393, %v1392
      %v1413 = vpack.c.bf16 %v1395, %v1394
      %v1414 = vpack.c.bf16 %v1397, %v1396
      %v1415 = vpack.c.bf16 %v1399, %v1398
      %v1416 = vpack.c.bf16 %v1401, %v1400
      %v1417 = vpack.c.bf16 %v1403, %v1402
      %v1432 = vunpack.c.l.b16 %v1404
      %v1433 = vunpack.c.h.b16 %v1404
      %v1434 = vunpack.c.l.b16 %v1405
      %v1435 = vunpack.c.h.b16 %v1405
      %v1436 = vunpack.c.l.b16 %v1406
      %v1437 = vunpack.c.h.b16 %v1406
      %v1438 = vunpack.c.l.b16 %v1407
      %v1439 = vunpack.c.h.b16 %v1407
      %v1440 = vunpack.c.l.b16 %v1408
      %v1441 = vunpack.c.h.b16 %v1408
      %v1442 = vunpack.c.l.b16 %v1409
      %v1443 = vunpack.c.h.b16 %v1409
      %v1444 = vunpack.c.l.b16 %v1410
      %v1445 = vunpack.c.h.b16 %v1410
      %v1446 = vunpack.c.l.b16 %v1411
      %v1447 = vunpack.c.h.b16 %v1411
      %v1448 = vunpack.c.l.b16 %v1412
      %v1449 = vunpack.c.h.b16 %v1412
      %v1450 = vunpack.c.l.b16 %v1413
      %v1451 = vunpack.c.h.b16 %v1413
      %v1452 = vunpack.c.l.b16 %v1414
      %v1453 = vunpack.c.h.b16 %v1414
      %v1454 = vunpack.c.l.b16 %v1415
      %v1455 = vunpack.c.h.b16 %v1415
      %v1456 = vunpack.c.l.b16 %v1416
      %v1457 = vunpack.c.h.b16 %v1416
      %v1458 = vunpack.c.l.b16 %v1417
      %v1459 = vunpack.c.h.b16 %v1417
      %v1460 = vpack.c.b16 %v1432, %v1432
      %v1461 = vpack.c.b16 %v1433, %v1433
      %v1462 = vpack.c.b16 %v1434, %v1434
      %v1463 = vpack.c.b16 %v1435, %v1435
      %v1464 = vpack.c.b16 %v1436, %v1436
      %v1465 = vpack.c.b16 %v1437, %v1437
      %v1466 = vpack.c.b16 %v1438, %v1438
      %v1467 = vpack.c.b16 %v1439, %v1439
      %v1468 = vpack.c.b16 %v1440, %v1440
      %v1469 = vpack.c.b16 %v1441, %v1441
      %v1470 = vpack.c.b16 %v1442, %v1442
      %v1471 = vpack.c.b16 %v1443, %v1443
      %v1472 = vpack.c.b16 %v1444, %v1444
      %v1473 = vpack.c.b16 %v1445, %v1445
      %v1474 = vpack.c.b16 %v1446, %v1446
      %v1475 = vpack.c.b16 %v1447, %v1447
      %v1476 = vpack.c.b16 %v1448, %v1448
      %v1477 = vpack.c.b16 %v1449, %v1449
      %v1478 = vpack.c.b16 %v1450, %v1450
      %v1479 = vpack.c.b16 %v1451, %v1451
      %v1480 = vpack.c.b16 %v1452, %v1452
      %v1481 = vpack.c.b16 %v1453, %v1453
      %v1482 = vpack.c.b16 %v1454, %v1454
      %v1483 = vpack.c.b16 %v1455, %v1455
      %v1484 = vpack.c.b16 %v1456, %v1456
      %v1485 = vpack.c.b16 %v1457, %v1457
      %v1486 = vpack.c.b16 %v1458, %v1458
      %v1487 = vpack.c.b16 %v1459, %v1459
      %1516 = vst [vmem:[%s172] sm:$0xf] %v1460
      %1517 = vst [vmem:[%s172 + $0x4] sm:$0xf] %v1461
      %1518 = vst [vmem:[%s172 + $0x8] sm:$0xf] %v1462
      %1519 = vst [vmem:[%s172 + $0xc] sm:$0xf] %v1463
      %1520 = vst [vmem:[%s172 + $0x10] sm:$0xf] %v1464
      %1521 = vst [vmem:[%s172 + $0x14] sm:$0xf] %v1465
      %1522 = vst [vmem:[%s172 + $0x18] sm:$0xf] %v1466
      %1523 = vst [vmem:[%s172 + $0x1c] sm:$0xf] %v1467
      %1524 = vst [vmem:[%s172 + $0x20] sm:$0xf] %v1468
      %1525 = vst [vmem:[%s172 + $0x24] sm:$0xf] %v1469
      %1526 = vst [vmem:[%s172 + $0x28] sm:$0xf] %v1470
      %1527 = vst [vmem:[%s172 + $0x2c] sm:$0xf] %v1471
      %1528 = vst [vmem:[%s172 + $0x30] sm:$0xf] %v1472
      %1529 = vst [vmem:[%s172 + $0x34] sm:$0xf] %v1473
      %1530 = vst [vmem:[%s172 + $0x38] sm:$0xf] %v1474
      %1531 = vst [vmem:[%s172 + $0x3c] sm:$0xf] %v1475
      %1532 = vst [vmem:[%s172 + $0x40] sm:$0xf] %v1476
      %1533 = vst [vmem:[%s172 + $0x44] sm:$0xf] %v1477
      %1534 = vst [vmem:[%s172 + $0x48] sm:$0xf] %v1478
      %1535 = vst [vmem:[%s172 + $0x4c] sm:$0xf] %v1479
      %1536 = vst [vmem:[%s172 + $0x50] sm:$0xf] %v1480
      %1537 = vst [vmem:[%s172 + $0x54] sm:$0xf] %v1481
      %1538 = vst [vmem:[%s172 + $0x58] sm:$0xf] %v1482
      %1539 = vst [vmem:[%s172 + $0x5c] sm:$0xf] %v1483
      %1540 = vst [vmem:[%s172 + $0x60] sm:$0xf] %v1484
      %1541 = vst [vmem:[%s172 + $0x64] sm:$0xf] %v1485
      %1542 = vst [vmem:[%s172 + $0x68] sm:$0xf] %v1486
      %1543 = vst [vmem:[%s172 + $0x6c] sm:$0xf] %v1487
      %s1544 = smul.u32 28, %s14
      %p1545 = scmp.lt.s32.totalorder %s1544, 55
      %s1546 = scalar_select %p1545, %s1544, 55
      %s1547 = smul.addr %s1546, 4
      %s1548 = scalar_lea.vmem %s3, %s1547
      // Predicated region
      $region33: #{forward.3} parent=31 // pred_check
        %p1549 = pneg %p100
      $region34: #{forward.3} parent=31 // pred_check_branch
        %1551 = sbr.rel (%p1549) target = $region36
      $region35: #{forward.3} parent=31 // pred_region
        %s1552 = smul.u32 28, %s14
      $region36: #{forward.3} parent=31 // pred_fallthru
        _
    $region32: #{forward.3} parent=5 // pred_fallthru
      _
    %p1553 = scmp.le.s32.totalorder 2, %s9
    // Predicated region
    $region37: #{forward.3} parent=5 // pred_check
      %p1554 = pneg %p1553
    $region38: #{forward.3} parent=5 // pred_check_branch
      %1556 = sbr.rel (%p1554) target = $region40
    $region39: #{forward.3} parent=5 // pred_region
      %s1557 = ssub.s32 %s9, 2
      // Predicated region
      $region41: #{forward.3} parent=39 // pred_check
        %p1558 = pneg %p106
      $region42: #{forward.3} parent=39 // pred_check_branch
        %1560 = sbr.rel (%p1558) target = $region44
      $region43: #{forward.3} parent=39 // pred_region
        %s1561 = smul.u32 28, %s15
        %p1562 = scmp.lt.s32.totalorder %s1561, 55
        %s1563 = scalar_select %p1562, %s1561, 55
        %s1564 = smul.addr %s1563, 4
        %s1565 = scalar_lea.vmem %s3, %s1564
      $region44: #{forward.3} parent=39 // pred_fallthru
        _
    $region40: #{forward.3} parent=5 // pred_fallthru
      _
  $region6: #{forward.3} parent=0 // loop_footer
    %s13 = sadd.s32 1, %s9
  $region7: #{forward.3} parent=0 // loop_footer_branch
    %8 = sbr.rel target = $region3
  $region8: #{forward.3} parent=0 // loop_exit
    _

// kernel: forward.4
$region0: #{forward.4}
  #allocation0 [shape = 'u32[]', space=smem, size = 0x4, offset = 0x4, fixed_abs, tag = 'smem constant byte address 0x4 - core index']
  #allocation1 [shape = 'u32[144,128]{1,0:T(1,128)}', space=vmem, size = 0x12000, scoped, tag = 'internal scratch']
  %s0 = inlined_call_operand.vmem [shape: bf16[256,800], index: 0, kind: input, shape index: {}]
  %s1 = inlined_call_operand.vmem [shape: bf16[800,128], index: 1, kind: input, shape index: {}]
  %s2 = inlined_call_operand.vmem [shape: f32[1,128], index: 2, kind: input, shape index: {}]
  %s3 = inlined_call_operand.vmem [shape: bf16[64,128], index: 3, kind: output, shape index: {}]
  %s4 = sld [smem:[#allocation0]]
  $region45: #{forward.4} parent=0
    _
  %s6 = ssub.s32 1, %s4
  %s7 = scalar_select 0, %s6, %s4
  loop: start=0, step=1, limit=4
  $region2: #{forward.4} parent=0 // loop_pre_header
    _
  $region3: #{forward.4} parent=0 // loop_header
    %s9 = sphi 0, %s13
    %p10 = scmp.ge.s32.totalorder %s9, 4
    %s19 = sphi 0, %s21
    %s22 = sphi 0, %s19
    %s23 = sphi 0, %s22
    %s39 = sphi 0, %s23
    %s43 = sphi 0, %s43
    %s45 = sphi 0, %s43
    %s46 = sphi 0, %s45
    %s60 = sphi 0, %s46
    %s64 = sphi 0, %s64
    %s66 = sphi 0, %s64
    %s67 = sphi 0, %s66
    %s81 = sphi 0, %s67
    %s87 = sphi 0, %s89
    %s90 = sphi 0, %s87
    %s91 = sphi 0, %s90
    %s107 = sphi 0, %s91
  $region4: #{forward.4} parent=0 // loop_header_branch
    %12 = sbr.rel (%p10) target = $region8
  $region5: #{forward.4} parent=0 // loop_body
    %s14 = ssub.s32 %s9, 1
    %s15 = ssub.s32 %s9, 2
    %s16 = sadd.s32 %s9, 1
    %s17 = ssub.s32 %s9, %s16
    %p18 = scmp.eq.s32.totalorder %s17, 0
    %s20 = sadd.s32 %s19, 1
    %s21 = scalar_select %p18, %s19, %s20
    %p24 = pneg %p18
    %p25 = scmp.eq.s32.totalorder %s9, 1
    %p26 = por %p24, %p25
    %p27 = scmp.ne.s32.totalorder %s19, %s22
    %p28 = scmp.eq.s32.totalorder %s9, 0
    %p29 = por %p27, %p28
    %p30 = scmp.ne.s32.totalorder %s19, %s22
    %p31 = scmp.eq.s32.totalorder %s14, 1
    %p32 = por %p30, %p31
    %p33 = scmp.ne.s32.totalorder %s22, %s23
    %p34 = scmp.eq.s32.totalorder %s14, 0
    %p35 = por %p33, %p34
    %p36 = scmp.ne.s32.totalorder %s22, %s23
    %p37 = scmp.eq.s32.totalorder %s15, 1
    %p38 = por %p36, %p37
    %p40 = scmp.ne.s32.totalorder %s23, %s39
    %p41 = scmp.eq.s32.totalorder %s15, 0
    %p42 = por %p40, %p41
    %s44 = sadd.s32 %s43, 1
    %p47 = scmp.eq.s32.totalorder %s9, 1
    %p48 = scmp.ne.s32.totalorder %s43, %s45
    %p49 = scmp.eq.s32.totalorder %s9, 0
    %p50 = por %p48, %p49
    %p51 = scmp.ne.s32.totalorder %s43, %s45
    %p52 = scmp.eq.s32.totalorder %s14, 1
    %p53 = por %p51, %p52
    %p54 = scmp.ne.s32.totalorder %s45, %s46
    %p55 = scmp.eq.s32.totalorder %s14, 0
    %p56 = por %p54, %p55
    %p57 = scmp.ne.s32.totalorder %s45, %s46
    %p58 = scmp.eq.s32.totalorder %s15, 1
    %p59 = por %p57, %p58
    %p61 = scmp.ne.s32.totalorder %s46, %s60
    %p62 = scmp.eq.s32.totalorder %s15, 0
    %p63 = por %p61, %p62
    %s65 = sadd.s32 %s64, 1
    %p68 = scmp.eq.s32.totalorder %s9, 1
    %p69 = scmp.ne.s32.totalorder %s64, %s66
    %p70 = scmp.eq.s32.totalorder %s9, 0
    %p71 = por %p69, %p70
    %p72 = scmp.ne.s32.totalorder %s64, %s66
    %p73 = scmp.eq.s32.totalorder %s14, 1
    %p74 = por %p72, %p73
    %p75 = scmp.ne.s32.totalorder %s66, %s67
    %p76 = scmp.eq.s32.totalorder %s14, 0
    %p77 = por %p75, %p76
    %p78 = scmp.ne.s32.totalorder %s66, %s67
    %p79 = scmp.eq.s32.totalorder %s15, 1
    %p80 = por %p78, %p79
    %p82 = scmp.ne.s32.totalorder %s67, %s81
    %p83 = scmp.eq.s32.totalorder %s15, 0
    %p84 = por %p82, %p83
    %s85 = ssub.s32 %s9, %s16
    %p86 = scmp.eq.s32.totalorder %s85, 0
    %s88 = sadd.s32 %s87, 1
    %s89 = scalar_select %p86, %s87, %s88
    %p92 = pneg %p86
    %p93 = scmp.eq.s32.totalorder %s9, 1
    %p94 = por %p92, %p93
    %p95 = scmp.ne.s32.totalorder %s87, %s90
    %p96 = scmp.eq.s32.totalorder %s9, 0
    %p97 = por %p95, %p96
    %p98 = scmp.ne.s32.totalorder %s87, %s90
    %p99 = scmp.eq.s32.totalorder %s14, 1
    %p100 = por %p98, %p99
    %p101 = scmp.ne.s32.totalorder %s90, %s91
    %p102 = scmp.eq.s32.totalorder %s14, 0
    %p103 = por %p101, %p102
    %p104 = scmp.ne.s32.totalorder %s90, %s91
    %p105 = scmp.eq.s32.totalorder %s15, 1
    %p106 = por %p104, %p105
    %p108 = scmp.ne.s32.totalorder %s91, %s107
    %p109 = scmp.eq.s32.totalorder %s15, 0
    %p110 = por %p108, %p109
    %p111 = scmp.le.s32.totalorder 1, %s9
    %p112 = scmp.lt.s32.totalorder %s9, 3
    %p113 = pnand %p111, %p112
    %p114 = pneg %p113
    // Predicated region
    $region9: #{forward.4} parent=5 // pred_check
      _
    $region10: #{forward.4} parent=5 // pred_check_branch
      %116 = sbr.rel (%p113) target = $region12
    $region11: #{forward.4} parent=5 // pred_region
      %s117 = ssub.s32 %s9, 1
      // Predicated region
      $region13: #{forward.4} parent=11 // pred_check
        %p118 = pneg %p56
      $region14: #{forward.4} parent=11 // pred_check_branch
        %120 = sbr.rel (%p118) target = $region16
      $region15: #{forward.4} parent=11 // pred_region
        _
      $region16: #{forward.4} parent=11 // pred_fallthru
        _
      // Predicated region
      $region17: #{forward.4} parent=11 // pred_check
        %p121 = pneg %p77
      $region18: #{forward.4} parent=11 // pred_check_branch
        %123 = sbr.rel (%p121) target = $region20
      $region19: #{forward.4} parent=11 // pred_region
        _
      $region20: #{forward.4} parent=11 // pred_fallthru
        _
    $region12: #{forward.4} parent=5 // pred_fallthru
      _
    %p124 = scmp.lt.s32.totalorder %s9, 2
    // Predicated region
    $region21: #{forward.4} parent=5 // pred_check
      %p125 = pneg %p124
    $region22: #{forward.4} parent=5 // pred_check_branch
      %127 = sbr.rel (%p125) target = $region24
    $region23: #{forward.4} parent=5 // pred_region
      // Predicated region
      $region25: #{forward.4} parent=23 // pred_check
        %p128 = pneg %p29
      $region26: #{forward.4} parent=23 // pred_check_branch
        %130 = sbr.rel (%p128) target = $region28
      $region27: #{forward.4} parent=23 // pred_region
        %s131 = smul.u32 16, %s9
        %p132 = scmp.lt.s32.totalorder %s131, 31
        %s133 = scalar_select %p132, %s131, 31
        %s134 = smul.addr %s133, 7
        %s135 = smul.addr %s134, 4
        %s136 = scalar_lea.vmem %s0, %s135
        %s137 = smul.u32 16, %s9
      $region28: #{forward.4} parent=23 // pred_fallthru
        _
    $region24: #{forward.4} parent=5 // pred_fallthru
      _
    %p138 = scmp.le.s32.totalorder 1, %s9
    %p139 = scmp.lt.s32.totalorder %s9, 3
    %p140 = pnand %p138, %p139
    %p141 = pneg %p140
    // Predicated region
    $region29: #{forward.4} parent=5 // pred_check
      _
    $region30: #{forward.4} parent=5 // pred_check_branch
      %143 = sbr.rel (%p140) target = $region32
    $region31: #{forward.4} parent=5 // pred_region
      %s144 = ssub.s32 %s9, 1
      %s145 = smul.u32 16, %s14
      %p146 = scmp.lt.s32.totalorder %s145, 31
      %s147 = scalar_select %p146, %s145, 31
      %s148 = smul.addr %s147, 7
      %s149 = smul.addr %s148, 4
      %s150 = scalar_lea.vmem %s0, %s149
      %p151 = pneg %p35
      %p152 = pneg %p32
      %p153 = pneg %p56
      %p154 = pneg %p53
      %p155 = pneg %p77
      %p156 = pneg %p74
      %p157 = pneg %p103
      %p158 = pneg %p100
      %s159 = smul.u32 4, %s14
      %p160 = scmp.lt.s32.totalorder %s159, 7
      %s161 = scalar_select %p160, %s159, 7
      %s162 = smul.addr %s161, 4
      %s163 = scalar_lea.vmem %s3, %s162
      %s164 = smul.u32 16, %s14
      %p165 = scmp.lt.s32.totalorder %s164, 31
      %s166 = scalar_select %p165, %s164, 31
      %s167 = smul.addr %s166, 7
      %s168 = smul.addr %s167, 4
      %s169 = scalar_lea.vmem %s0, %s168
      %s170 = smul.u32 16, %s14
      %s171 = smul.u32 4, %s14
      %p172 = scmp.lt.s32.totalorder %s171, 7
      %s173 = scalar_select %p172, %s171, 7
      %s174 = smul.addr %s173, 4
      %s175 = scalar_lea.vmem %s3, %s174
      %s176 = smul.u32 4, %s14
      %v178 = vld [vmem:[%s169] sm:$0xff]
      %v179 = vld [vmem:[%s169 + $0x8] sm:$0xff]
      %v180 = vld [vmem:[%s169 + $0x10] sm:$0xff]
      %v181 = vld [vmem:[%s169 + $0x18] sm:$0xf]
      %v182 = vld [vmem:[%s169 + $0x1c] sm:$0xff]
      %v183 = vld [vmem:[%s169 + $0x24] sm:$0xff]
      %v184 = vld [vmem:[%s169 + $0x2c] sm:$0xff]
      %v185 = vld [vmem:[%s169 + $0x34] sm:$0xf]
      %v186 = vld [vmem:[%s169 + $0x38] sm:$0xff]
      %v187 = vld [vmem:[%s169 + $0x40] sm:$0xff]
      %v188 = vld [vmem:[%s169 + $0x48] sm:$0xff]
      %v189 = vld [vmem:[%s169 + $0x50] sm:$0xf]
      %v190 = vld [vmem:[%s169 + $0x54] sm:$0xff]
      %v191 = vld [vmem:[%s169 + $0x5c] sm:$0xff]
      %v192 = vld [vmem:[%s169 + $0x64] sm:$0xff]
      %v193 = vld [vmem:[%s169 + $0x6c] sm:$0xf]
      %v194 = vld [vmem:[%s169 + $0x70] sm:$0xff]
      %v195 = vld [vmem:[%s169 + $0x78] sm:$0xff]
      %v196 = vld [vmem:[%s169 + $0x80] sm:$0xff]
      %v197 = vld [vmem:[%s169 + $0x88] sm:$0xf]
      %v198 = vld [vmem:[%s169 + $0x8c] sm:$0xff]
      %v199 = vld [vmem:[%s169 + $0x94] sm:$0xff]
      %v200 = vld [vmem:[%s169 + $0x9c] sm:$0xff]
      %v201 = vld [vmem:[%s169 + $0xa4] sm:$0xf]
      %v202 = vld [vmem:[%s169 + $0xa8] sm:$0xff]
      %v203 = vld [vmem:[%s169 + $0xb0] sm:$0xff]
      %v204 = vld [vmem:[%s169 + $0xb8] sm:$0xff]
      %v205 = vld [vmem:[%s169 + $0xc0] sm:$0xf]
      %v206 = vld [vmem:[%s169 + $0xc4] sm:$0xff]
      %v207 = vld [vmem:[%s169 + $0xcc] sm:$0xff]
      %v208 = vld [vmem:[%s169 + $0xd4] sm:$0xff]
      %v209 = vld [vmem:[%s169 + $0xdc] sm:$0xf]
      %v210 = vld [vmem:[%s169 + $0xe0] sm:$0xff]
      %v211 = vld [vmem:[%s169 + $0xe8] sm:$0xff]
      %v212 = vld [vmem:[%s169 + $0xf0] sm:$0xff]
      %v213 = vld [vmem:[%s169 + $0xf8] sm:$0xf]
      %v214 = vld [vmem:[%s169 + $0xfc] sm:$0xff]
      %v215 = vld [vmem:[%s169 + $0x104] sm:$0xff]
      %v216 = vld [vmem:[%s169 + $0x10c] sm:$0xff]
      %v217 = vld [vmem:[%s169 + $0x114] sm:$0xf]
      %v218 = vld [vmem:[%s169 + $0x118] sm:$0xff]
      %v219 = vld [vmem:[%s169 + $0x120] sm:$0xff]
      %v220 = vld [vmem:[%s169 + $0x128] sm:$0xff]
      %v221 = vld [vmem:[%s169 + $0x130] sm:$0xf]
      %v222 = vld [vmem:[%s169 + $0x134] sm:$0xff]
      %v223 = vld [vmem:[%s169 + $0x13c] sm:$0xff]
      %v224 = vld [vmem:[%s169 + $0x144] sm:$0xff]
      %v225 = vld [vmem:[%s169 + $0x14c] sm:$0xf]
      %v226 = vld [vmem:[%s169 + $0x150] sm:$0xff]
      %v227 = vld [vmem:[%s169 + $0x158] sm:$0xff]
      %v228 = vld [vmem:[%s169 + $0x160] sm:$0xff]
      %v229 = vld [vmem:[%s169 + $0x168] sm:$0xf]
      %v230 = vld [vmem:[%s169 + $0x16c] sm:$0xff]
      %v231 = vld [vmem:[%s169 + $0x174] sm:$0xff]
      %v232 = vld [vmem:[%s169 + $0x17c] sm:$0xff]
      %v233 = vld [vmem:[%s169 + $0x184] sm:$0xf]
      %v234 = vld [vmem:[%s169 + $0x188] sm:$0xff]
      %v235 = vld [vmem:[%s169 + $0x190] sm:$0xff]
      %v236 = vld [vmem:[%s169 + $0x198] sm:$0xff]
      %v237 = vld [vmem:[%s169 + $0x1a0] sm:$0xf]
      %v238 = vld [vmem:[%s169 + $0x1a4] sm:$0xff]
      %v239 = vld [vmem:[%s169 + $0x1ac] sm:$0xff]
      %v240 = vld [vmem:[%s169 + $0x1b4] sm:$0xff]
      %v241 = vld [vmem:[%s169 + $0x1bc] sm:$0xf]
      %v242 = vld [vmem:[%s1] sm:$0xf]
      %v243 = vld [vmem:[%s1 + $0x4] sm:$0xf]
      %v244 = vld [vmem:[%s1 + $0x8] sm:$0xf]
      %v245 = vld [vmem:[%s1 + $0xc] sm:$0xf]
      %v246 = vld [vmem:[%s1 + $0x10] sm:$0xf]
      %v247 = vld [vmem:[%s1 + $0x14] sm:$0xf]
      %v248 = vld [vmem:[%s1 + $0x18] sm:$0xf]
      %v249 = vld [vmem:[%s1 + $0x1c] sm:$0xf]
      %v250 = vld [vmem:[%s1 + $0x20] sm:$0xf]
      %v251 = vld [vmem:[%s1 + $0x24] sm:$0xf]
      %v252 = vld [vmem:[%s1 + $0x28] sm:$0xf]
      %v253 = vld [vmem:[%s1 + $0x2c] sm:$0xf]
      %v254 = vld [vmem:[%s1 + $0x30] sm:$0xf]
      %v255 = vld [vmem:[%s1 + $0x34] sm:$0xf]
      %v256 = vld [vmem:[%s1 + $0x38] sm:$0xf]
      %v257 = vld [vmem:[%s1 + $0x3c] sm:$0xf]
      %v258 = vld [vmem:[%s1 + $0x40] sm:$0xf]
      %v259 = vld [vmem:[%s1 + $0x44] sm:$0xf]
      %v260 = vld [vmem:[%s1 + $0x48] sm:$0xf]
      %v261 = vld [vmem:[%s1 + $0x4c] sm:$0xf]
      %v262 = vld [vmem:[%s1 + $0x50] sm:$0xf]
      %v263 = vld [vmem:[%s1 + $0x54] sm:$0xf]
      %v264 = vld [vmem:[%s1 + $0x58] sm:$0xf]
      %v265 = vld [vmem:[%s1 + $0x5c] sm:$0xf]
      %v266 = vld [vmem:[%s1 + $0x60] sm:$0xf]
      %v267 = vld [vmem:[%s1 + $0x64] sm:$0xf]
      %v268 = vld [vmem:[%s1 + $0x68] sm:$0xf]
      %v269 = vld [vmem:[%s1 + $0x6c] sm:$0xf]
      %v270 = vld [vmem:[%s1 + $0x70] sm:$0xf]
      %v271 = vld [vmem:[%s1 + $0x74] sm:$0xf]
      %v272 = vld [vmem:[%s1 + $0x78] sm:$0xf]
      %v273 = vld [vmem:[%s1 + $0x7c] sm:$0xf]
      %v274 = vld [vmem:[%s1 + $0x80] sm:$0xf]
      %v275 = vld [vmem:[%s1 + $0x84] sm:$0xf]
      %v276 = vld [vmem:[%s1 + $0x88] sm:$0xf]
      %v277 = vld [vmem:[%s1 + $0x8c] sm:$0xf]
      %v278 = vld [vmem:[%s1 + $0x90] sm:$0xf]
      %v279 = vld [vmem:[%s1 + $0x94] sm:$0xf]
      %v280 = vld [vmem:[%s1 + $0x98] sm:$0xf]
      %v281 = vld [vmem:[%s1 + $0x9c] sm:$0xf]
      %v282 = vld [vmem:[%s1 + $0xa0] sm:$0xf]
      %v283 = vld [vmem:[%s1 + $0xa4] sm:$0xf]
      %v284 = vld [vmem:[%s1 + $0xa8] sm:$0xf]
      %v285 = vld [vmem:[%s1 + $0xac] sm:$0xf]
      %v286 = vld [vmem:[%s1 + $0xb0] sm:$0xf]
      %v287 = vld [vmem:[%s1 + $0xb4] sm:$0xf]
      %v288 = vld [vmem:[%s1 + $0xb8] sm:$0xf]
      %v289 = vld [vmem:[%s1 + $0xbc] sm:$0xf]
      %v290 = vld [vmem:[%s1 + $0xc0] sm:$0xf]
      %v291 = vld [vmem:[%s1 + $0xc4] sm:$0xf]
      %v292 = vld [vmem:[%s1 + $0xc8] sm:$0xf]
      %v293 = vld [vmem:[%s1 + $0xcc] sm:$0xf]
      %v294 = vld [vmem:[%s1 + $0xd0] sm:$0xf]
      %v295 = vld [vmem:[%s1 + $0xd4] sm:$0xf]
      %v296 = vld [vmem:[%s1 + $0xd8] sm:$0xf]
      %v297 = vld [vmem:[%s1 + $0xdc] sm:$0xf]
      %v298 = vld [vmem:[%s1 + $0xe0] sm:$0xf]
      %v299 = vld [vmem:[%s1 + $0xe4] sm:$0xf]
      %v300 = vld [vmem:[%s1 + $0xe8] sm:$0xf]
      %v301 = vld [vmem:[%s1 + $0xec] sm:$0xf]
      %v302 = vld [vmem:[%s1 + $0xf0] sm:$0xf]
      %v303 = vld [vmem:[%s1 + $0xf4] sm:$0xf]
      %v304 = vld [vmem:[%s1 + $0xf8] sm:$0xf]
      %v305 = vld [vmem:[%s1 + $0xfc] sm:$0xf]
      %v306 = vld [vmem:[%s1 + $0x100] sm:$0xf]
      %v307 = vld [vmem:[%s1 + $0x104] sm:$0xf]
      %v308 = vld [vmem:[%s1 + $0x108] sm:$0xf]
      %v309 = vld [vmem:[%s1 + $0x10c] sm:$0xf]
      %v310 = vld [vmem:[%s1 + $0x110] sm:$0xf]
      %v311 = vld [vmem:[%s1 + $0x114] sm:$0xf]
      %v312 = vld [vmem:[%s1 + $0x118] sm:$0xf]
      %v313 = vld [vmem:[%s1 + $0x11c] sm:$0xf]
      %v314 = vld [vmem:[%s1 + $0x120] sm:$0xf]
      %v315 = vld [vmem:[%s1 + $0x124] sm:$0xf]
      %v316 = vld [vmem:[%s1 + $0x128] sm:$0xf]
      %v317 = vld [vmem:[%s1 + $0x12c] sm:$0xf]
      %v318 = vld [vmem:[%s1 + $0x130] sm:$0xf]
      %v319 = vld [vmem:[%s1 + $0x134] sm:$0xf]
      %v320 = vld [vmem:[%s1 + $0x138] sm:$0xf]
      %v321 = vld [vmem:[%s1 + $0x13c] sm:$0xf]
      %v322 = vld [vmem:[%s1 + $0x140] sm:$0xf]
      %v323 = vld [vmem:[%s1 + $0x144] sm:$0xf]
      %v324 = vld [vmem:[%s1 + $0x148] sm:$0xf]
      %v325 = vld [vmem:[%s1 + $0x14c] sm:$0xf]
      %v326 = vld [vmem:[%s1 + $0x150] sm:$0xf]
      %v327 = vld [vmem:[%s1 + $0x154] sm:$0xf]
      %v328 = vld [vmem:[%s1 + $0x158] sm:$0xf]
      %v329 = vld [vmem:[%s1 + $0x15c] sm:$0xf]
      %v330 = vld [vmem:[%s1 + $0x160] sm:$0xf]
      %v331 = vld [vmem:[%s1 + $0x164] sm:$0xf]
      %v332 = vld [vmem:[%s1 + $0x168] sm:$0xf]
      %v333 = vld [vmem:[%s1 + $0x16c] sm:$0xf]
      %v334 = vld [vmem:[%s1 + $0x170] sm:$0xf]
      %v335 = vld [vmem:[%s1 + $0x174] sm:$0xf]
      %v336 = vld [vmem:[%s1 + $0x178] sm:$0xf]
      %v337 = vld [vmem:[%s1 + $0x17c] sm:$0xf]
      %v338 = vld [vmem:[%s1 + $0x180] sm:$0xf]
      %v339 = vld [vmem:[%s1 + $0x184] sm:$0xf]
      %v340 = vld [vmem:[%s1 + $0x188] sm:$0xf]
      %v341 = vld [vmem:[%s1 + $0x18c] sm:$0xf]
      %v406 = vunpack.c.l.b16 %v178
      %v407 = vunpack.c.h.b16 %v178
      %v408 = vunpack.c.l.b16 %v179
      %v409 = vunpack.c.h.b16 %v179
      %v410 = vunpack.c.l.b16 %v180
      %v411 = vunpack.c.h.b16 %v180
      %v412 = vunpack.c.l.b16 %v181
      %v413 = vunpack.c.l.b16 %v182
      %v414 = vunpack.c.h.b16 %v182
      %v415 = vunpack.c.l.b16 %v183
      %v416 = vunpack.c.h.b16 %v183
      %v417 = vunpack.c.l.b16 %v184
      %v418 = vunpack.c.h.b16 %v184
      %v419 = vunpack.c.l.b16 %v185
      %v420 = vunpack.c.l.b16 %v186
      %v421 = vunpack.c.h.b16 %v186
      %v422 = vunpack.c.l.b16 %v187
      %v423 = vunpack.c.h.b16 %v187
      %v424 = vunpack.c.l.b16 %v188
      %v425 = vunpack.c.h.b16 %v188
      %v426 = vunpack.c.l.b16 %v189
      %v427 = vunpack.c.l.b16 %v190
      %v428 = vunpack.c.h.b16 %v190
      %v429 = vunpack.c.l.b16 %v191
      %v430 = vunpack.c.h.b16 %v191
      %v431 = vunpack.c.l.b16 %v192
      %v432 = vunpack.c.h.b16 %v192
      %v433 = vunpack.c.l.b16 %v193
      %v434 = vunpack.c.l.b16 %v194
      %v435 = vunpack.c.h.b16 %v194
      %v436 = vunpack.c.l.b16 %v195
      %v437 = vunpack.c.h.b16 %v195
      %v438 = vunpack.c.l.b16 %v196
      %v439 = vunpack.c.h.b16 %v196
      %v440 = vunpack.c.l.b16 %v197
      %v441 = vunpack.c.l.b16 %v198
      %v442 = vunpack.c.h.b16 %v198
      %v443 = vunpack.c.l.b16 %v199
      %v444 = vunpack.c.h.b16 %v199
      %v445 = vunpack.c.l.b16 %v200
      %v446 = vunpack.c.h.b16 %v200
      %v447 = vunpack.c.l.b16 %v201
      %v448 = vunpack.c.l.b16 %v202
      %v449 = vunpack.c.h.b16 %v202
      %v450 = vunpack.c.l.b16 %v203
      %v451 = vunpack.c.h.b16 %v203
      %v452 = vunpack.c.l.b16 %v204
      %v453 = vunpack.c.h.b16 %v204
      %v454 = vunpack.c.l.b16 %v205
      %v455 = vunpack.c.l.b16 %v206
      %v456 = vunpack.c.h.b16 %v206
      %v457 = vunpack.c.l.b16 %v207
      %v458 = vunpack.c.h.b16 %v207
      %v459 = vunpack.c.l.b16 %v208
      %v460 = vunpack.c.h.b16 %v208
      %v461 = vunpack.c.l.b16 %v209
      %v462 = vunpack.c.l.b16 %v210
      %v463 = vunpack.c.h.b16 %v210
      %v464 = vunpack.c.l.b16 %v211
      %v465 = vunpack.c.h.b16 %v211
      %v466 = vunpack.c.l.b16 %v212
      %v467 = vunpack.c.h.b16 %v212
      %v468 = vunpack.c.l.b16 %v213
      %v469 = vunpack.c.l.b16 %v214
      %v470 = vunpack.c.h.b16 %v214
      %v471 = vunpack.c.l.b16 %v215
      %v472 = vunpack.c.h.b16 %v215
      %v473 = vunpack.c.l.b16 %v216
      %v474 = vunpack.c.h.b16 %v216
      %v475 = vunpack.c.l.b16 %v217
      %v476 = vunpack.c.l.b16 %v218
      %v477 = vunpack.c.h.b16 %v218
      %v478 = vunpack.c.l.b16 %v219
      %v479 = vunpack.c.h.b16 %v219
      %v480 = vunpack.c.l.b16 %v220
      %v481 = vunpack.c.h.b16 %v220
      %v482 = vunpack.c.l.b16 %v221
      %v483 = vunpack.c.l.b16 %v222
      %v484 = vunpack.c.h.b16 %v222
      %v485 = vunpack.c.l.b16 %v223
      %v486 = vunpack.c.h.b16 %v223
      %v487 = vunpack.c.l.b16 %v224
      %v488 = vunpack.c.h.b16 %v224
      %v489 = vunpack.c.l.b16 %v225
      %v490 = vunpack.c.l.b16 %v226
      %v491 = vunpack.c.h.b16 %v226
      %v492 = vunpack.c.l.b16 %v227
      %v493 = vunpack.c.h.b16 %v227
      %v494 = vunpack.c.l.b16 %v228
      %v495 = vunpack.c.h.b16 %v228
      %v496 = vunpack.c.l.b16 %v229
      %v497 = vunpack.c.l.b16 %v230
      %v498 = vunpack.c.h.b16 %v230
      %v499 = vunpack.c.l.b16 %v231
      %v500 = vunpack.c.h.b16 %v231
      %v501 = vunpack.c.l.b16 %v232
      %v502 = vunpack.c.h.b16 %v232
      %v503 = vunpack.c.l.b16 %v233
      %v504 = vunpack.c.l.b16 %v234
      %v505 = vunpack.c.h.b16 %v234
      %v506 = vunpack.c.l.b16 %v235
      %v507 = vunpack.c.h.b16 %v235
      %v508 = vunpack.c.l.b16 %v236
      %v509 = vunpack.c.h.b16 %v236
      %v510 = vunpack.c.l.b16 %v237
      %v511 = vunpack.c.l.b16 %v238
      %v512 = vunpack.c.h.b16 %v238
      %v513 = vunpack.c.l.b16 %v239
      %v514 = vunpack.c.h.b16 %v239
      %v515 = vunpack.c.l.b16 %v240
      %v516 = vunpack.c.h.b16 %v240
      %v517 = vunpack.c.l.b16 %v241
      %v518 = vpack.c.b16 %v413, %v406
      %v519 = vpack.c.b16 %v414, %v407
      %v520 = vpack.c.b16 %v415, %v408
      %v521 = vpack.c.b16 %v416, %v409
      %v522 = vpack.c.b16 %v417, %v410
      %v523 = vpack.c.b16 %v418, %v411
      %v524 = vpack.c.b16 %v419, %v412
      %v525 = vpack.c.b16 %v427, %v420
      %v526 = vpack.c.b16 %v428, %v421
      %v527 = vpack.c.b16 %v429, %v422
      %v528 = vpack.c.b16 %v430, %v423
      %v529 = vpack.c.b16 %v431, %v424
      %v530 = vpack.c.b16 %v432, %v425
      %v531 = vpack.c.b16 %v433, %v426
      %v532 = vpack.c.b16 %v441, %v434
      %v533 = vpack.c.b16 %v442, %v435
      %v534 = vpack.c.b16 %v443, %v436
      %v535 = vpack.c.b16 %v444, %v437
      %v536 = vpack.c.b16 %v445, %v438
      %v537 = vpack.c.b16 %v446, %v439
      %v538 = vpack.c.b16 %v447, %v440
      %v539 = vpack.c.b16 %v455, %v448
      %v540 = vpack.c.b16 %v456, %v449
      %v541 = vpack.c.b16 %v457, %v450
      %v542 = vpack.c.b16 %v458, %v451
      %v543 = vpack.c.b16 %v459, %v452
      %v544 = vpack.c.b16 %v460, %v453
      %v545 = vpack.c.b16 %v461, %v454
      %v546 = vpack.c.b16 %v469, %v462
      %v547 = vpack.c.b16 %v470, %v463
      %v548 = vpack.c.b16 %v471, %v464
      %v549 = vpack.c.b16 %v472, %v465
      %v550 = vpack.c.b16 %v473, %v466
      %v551 = vpack.c.b16 %v474, %v467
      %v552 = vpack.c.b16 %v475, %v468
      %v553 = vpack.c.b16 %v483, %v476
      %v554 = vpack.c.b16 %v484, %v477
      %v555 = vpack.c.b16 %v485, %v478
      %v556 = vpack.c.b16 %v486, %v479
      %v557 = vpack.c.b16 %v487, %v480
      %v558 = vpack.c.b16 %v488, %v481
      %v559 = vpack.c.b16 %v489, %v482
      %v560 = vpack.c.b16 %v497, %v490
      %v561 = vpack.c.b16 %v498, %v491
      %v562 = vpack.c.b16 %v499, %v492
      %v563 = vpack.c.b16 %v500, %v493
      %v564 = vpack.c.b16 %v501, %v494
      %v565 = vpack.c.b16 %v502, %v495
      %v566 = vpack.c.b16 %v503, %v496
      %v567 = vpack.c.b16 %v511, %v504
      %v568 = vpack.c.b16 %v512, %v505
      %v569 = vpack.c.b16 %v513, %v506
      %v570 = vpack.c.b16 %v514, %v507
      %v571 = vpack.c.b16 %v515, %v508
      %v572 = vpack.c.b16 %v516, %v509
      %v573 = vpack.c.b16 %v517, %v510
      %v722 = vunpack.c.l.b16 %v242
      %v723 = vunpack.c.l.b16 %v243
      %v724 = vunpack.c.l.b16 %v244
      %v725 = vunpack.c.l.b16 %v245
      %v726 = vunpack.c.l.b16 %v246
      %v727 = vunpack.c.l.b16 %v247
      %v728 = vunpack.c.l.b16 %v248
      %v729 = vunpack.c.l.b16 %v249
      %v730 = vunpack.c.l.b16 %v250
      %v731 = vunpack.c.l.b16 %v251
      %v732 = vunpack.c.l.b16 %v252
      %v733 = vunpack.c.l.b16 %v253
      %v734 = vunpack.c.l.b16 %v254
      %v735 = vunpack.c.l.b16 %v255
      %v736 = vunpack.c.l.b16 %v256
      %v737 = vunpack.c.l.b16 %v257
      %v738 = vunpack.c.l.b16 %v258
      %v739 = vunpack.c.l.b16 %v259
      %v740 = vunpack.c.l.b16 %v260
      %v741 = vunpack.c.l.b16 %v261
      %v742 = vunpack.c.l.b16 %v262
      %v743 = vunpack.c.l.b16 %v263
      %v744 = vunpack.c.l.b16 %v264
      %v745 = vunpack.c.l.b16 %v265
      %v746 = vunpack.c.l.b16 %v266
      %v747 = vunpack.c.l.b16 %v267
      %v748 = vunpack.c.l.b16 %v268
      %v749 = vunpack.c.l.b16 %v269
      %v750 = vunpack.c.l.b16 %v270
      %v751 = vunpack.c.l.b16 %v271
      %v752 = vunpack.c.l.b16 %v272
      %v753 = vunpack.c.l.b16 %v273
      %v754 = vunpack.c.l.b16 %v274
      %v755 = vunpack.c.l.b16 %v275
      %v756 = vunpack.c.l.b16 %v276
      %v757 = vunpack.c.l.b16 %v277
      %v758 = vunpack.c.l.b16 %v278
      %v759 = vunpack.c.l.b16 %v279
      %v760 = vunpack.c.l.b16 %v280
      %v761 = vunpack.c.l.b16 %v281
      %v762 = vunpack.c.l.b16 %v282
      %v763 = vunpack.c.l.b16 %v283
      %v764 = vunpack.c.l.b16 %v284
      %v765 = vunpack.c.l.b16 %v285
      %v766 = vunpack.c.l.b16 %v286
      %v767 = vunpack.c.l.b16 %v287
      %v768 = vunpack.c.l.b16 %v288
      %v769 = vunpack.c.l.b16 %v289
      %v770 = vunpack.c.l.b16 %v290
      %v771 = vunpack.c.l.b16 %v291
      %v772 = vunpack.c.l.b16 %v292
      %v773 = vunpack.c.l.b16 %v293
      %v774 = vunpack.c.l.b16 %v294
      %v775 = vunpack.c.l.b16 %v295
      %v776 = vunpack.c.l.b16 %v296
      %v777 = vunpack.c.l.b16 %v297
      %v778 = vunpack.c.l.b16 %v298
      %v779 = vunpack.c.l.b16 %v299
      %v780 = vunpack.c.l.b16 %v300
      %v781 = vunpack.c.l.b16 %v301
      %v782 = vunpack.c.l.b16 %v302
      %v783 = vunpack.c.l.b16 %v303
      %v784 = vunpack.c.l.b16 %v304
      %v785 = vunpack.c.l.b16 %v305
      %v786 = vunpack.c.l.b16 %v306
      %v787 = vunpack.c.l.b16 %v307
      %v788 = vunpack.c.l.b16 %v308
      %v789 = vunpack.c.l.b16 %v309
      %v790 = vunpack.c.l.b16 %v310
      %v791 = vunpack.c.l.b16 %v311
      %v792 = vunpack.c.l.b16 %v312
      %v793 = vunpack.c.l.b16 %v313
      %v794 = vunpack.c.l.b16 %v314
      %v795 = vunpack.c.l.b16 %v315
      %v796 = vunpack.c.l.b16 %v316
      %v797 = vunpack.c.l.b16 %v317
      %v798 = vunpack.c.l.b16 %v318
      %v799 = vunpack.c.l.b16 %v319
      %v800 = vunpack.c.l.b16 %v320
      %v801 = vunpack.c.l.b16 %v321
      %v802 = vunpack.c.l.b16 %v322
      %v803 = vunpack.c.l.b16 %v323
      %v804 = vunpack.c.l.b16 %v324
      %v805 = vunpack.c.l.b16 %v325
      %v806 = vunpack.c.l.b16 %v326
      %v807 = vunpack.c.l.b16 %v327
      %v808 = vunpack.c.l.b16 %v328
      %v809 = vunpack.c.l.b16 %v329
      %v810 = vunpack.c.l.b16 %v330
      %v811 = vunpack.c.l.b16 %v331
      %v812 = vunpack.c.l.b16 %v332
      %v813 = vunpack.c.l.b16 %v333
      %v814 = vunpack.c.l.b16 %v334
      %v815 = vunpack.c.l.b16 %v335
      %v816 = vunpack.c.l.b16 %v336
      %v817 = vunpack.c.l.b16 %v337
      %v818 = vunpack.c.l.b16 %v338
      %v819 = vunpack.c.l.b16 %v339
      %v820 = vunpack.c.l.b16 %v340
      %v821 = vunpack.c.l.b16 %v341
      %v822 = vpack.c.b16 %v723, %v722
      %v823 = vpack.c.b16 %v725, %v724
      %v824 = vpack.c.b16 %v727, %v726
      %v825 = vpack.c.b16 %v729, %v728
      %v826 = vpack.c.b16 %v731, %v730
      %v827 = vpack.c.b16 %v733, %v732
      %v828 = vpack.c.b16 %v735, %v734
      %v829 = vpack.c.b16 %v737, %v736
      %v830 = vpack.c.b16 %v739, %v738
      %v831 = vpack.c.b16 %v741, %v740
      %v832 = vpack.c.b16 %v743, %v742
      %v833 = vpack.c.b16 %v745, %v744
      %v834 = vpack.c.b16 %v747, %v746
      %v835 = vpack.c.b16 %v749, %v748
      %v836 = vpack.c.b16 %v751, %v750
      %v837 = vpack.c.b16 %v753, %v752
      %v838 = vpack.c.b16 %v755, %v754
      %v839 = vpack.c.b16 %v757, %v756
      %v840 = vpack.c.b16 %v759, %v758
      %v841 = vpack.c.b16 %v761, %v760
      %v842 = vpack.c.b16 %v763, %v762
      %v843 = vpack.c.b16 %v765, %v764
      %v844 = vpack.c.b16 %v767, %v766
      %v845 = vpack.c.b16 %v769, %v768
      %v846 = vpack.c.b16 %v771, %v770
      %v847 = vpack.c.b16 %v773, %v772
      %v848 = vpack.c.b16 %v775, %v774
      %v849 = vpack.c.b16 %v777, %v776
      %v850 = vpack.c.b16 %v779, %v778
      %v851 = vpack.c.b16 %v781, %v780
      %v852 = vpack.c.b16 %v783, %v782
      %v853 = vpack.c.b16 %v785, %v784
      %v854 = vpack.c.b16 %v787, %v786
      %v855 = vpack.c.b16 %v789, %v788
      %v856 = vpack.c.b16 %v791, %v790
      %v857 = vpack.c.b16 %v793, %v792
      %v858 = vpack.c.b16 %v795, %v794
      %v859 = vpack.c.b16 %v797, %v796
      %v860 = vpack.c.b16 %v799, %v798
      %v861 = vpack.c.b16 %v801, %v800
      %v862 = vpack.c.b16 %v803, %v802
      %v863 = vpack.c.b16 %v805, %v804
      %v864 = vpack.c.b16 %v807, %v806
      %v865 = vpack.c.b16 %v809, %v808
      %v866 = vpack.c.b16 %v811, %v810
      %v867 = vpack.c.b16 %v813, %v812
      %v868 = vpack.c.b16 %v815, %v814
      %v869 = vpack.c.b16 %v817, %v816
      %v870 = vpack.c.b16 %v819, %v818
      %v871 = vpack.c.b16 %v821, %v820
      %vm922 = vcmask 261120
      %v924 = vsel %vm922, %v524, 0
      %v927 = vsel %vm922, %v531, 0
      %v930 = vsel %vm922, %v538, 0
      %v933 = vsel %vm922, %v545, 0
      %v936 = vsel %vm922, %v552, 0
      %v939 = vsel %vm922, %v559, 0
      %v942 = vsel %vm922, %v566, 0
      %v945 = vsel %vm922, %v573, 0
      %947 = vmatprep.subr.bf16.mxu0 0
      %948 = vmatpush1.bf16.msra.mxu0 %v829
      %949 = vmatprep.subr.bf16.mxu0 0
      %950 = vmatpush1.bf16.msra.mxu0 %v828
      %951 = vmatprep.subr.bf16.mxu0 0
      %952 = vmatpush1.bf16.msra.mxu0 %v827
      %953 = vmatprep.subr.bf16.mxu0 0
      %954 = vmatpush1.bf16.msra.mxu0 %v826
      %955 = vmatprep.subr.bf16.mxu0 0
      %956 = vmatpush1.bf16.msra.mxu0 %v825
      %957 = vmatprep.subr.bf16.mxu0 0
      %958 = vmatpush1.bf16.msra.mxu0 %v824
      %959 = vmatprep.subr.bf16.mxu0 0
      %960 = vmatpush1.bf16.msra.mxu0 %v823
      %961 = vmatprep.subr.bf16.mxu0 0
      %962 = vmatpush1.bf16.msra.mxu0 %v822
      %963 = vmatprep.subr.bf16.mxu0 0
      %964 = vmatpush2.bf16.msra.mxu0 %v837
      %965 = vmatprep.subr.bf16.mxu0 0
      %966 = vmatpush2.bf16.msra.mxu0 %v836
      %967 = vmatprep.subr.bf16.mxu0 0
      %968 = vmatpush2.bf16.msra.mxu0 %v835
      %969 = vmatprep.subr.bf16.mxu0 0
      %970 = vmatpush2.bf16.msra.mxu0 %v834
      %971 = vmatprep.subr.bf16.mxu0 0
      %972 = vmatpush2.bf16.msra.mxu0 %v833
      %973 = vmatprep.subr.bf16.mxu0 0
      %974 = vmatpush2.bf16.msra.mxu0 %v832
      %975 = vmatprep.subr.bf16.mxu0 0
      %976 = vmatpush2.bf16.msra.mxu0 %v831
      %977 = vmatprep.subr.bf16.mxu0 0
      %978 = vmatpush2.bf16.msra.mxu0 %v830
      %979 = vmatprep.mubr.bf16.mxu0 %v519
      %980 = vmatmul.mubr.bf16.gmra.mxu0 %v518
      %v981 = vpop.f32.mrf.mxu0
      %v982 = vadd.f32 0.0, %v981
      %v983 = vpop.f32.mrf.mxu0
      %v984 = vpop.f32.mrf.mxu0
      %v985 = vadd.f32 0.0, %v984
      %v986 = vpop.f32.mrf.mxu0
      %987 = vmatprep.mubr.bf16.mxu0 %v526
      %988 = vmatmul.mubr.bf16.gmra.mxu0 %v525
      %v989 = vpop.f32.mrf.mxu0
      %v990 = vadd.f32 0.0, %v989
      %v991 = vpop.f32.mrf.mxu0
      %v992 = vpop.f32.mrf.mxu0
      %v993 = vadd.f32 0.0, %v992
      %v994 = vpop.f32.mrf.mxu0
      %995 = vmatprep.mubr.bf16.mxu0 %v533
      %996 = vmatmul.mubr.bf16.gmra.mxu0 %v532
      %v997 = vpop.f32.mrf.mxu0
      %v998 = vadd.f32 0.0, %v997
      %v999 = vpop.f32.mrf.mxu0
      %v1000 = vpop.f32.mrf.mxu0
      %v1001 = vadd.f32 0.0, %v1000
      %v1002 = vpop.f32.mrf.mxu0
      %1003 = vmatprep.mubr.bf16.mxu0 %v540
      %1004 = vmatmul.mubr.bf16.gmra.mxu0 %v539
      %v1005 = vpop.f32.mrf.mxu0
      %v1006 = vadd.f32 0.0, %v1005
      %v1007 = vpop.f32.mrf.mxu0
      %v1008 = vpop.f32.mrf.mxu0
      %v1009 = vadd.f32 0.0, %v1008
      %v1010 = vpop.f32.mrf.mxu0
      %1011 = vmatprep.mubr.bf16.mxu0 %v547
      %1012 = vmatmul.mubr.bf16.gmra.mxu0 %v546
      %v1013 = vpop.f32.mrf.mxu0
      %v1014 = vadd.f32 0.0, %v1013
      %v1015 = vpop.f32.mrf.mxu0
      %v1016 = vpop.f32.mrf.mxu0
      %v1017 = vadd.f32 0.0, %v1016
      %v1018 = vpop.f32.mrf.mxu0
      %1019 = vmatprep.mubr.bf16.mxu0 %v554
      %1020 = vmatmul.mubr.bf16.gmra.mxu0 %v553
      %v1021 = vpop.f32.mrf.mxu0
      %v1022 = vadd.f32 0.0, %v1021
      %v1023 = vpop.f32.mrf.mxu0
      %v1024 = vpop.f32.mrf.mxu0
      %v1025 = vadd.f32 0.0, %v1024
      %v1026 = vpop.f32.mrf.mxu0
      %1027 = vmatprep.mubr.bf16.mxu0 %v561
      %1028 = vmatmul.mubr.bf16.gmra.mxu0 %v560
      %v1029 = vpop.f32.mrf.mxu0
      %v1030 = vadd.f32 0.0, %v1029
      %v1031 = vpop.f32.mrf.mxu0
      %v1032 = vpop.f32.mrf.mxu0
      %v1033 = vadd.f32 0.0, %v1032
      %v1034 = vpop.f32.mrf.mxu0
      %1035 = vmatprep.mubr.bf16.mxu0 %v568
      %1036 = vmatmul.mubr.bf16.gmra.mxu0 %v567
      %v1037 = vpop.f32.mrf.mxu0
      %v1038 = vadd.f32 0.0, %v1037
      %v1039 = vpop.f32.mrf.mxu0
      %v1040 = vpop.f32.mrf.mxu0
      %v1041 = vadd.f32 0.0, %v1040
      %v1042 = vpop.f32.mrf.mxu0
      %1043 = vdwg.mxu0
      %1044 = vmatprep.subr.bf16.mxu0 0
      %1045 = vmatpush1.bf16.msra.mxu0 %v845
      %1046 = vmatprep.subr.bf16.mxu0 0
      %1047 = vmatpush1.bf16.msra.mxu0 %v844
      %1048 = vmatprep.subr.bf16.mxu0 0
      %1049 = vmatpush1.bf16.msra.mxu0 %v843
      %1050 = vmatprep.subr.bf16.mxu0 0
      %1051 = vmatpush1.bf16.msra.mxu0 %v842
      %1052 = vmatprep.subr.bf16.mxu0 0
      %1053 = vmatpush1.bf16.msra.mxu0 %v841
      %1054 = vmatprep.subr.bf16.mxu0 0
      %1055 = vmatpush1.bf16.msra.mxu0 %v840
      %1056 = vmatprep.subr.bf16.mxu0 0
      %1057 = vmatpush1.bf16.msra.mxu0 %v839
      %1058 = vmatprep.subr.bf16.mxu0 0
      %1059 = vmatpush1.bf16.msra.mxu0 %v838
      %1060 = vmatprep.subr.bf16.mxu0 0
      %1061 = vmatpush2.bf16.msra.mxu0 %v853
      %1062 = vmatprep.subr.bf16.mxu0 0
      %1063 = vmatpush2.bf16.msra.mxu0 %v852
      %1064 = vmatprep.subr.bf16.mxu0 0
      %1065 = vmatpush2.bf16.msra.mxu0 %v851
      %1066 = vmatprep.subr.bf16.mxu0 0
      %1067 = vmatpush2.bf16.msra.mxu0 %v850
      %1068 = vmatprep.subr.bf16.mxu0 0
      %1069 = vmatpush2.bf16.msra.mxu0 %v849
      %1070 = vmatprep.subr.bf16.mxu0 0
      %1071 = vmatpush2.bf16.msra.mxu0 %v848
      %1072 = vmatprep.subr.bf16.mxu0 0
      %1073 = vmatpush2.bf16.msra.mxu0 %v847
      %1074 = vmatprep.subr.bf16.mxu0 0
      %1075 = vmatpush2.bf16.msra.mxu0 %v846
      %1076 = vmatprep.mubr.bf16.mxu0 %v521
      %1077 = vmatmul.mubr.bf16.gmra.mxu0 %v520
      %v1078 = vpop.f32.mrf.mxu0
      %v1079 = vadd.f32 %v982, %v1078
      %v1080 = vpop.f32.mrf.mxu0
      %v1081 = vpop.f32.mrf.mxu0
      %v1082 = vadd.f32 %v985, %v1081
      %v1083 = vpop.f32.mrf.mxu0
      %1084 = vmatprep.mubr.bf16.mxu0 %v528
      %1085 = vmatmul.mubr.bf16.gmra.mxu0 %v527
      %v1086 = vpop.f32.mrf.mxu0
      %v1087 = vadd.f32 %v990, %v1086
      %v1088 = vpop.f32.mrf.mxu0
      %v1089 = vpop.f32.mrf.mxu0
      %v1090 = vadd.f32 %v993, %v1089
      %v1091 = vpop.f32.mrf.mxu0
      %1092 = vmatprep.mubr.bf16.mxu0 %v535
      %1093 = vmatmul.mubr.bf16.gmra.mxu0 %v534
      %v1094 = vpop.f32.mrf.mxu0
      %v1095 = vadd.f32 %v998, %v1094
      %v1096 = vpop.f32.mrf.mxu0
      %v1097 = vpop.f32.mrf.mxu0
      %v1098 = vadd.f32 %v1001, %v1097
      %v1099 = vpop.f32.mrf.mxu0
      %1100 = vmatprep.mubr.bf16.mxu0 %v542
      %1101 = vmatmul.mubr.bf16.gmra.mxu0 %v541
      %v1102 = vpop.f32.mrf.mxu0
      %v1103 = vadd.f32 %v1006, %v1102
      %v1104 = vpop.f32.mrf.mxu0
      %v1105 = vpop.f32.mrf.mxu0
      %v1106 = vadd.f32 %v1009, %v1105
      %v1107 = vpop.f32.mrf.mxu0
      %1108 = vmatprep.mubr.bf16.mxu0 %v549
      %1109 = vmatmul.mubr.bf16.gmra.mxu0 %v548
      %v1110 = vpop.f32.mrf.mxu0
      %v1111 = vadd.f32 %v1014, %v1110
      %v1112 = vpop.f32.mrf.mxu0
      %v1113 = vpop.f32.mrf.mxu0
      %v1114 = vadd.f32 %v1017, %v1113
      %v1115 = vpop.f32.mrf.mxu0
      %1116 = vmatprep.mubr.bf16.mxu0 %v556
      %1117 = vmatmul.mubr.bf16.gmra.mxu0 %v555
      %v1118 = vpop.f32.mrf.mxu0
      %v1119 = vadd.f32 %v1022, %v1118
      %v1120 = vpop.f32.mrf.mxu0
      %v1121 = vpop.f32.mrf.mxu0
      %v1122 = vadd.f32 %v1025, %v1121
      %v1123 = vpop.f32.mrf.mxu0
      %1124 = vmatprep.mubr.bf16.mxu0 %v563
      %1125 = vmatmul.mubr.bf16.gmra.mxu0 %v562
      %v1126 = vpop.f32.mrf.mxu0
      %v1127 = vadd.f32 %v1030, %v1126
      %v1128 = vpop.f32.mrf.mxu0
      %v1129 = vpop.f32.mrf.mxu0
      %v1130 = vadd.f32 %v1033, %v1129
      %v1131 = vpop.f32.mrf.mxu0
      %1132 = vmatprep.mubr.bf16.mxu0 %v570
      %1133 = vmatmul.mubr.bf16.gmra.mxu0 %v569
      %v1134 = vpop.f32.mrf.mxu0
      %v1135 = vadd.f32 %v1038, %v1134
      %v1136 = vpop.f32.mrf.mxu0
      %v1137 = vpop.f32.mrf.mxu0
      %v1138 = vadd.f32 %v1041, %v1137
      %v1139 = vpop.f32.mrf.mxu0
      %1140 = vdwg.mxu0
      %1141 = vmatprep.subr.bf16.mxu0 0
      %1142 = vmatpush1.bf16.msra.mxu0 %v861
      %1143 = vmatprep.subr.bf16.mxu0 0
      %1144 = vmatpush1.bf16.msra.mxu0 %v860
      %1145 = vmatprep.subr.bf16.mxu0 0
      %1146 = vmatpush1.bf16.msra.mxu0 %v859
      %1147 = vmatprep.subr.bf16.mxu0 0
      %1148 = vmatpush1.bf16.msra.mxu0 %v858
      %1149 = vmatprep.subr.bf16.mxu0 0
      %1150 = vmatpush1.bf16.msra.mxu0 %v857
      %1151 = vmatprep.subr.bf16.mxu0 0
      %1152 = vmatpush1.bf16.msra.mxu0 %v856
      %1153 = vmatprep.subr.bf16.mxu0 0
      %1154 = vmatpush1.bf16.msra.mxu0 %v855
      %1155 = vmatprep.subr.bf16.mxu0 0
      %1156 = vmatpush1.bf16.msra.mxu0 %v854
      %1157 = vmatprep.subr.bf16.mxu0 0
      %1158 = vmatpush2.bf16.msra.mxu0 %v869
      %1159 = vmatprep.subr.bf16.mxu0 0
      %1160 = vmatpush2.bf16.msra.mxu0 %v868
      %1161 = vmatprep.subr.bf16.mxu0 0
      %1162 = vmatpush2.bf16.msra.mxu0 %v867
      %1163 = vmatprep.subr.bf16.mxu0 0
      %1164 = vmatpush2.bf16.msra.mxu0 %v866
      %1165 = vmatprep.subr.bf16.mxu0 0
      %1166 = vmatpush2.bf16.msra.mxu0 %v865
      %1167 = vmatprep.subr.bf16.mxu0 0
      %1168 = vmatpush2.bf16.msra.mxu0 %v864
      %1169 = vmatprep.subr.bf16.mxu0 0
      %1170 = vmatpush2.bf16.msra.mxu0 %v863
      %1171 = vmatprep.subr.bf16.mxu0 0
      %1172 = vmatpush2.bf16.msra.mxu0 %v862
      %1173 = vmatprep.mubr.bf16.mxu0 %v523
      %1174 = vmatmul.mubr.bf16.gmra.mxu0 %v522
      %v1175 = vpop.f32.mrf.mxu0
      %v1176 = vadd.f32 %v1079, %v1175
      %v1177 = vpop.f32.mrf.mxu0
      %v1178 = vpop.f32.mrf.mxu0
      %v1179 = vadd.f32 %v1082, %v1178
      %v1180 = vpop.f32.mrf.mxu0
      %1181 = vmatprep.mubr.bf16.mxu0 %v530
      %1182 = vmatmul.mubr.bf16.gmra.mxu0 %v529
      %v1183 = vpop.f32.mrf.mxu0
      %v1184 = vadd.f32 %v1087, %v1183
      %v1185 = vpop.f32.mrf.mxu0
      %v1186 = vpop.f32.mrf.mxu0
      %v1187 = vadd.f32 %v1090, %v1186
      %v1188 = vpop.f32.mrf.mxu0
      %1189 = vmatprep.mubr.bf16.mxu0 %v537
      %1190 = vmatmul.mubr.bf16.gmra.mxu0 %v536
      %v1191 = vpop.f32.mrf.mxu0
      %v1192 = vadd.f32 %v1095, %v1191
      %v1193 = vpop.f32.mrf.mxu0
      %v1194 = vpop.f32.mrf.mxu0
      %v1195 = vadd.f32 %v1098, %v1194
      %v1196 = vpop.f32.mrf.mxu0
      %1197 = vmatprep.mubr.bf16.mxu0 %v544
      %1198 = vmatmul.mubr.bf16.gmra.mxu0 %v543
      %v1199 = vpop.f32.mrf.mxu0
      %v1200 = vadd.f32 %v1103, %v1199
      %v1201 = vpop.f32.mrf.mxu0
      %v1202 = vpop.f32.mrf.mxu0
      %v1203 = vadd.f32 %v1106, %v1202
      %v1204 = vpop.f32.mrf.mxu0
      %1205 = vmatprep.mubr.bf16.mxu0 %v551
      %1206 = vmatmul.mubr.bf16.gmra.mxu0 %v550
      %v1207 = vpop.f32.mrf.mxu0
      %v1208 = vadd.f32 %v1111, %v1207
      %v1209 = vpop.f32.mrf.mxu0
      %v1210 = vpop.f32.mrf.mxu0
      %v1211 = vadd.f32 %v1114, %v1210
      %v1212 = vpop.f32.mrf.mxu0
      %1213 = vmatprep.mubr.bf16.mxu0 %v558
      %1214 = vmatmul.mubr.bf16.gmra.mxu0 %v557
      %v1215 = vpop.f32.mrf.mxu0
      %v1216 = vadd.f32 %v1119, %v1215
      %v1217 = vpop.f32.mrf.mxu0
      %v1218 = vpop.f32.mrf.mxu0
      %v1219 = vadd.f32 %v1122, %v1218
      %v1220 = vpop.f32.mrf.mxu0
      %1221 = vmatprep.mubr.bf16.mxu0 %v565
      %1222 = vmatmul.mubr.bf16.gmra.mxu0 %v564
      %v1223 = vpop.f32.mrf.mxu0
      %v1224 = vadd.f32 %v1127, %v1223
      %v1225 = vpop.f32.mrf.mxu0
      %v1226 = vpop.f32.mrf.mxu0
      %v1227 = vadd.f32 %v1130, %v1226
      %v1228 = vpop.f32.mrf.mxu0
      %1229 = vmatprep.mubr.bf16.mxu0 %v572
      %1230 = vmatmul.mubr.bf16.gmra.mxu0 %v571
      %v1231 = vpop.f32.mrf.mxu0
      %v1232 = vadd.f32 %v1135, %v1231
      %v1233 = vpop.f32.mrf.mxu0
      %v1234 = vpop.f32.mrf.mxu0
      %v1235 = vadd.f32 %v1138, %v1234
      %v1236 = vpop.f32.mrf.mxu0
      %1237 = vdwg.mxu0
      %1238 = vmatprep.subr.bf16.mxu0 0
      %1239 = vmatpush1.bf16.msra.mxu0 0
      %1240 = vmatprep.subr.bf16.mxu0 0
      %1241 = vmatpush1.bf16.msra.mxu0 0
      %1242 = vmatprep.subr.bf16.mxu0 0
      %1243 = vmatpush1.bf16.msra.mxu0 0
      %1244 = vmatprep.subr.bf16.mxu0 0
      %1245 = vmatpush1.bf16.msra.mxu0 0
      %1246 = vmatprep.subr.bf16.mxu0 0
      %1247 = vmatpush1.bf16.msra.mxu0 0
      %1248 = vmatprep.subr.bf16.mxu0 0
      %1249 = vmatpush1.bf16.msra.mxu0 0
      %1250 = vmatprep.subr.bf16.mxu0 0
      %1251 = vmatpush1.bf16.msra.mxu0 %v871
      %1252 = vmatprep.subr.bf16.mxu0 0
      %1253 = vmatpush1.bf16.msra.mxu0 %v870
      %1254 = vmatprep.subr.bf16.mxu0 0
      %1255 = vmatpush2.bf16.msra.mxu0 0
      %1256 = vmatprep.subr.bf16.mxu0 0
      %1257 = vmatpush2.bf16.msra.mxu0 0
      %1258 = vmatprep.subr.bf16.mxu0 0
      %1259 = vmatpush2.bf16.msra.mxu0 0
      %1260 = vmatprep.subr.bf16.mxu0 0
      %1261 = vmatpush2.bf16.msra.mxu0 0
      %1262 = vmatprep.subr.bf16.mxu0 0
      %1263 = vmatpush2.bf16.msra.mxu0 0
      %1264 = vmatprep.subr.bf16.mxu0 0
      %1265 = vmatpush2.bf16.msra.mxu0 0
      %1266 = vmatprep.subr.bf16.mxu0 0
      %1267 = vmatpush2.bf16.msra.mxu0 0
      %1268 = vmatprep.subr.bf16.mxu0 0
      %1269 = vmatpush2.bf16.msra.mxu0 0
      %1270 = vmatprep.mubr.bf16.mxu0 0
      %1271 = vmatmul.mubr.bf16.gmra.mxu0 %v924
      %v1272 = vpop.f32.mrf.mxu0
      %v1273 = vadd.f32 %v1176, %v1272
      %v1274 = vpop.f32.mrf.mxu0
      %v1275 = vpop.f32.mrf.mxu0
      %v1276 = vadd.f32 %v1179, %v1275
      %v1277 = vpop.f32.mrf.mxu0
      %1278 = vmatprep.mubr.bf16.mxu0 0
      %1279 = vmatmul.mubr.bf16.gmra.mxu0 %v927
      %v1280 = vpop.f32.mrf.mxu0
      %v1281 = vadd.f32 %v1184, %v1280
      %v1282 = vpop.f32.mrf.mxu0
      %v1283 = vpop.f32.mrf.mxu0
      %v1284 = vadd.f32 %v1187, %v1283
      %v1285 = vpop.f32.mrf.mxu0
      %1286 = vmatprep.mubr.bf16.mxu0 0
      %1287 = vmatmul.mubr.bf16.gmra.mxu0 %v930
      %v1288 = vpop.f32.mrf.mxu0
      %v1289 = vadd.f32 %v1192, %v1288
      %v1290 = vpop.f32.mrf.mxu0
      %v1291 = vpop.f32.mrf.mxu0
      %v1292 = vadd.f32 %v1195, %v1291
      %v1293 = vpop.f32.mrf.mxu0
      %1294 = vmatprep.mubr.bf16.mxu0 0
      %1295 = vmatmul.mubr.bf16.gmra.mxu0 %v933
      %v1296 = vpop.f32.mrf.mxu0
      %v1297 = vadd.f32 %v1200, %v1296
      %v1298 = vpop.f32.mrf.mxu0
      %v1299 = vpop.f32.mrf.mxu0
      %v1300 = vadd.f32 %v1203, %v1299
      %v1301 = vpop.f32.mrf.mxu0
      %1302 = vmatprep.mubr.bf16.mxu0 0
      %1303 = vmatmul.mubr.bf16.gmra.mxu0 %v936
      %v1304 = vpop.f32.mrf.mxu0
      %v1305 = vadd.f32 %v1208, %v1304
      %v1306 = vpop.f32.mrf.mxu0
      %v1307 = vpop.f32.mrf.mxu0
      %v1308 = vadd.f32 %v1211, %v1307
      %v1309 = vpop.f32.mrf.mxu0
      %1310 = vmatprep.mubr.bf16.mxu0 0
      %1311 = vmatmul.mubr.bf16.gmra.mxu0 %v939
      %v1312 = vpop.f32.mrf.mxu0
      %v1313 = vadd.f32 %v1216, %v1312
      %v1314 = vpop.f32.mrf.mxu0
      %v1315 = vpop.f32.mrf.mxu0
      %v1316 = vadd.f32 %v1219, %v1315
      %v1317 = vpop.f32.mrf.mxu0
      %1318 = vmatprep.mubr.bf16.mxu0 0
      %1319 = vmatmul.mubr.bf16.gmra.mxu0 %v942
      %v1320 = vpop.f32.mrf.mxu0
      %v1321 = vadd.f32 %v1224, %v1320
      %v1322 = vpop.f32.mrf.mxu0
      %v1323 = vpop.f32.mrf.mxu0
      %v1324 = vadd.f32 %v1227, %v1323
      %v1325 = vpop.f32.mrf.mxu0
      %1326 = vmatprep.mubr.bf16.mxu0 0
      %1327 = vmatmul.mubr.bf16.gmra.mxu0 %v945
      %v1328 = vpop.f32.mrf.mxu0
      %v1329 = vadd.f32 %v1232, %v1328
      %v1330 = vpop.f32.mrf.mxu0
      %v1331 = vpop.f32.mrf.mxu0
      %v1332 = vadd.f32 %v1235, %v1331
      %v1333 = vpop.f32.mrf.mxu0
      %1334 = vdwg.mxu0
      %v1335 = vmax.f32 %v1273, %v1289
      %v1336 = vmax.f32 %v1276, %v1292
      %v1337 = vmax.f32 %v1281, %v1297
      %v1338 = vmax.f32 %v1284, %v1300
      %v1339 = vmax.f32 %v1305, %v1321
      %v1340 = vmax.f32 %v1308, %v1324
      %v1341 = vmax.f32 %v1313, %v1329
      %v1342 = vmax.f32 %v1316, %v1332
      %v1343 = vmax.f32 %v1335, %v1339
      %v1344 = vmax.f32 %v1336, %v1340
      %v1345 = vmax.f32 %v1337, %v1341
      %v1346 = vmax.f32 %v1338, %v1342
      %v1347 = vld [vmem:[%s2] sm:$0x1]
      %v1349 = vlaneseq
      %v1350 = vshrl.u32 %v1349, 7
      %v1351 = vsub.s32 0, %v1350
      %v1352 = vrot.slane %v1347, %v1351
      %v1354 = vadd.f32 %v1343, %v1352
      %v1355 = vadd.f32 %v1344, %v1352
      %v1356 = vadd.f32 %v1345, %v1352
      %v1357 = vadd.f32 %v1346, %v1352
      %v1358 = vmax.f32 %v1354, 0.0
      %v1359 = vmax.f32 %v1355, 0.0
      %v1360 = vmax.f32 %v1356, 0.0
      %v1361 = vmax.f32 %v1357, 0.0
      %v1362 = vpack.c.bf16 %v1359, %v1358
      %v1363 = vpack.c.bf16 %v1361, %v1360
      %v1366 = vunpack.c.l.b16 %v1362
      %v1367 = vunpack.c.h.b16 %v1362
      %v1368 = vunpack.c.l.b16 %v1363
      %v1369 = vunpack.c.h.b16 %v1363
      %v1370 = vpack.c.b16 %v1366, %v1366
      %v1371 = vpack.c.b16 %v1367, %v1367
      %v1372 = vpack.c.b16 %v1368, %v1368
      %v1373 = vpack.c.b16 %v1369, %v1369
      %1378 = vst [vmem:[%s175] sm:$0xf] %v1370
      %1379 = vst [vmem:[%s175 + $0x4] sm:$0xf] %v1371
      %1380 = vst [vmem:[%s175 + $0x8] sm:$0xf] %v1372
      %1381 = vst [vmem:[%s175 + $0xc] sm:$0xf] %v1373
      %s1382 = smul.u32 4, %s14
      %p1383 = scmp.lt.s32.totalorder %s1382, 7
      %s1384 = scalar_select %p1383, %s1382, 7
      %s1385 = smul.addr %s1384, 4
      %s1386 = scalar_lea.vmem %s3, %s1385
      // Predicated region
      $region33: #{forward.4} parent=31 // pred_check
        %p1387 = pneg %p100
      $region34: #{forward.4} parent=31 // pred_check_branch
        %1389 = sbr.rel (%p1387) target = $region36
      $region35: #{forward.4} parent=31 // pred_region
        %s1390 = smul.u32 4, %s14
      $region36: #{forward.4} parent=31 // pred_fallthru
        _
    $region32: #{forward.4} parent=5 // pred_fallthru
      _
    %p1391 = scmp.le.s32.totalorder 2, %s9
    // Predicated region
    $region37: #{forward.4} parent=5 // pred_check
      %p1392 = pneg %p1391
    $region38: #{forward.4} parent=5 // pred_check_branch
      %1394 = sbr.rel (%p1392) target = $region40
    $region39: #{forward.4} parent=5 // pred_region
      %s1395 = ssub.s32 %s9, 2
      // Predicated region
      $region41: #{forward.4} parent=39 // pred_check
        %p1396 = pneg %p106
      $region42: #{forward.4} parent=39 // pred_check_branch
        %1398 = sbr.rel (%p1396) target = $region44
      $region43: #{forward.4} parent=39 // pred_region
        %s1399 = smul.u32 4, %s15
        %p1400 = scmp.lt.s32.totalorder %s1399, 7
        %s1401 = scalar_select %p1400, %s1399, 7
        %s1402 = smul.addr %s1401, 4
        %s1403 = scalar_lea.vmem %s3, %s1402
      $region44: #{forward.4} parent=39 // pred_fallthru
        _
    $region40: #{forward.4} parent=5 // pred_fallthru
      _
  $region6: #{forward.4} parent=0 // loop_footer
    %s13 = sadd.s32 1, %s9
  $region7: #{forward.4} parent=0 // loop_footer_branch
    %8 = sbr.rel target = $region3
  $region8: #{forward.4} parent=0 // loop_exit
    _

// kernel: forward.5
$region0: #{forward.5}
  #allocation0 [shape = 'u32[]', space=smem, size = 0x4, offset = 0x4, fixed_abs, tag = 'smem constant byte address 0x4 - core index']
  #allocation1 [shape = 'u32[144,128]{1,0:T(1,128)}', space=vmem, size = 0x12000, scoped, tag = 'internal scratch']
  %s0 = inlined_call_operand.vmem [shape: bf16[2,1600], index: 0, kind: input, shape index: {}]
  %s1 = inlined_call_operand.vmem [shape: bf16[1600,128], index: 1, kind: input, shape index: {}]
  %s2 = inlined_call_operand.vmem [shape: f32[1,128], index: 2, kind: input, shape index: {}]
  %s3 = inlined_call_operand.vmem [shape: bf16[128,128], index: 3, kind: input, shape index: {}]
  %s4 = inlined_call_operand.vmem [shape: f32[1,128], index: 4, kind: input, shape index: {}]
  %s5 = inlined_call_operand.hbm [shape: f32[2,128], index: 5, kind: output, shape index: {}]
  %s6 = sld [smem:[#allocation0]]
  $region30: #{forward.5} parent=0
    _
  %s8 = ssub.s32 1, %s6
  %s9 = scalar_select 0, %s8, %s6
  $region1: #{forward.5} parent=0
    #allocation2 [shape = 'u8[1024]{0}', space=vmem, size = 0x400, scoped, tag = 'output window, operand 0, single buffered']
    #allocation3 [shape = 's32[1]{0}', space=sflag, size = 0x4, scoped, tag = 'scoped memory for forward.5']
    %10 = vsyncpa [#allocation3], 0
    // Predicated region
    $region2: #{forward.5} parent=1 // pred_check
      _
    $region3: #{forward.5} parent=1 // pred_check_branch
      %12 = sbr.rel (0) target = $region5
    $region4: #{forward.5} parent=1 // pred_region
      _
    $region5: #{forward.5} parent=1 // pred_fallthru
      _
    // Predicated region
    $region6: #{forward.5} parent=1 // pred_check
      _
    $region7: #{forward.5} parent=1 // pred_check_branch
      %14 = sbr.rel (0) target = $region9
    $region8: #{forward.5} parent=1 // pred_region
      _
    $region9: #{forward.5} parent=1 // pred_fallthru
      _
    // Predicated region
    $region10: #{forward.5} parent=1 // pred_check
      _
    $region11: #{forward.5} parent=1 // pred_check_branch
      %16 = sbr.rel (0) target = $region13
    $region12: #{forward.5} parent=1 // pred_region
      _
    $region13: #{forward.5} parent=1 // pred_fallthru
      _
    // Predicated region
    $region14: #{forward.5} parent=1 // pred_check
      _
    $region15: #{forward.5} parent=1 // pred_check_branch
      %18 = sbr.rel (0) target = $region17
    $region16: #{forward.5} parent=1 // pred_region
      _
    $region17: #{forward.5} parent=1 // pred_fallthru
      _
    // Predicated region
    $region18: #{forward.5} parent=1 // pred_check
      _
    $region19: #{forward.5} parent=1 // pred_check_branch
      %20 = sbr.rel (0) target = $region21
    $region20: #{forward.5} parent=1 // pred_region
      _
    $region21: #{forward.5} parent=1 // pred_fallthru
      _
    %v22 = vld [vmem:[%s0] sm:$0xff]
    %v23 = vld [vmem:[%s0 + $0x8] sm:$0x1f]
    %v24 = vld [vmem:[%s1] sm:$0xf]
    %v25 = vld [vmem:[%s1 + $0x4] sm:$0xf]
    %v26 = vld [vmem:[%s1 + $0x8] sm:$0xf]
    %v27 = vld [vmem:[%s1 + $0xc] sm:$0xf]
    %v28 = vld [vmem:[%s1 + $0x10] sm:$0xf]
    %v29 = vld [vmem:[%s1 + $0x14] sm:$0xf]
    %v30 = vld [vmem:[%s1 + $0x18] sm:$0xf]
    %v31 = vld [vmem:[%s1 + $0x1c] sm:$0xf]
    %v32 = vld [vmem:[%s1 + $0x20] sm:$0xf]
    %v33 = vld [vmem:[%s1 + $0x24] sm:$0xf]
    %v34 = vld [vmem:[%s1 + $0x28] sm:$0xf]
    %v35 = vld [vmem:[%s1 + $0x2c] sm:$0xf]
    %v36 = vld [vmem:[%s1 + $0x30] sm:$0xf]
    %v37 = vld [vmem:[%s1 + $0x34] sm:$0xf]
    %v38 = vld [vmem:[%s1 + $0x38] sm:$0xf]
    %v39 = vld [vmem:[%s1 + $0x3c] sm:$0xf]
    %v40 = vld [vmem:[%s1 + $0x40] sm:$0xf]
    %v41 = vld [vmem:[%s1 + $0x44] sm:$0xf]
    %v42 = vld [vmem:[%s1 + $0x48] sm:$0xf]
    %v43 = vld [vmem:[%s1 + $0x4c] sm:$0xf]
    %v44 = vld [vmem:[%s1 + $0x50] sm:$0xf]
    %v45 = vld [vmem:[%s1 + $0x54] sm:$0xf]
    %v46 = vld [vmem:[%s1 + $0x58] sm:$0xf]
    %v47 = vld [vmem:[%s1 + $0x5c] sm:$0xf]
    %v48 = vld [vmem:[%s1 + $0x60] sm:$0xf]
    %v49 = vld [vmem:[%s1 + $0x64] sm:$0xf]
    %v50 = vld [vmem:[%s1 + $0x68] sm:$0xf]
    %v51 = vld [vmem:[%s1 + $0x6c] sm:$0xf]
    %v52 = vld [vmem:[%s1 + $0x70] sm:$0xf]
    %v53 = vld [vmem:[%s1 + $0x74] sm:$0xf]
    %v54 = vld [vmem:[%s1 + $0x78] sm:$0xf]
    %v55 = vld [vmem:[%s1 + $0x7c] sm:$0xf]
    %v56 = vld [vmem:[%s1 + $0x80] sm:$0xf]
    %v57 = vld [vmem:[%s1 + $0x84] sm:$0xf]
    %v58 = vld [vmem:[%s1 + $0x88] sm:$0xf]
    %v59 = vld [vmem:[%s1 + $0x8c] sm:$0xf]
    %v60 = vld [vmem:[%s1 + $0x90] sm:$0xf]
    %v61 = vld [vmem:[%s1 + $0x94] sm:$0xf]
    %v62 = vld [vmem:[%s1 + $0x98] sm:$0xf]
    %v63 = vld [vmem:[%s1 + $0x9c] sm:$0xf]
    %v64 = vld [vmem:[%s1 + $0xa0] sm:$0xf]
    %v65 = vld [vmem:[%s1 + $0xa4] sm:$0xf]
    %v66 = vld [vmem:[%s1 + $0xa8] sm:$0xf]
    %v67 = vld [vmem:[%s1 + $0xac] sm:$0xf]
    %v68 = vld [vmem:[%s1 + $0xb0] sm:$0xf]
    %v69 = vld [vmem:[%s1 + $0xb4] sm:$0xf]
    %v70 = vld [vmem:[%s1 + $0xb8] sm:$0xf]
    %v71 = vld [vmem:[%s1 + $0xbc] sm:$0xf]
    %v72 = vld [vmem:[%s1 + $0xc0] sm:$0xf]
    %v73 = vld [vmem:[%s1 + $0xc4] sm:$0xf]
    %v74 = vld [vmem:[%s1 + $0xc8] sm:$0xf]
    %v75 = vld [vmem:[%s1 + $0xcc] sm:$0xf]
    %v76 = vld [vmem:[%s1 + $0xd0] sm:$0xf]
    %v77 = vld [vmem:[%s1 + $0xd4] sm:$0xf]
    %v78 = vld [vmem:[%s1 + $0xd8] sm:$0xf]
    %v79 = vld [vmem:[%s1 + $0xdc] sm:$0xf]
    %v80 = vld [vmem:[%s1 + $0xe0] sm:$0xf]
    %v81 = vld [vmem:[%s1 + $0xe4] sm:$0xf]
    %v82 = vld [vmem:[%s1 + $0xe8] sm:$0xf]
    %v83 = vld [vmem:[%s1 + $0xec] sm:$0xf]
    %v84 = vld [vmem:[%s1 + $0xf0] sm:$0xf]
    %v85 = vld [vmem:[%s1 + $0xf4] sm:$0xf]
    %v86 = vld [vmem:[%s1 + $0xf8] sm:$0xf]
    %v87 = vld [vmem:[%s1 + $0xfc] sm:$0xf]
    %v88 = vld [vmem:[%s1 + $0x100] sm:$0xf]
    %v89 = vld [vmem:[%s1 + $0x104] sm:$0xf]
    %v90 = vld [vmem:[%s1 + $0x108] sm:$0xf]
    %v91 = vld [vmem:[%s1 + $0x10c] sm:$0xf]
    %v92 = vld [vmem:[%s1 + $0x110] sm:$0xf]
    %v93 = vld [vmem:[%s1 + $0x114] sm:$0xf]
    %v94 = vld [vmem:[%s1 + $0x118] sm:$0xf]
    %v95 = vld [vmem:[%s1 + $0x11c] sm:$0xf]
    %v96 = vld [vmem:[%s1 + $0x120] sm:$0xf]
    %v97 = vld [vmem:[%s1 + $0x124] sm:$0xf]
    %v98 = vld [vmem:[%s1 + $0x128] sm:$0xf]
    %v99 = vld [vmem:[%s1 + $0x12c] sm:$0xf]
    %v100 = vld [vmem:[%s1 + $0x130] sm:$0xf]
    %v101 = vld [vmem:[%s1 + $0x134] sm:$0xf]
    %v102 = vld [vmem:[%s1 + $0x138] sm:$0xf]
    %v103 = vld [vmem:[%s1 + $0x13c] sm:$0xf]
    %v104 = vld [vmem:[%s1 + $0x140] sm:$0xf]
    %v105 = vld [vmem:[%s1 + $0x144] sm:$0xf]
    %v106 = vld [vmem:[%s1 + $0x148] sm:$0xf]
    %v107 = vld [vmem:[%s1 + $0x14c] sm:$0xf]
    %v108 = vld [vmem:[%s1 + $0x150] sm:$0xf]
    %v109 = vld [vmem:[%s1 + $0x154] sm:$0xf]
    %v110 = vld [vmem:[%s1 + $0x158] sm:$0xf]
    %v111 = vld [vmem:[%s1 + $0x15c] sm:$0xf]
    %v112 = vld [vmem:[%s1 + $0x160] sm:$0xf]
    %v113 = vld [vmem:[%s1 + $0x164] sm:$0xf]
    %v114 = vld [vmem:[%s1 + $0x168] sm:$0xf]
    %v115 = vld [vmem:[%s1 + $0x16c] sm:$0xf]
    %v116 = vld [vmem:[%s1 + $0x170] sm:$0xf]
    %v117 = vld [vmem:[%s1 + $0x174] sm:$0xf]
    %v118 = vld [vmem:[%s1 + $0x178] sm:$0xf]
    %v119 = vld [vmem:[%s1 + $0x17c] sm:$0xf]
    %v120 = vld [vmem:[%s1 + $0x180] sm:$0xf]
    %v121 = vld [vmem:[%s1 + $0x184] sm:$0xf]
    %v122 = vld [vmem:[%s1 + $0x188] sm:$0xf]
    %v123 = vld [vmem:[%s1 + $0x18c] sm:$0xf]
    %v124 = vld [vmem:[%s1 + $0x190] sm:$0xf]
    %v125 = vld [vmem:[%s1 + $0x194] sm:$0xf]
    %v126 = vld [vmem:[%s1 + $0x198] sm:$0xf]
    %v127 = vld [vmem:[%s1 + $0x19c] sm:$0xf]
    %v128 = vld [vmem:[%s1 + $0x1a0] sm:$0xf]
    %v129 = vld [vmem:[%s1 + $0x1a4] sm:$0xf]
    %v130 = vld [vmem:[%s1 + $0x1a8] sm:$0xf]
    %v131 = vld [vmem:[%s1 + $0x1ac] sm:$0xf]
    %v132 = vld [vmem:[%s1 + $0x1b0] sm:$0xf]
    %v133 = vld [vmem:[%s1 + $0x1b4] sm:$0xf]
    %v134 = vld [vmem:[%s1 + $0x1b8] sm:$0xf]
    %v135 = vld [vmem:[%s1 + $0x1bc] sm:$0xf]
    %v136 = vld [vmem:[%s1 + $0x1c0] sm:$0xf]
    %v137 = vld [vmem:[%s1 + $0x1c4] sm:$0xf]
    %v138 = vld [vmem:[%s1 + $0x1c8] sm:$0xf]
    %v139 = vld [vmem:[%s1 + $0x1cc] sm:$0xf]
    %v140 = vld [vmem:[%s1 + $0x1d0] sm:$0xf]
    %v141 = vld [vmem:[%s1 + $0x1d4] sm:$0xf]
    %v142 = vld [vmem:[%s1 + $0x1d8] sm:$0xf]
    %v143 = vld [vmem:[%s1 + $0x1dc] sm:$0xf]
    %v144 = vld [vmem:[%s1 + $0x1e0] sm:$0xf]
    %v145 = vld [vmem:[%s1 + $0x1e4] sm:$0xf]
    %v146 = vld [vmem:[%s1 + $0x1e8] sm:$0xf]
    %v147 = vld [vmem:[%s1 + $0x1ec] sm:$0xf]
    %v148 = vld [vmem:[%s1 + $0x1f0] sm:$0xf]
    %v149 = vld [vmem:[%s1 + $0x1f4] sm:$0xf]
    %v150 = vld [vmem:[%s1 + $0x1f8] sm:$0xf]
    %v151 = vld [vmem:[%s1 + $0x1fc] sm:$0xf]
    %v152 = vld [vmem:[%s1 + $0x200] sm:$0xf]
    %v153 = vld [vmem:[%s1 + $0x204] sm:$0xf]
    %v154 = vld [vmem:[%s1 + $0x208] sm:$0xf]
    %v155 = vld [vmem:[%s1 + $0x20c] sm:$0xf]
    %v156 = vld [vmem:[%s1 + $0x210] sm:$0xf]
    %v157 = vld [vmem:[%s1 + $0x214] sm:$0xf]
    %v158 = vld [vmem:[%s1 + $0x218] sm:$0xf]
    %v159 = vld [vmem:[%s1 + $0x21c] sm:$0xf]
    %v160 = vld [vmem:[%s1 + $0x220] sm:$0xf]
    %v161 = vld [vmem:[%s1 + $0x224] sm:$0xf]
    %v162 = vld [vmem:[%s1 + $0x228] sm:$0xf]
    %v163 = vld [vmem:[%s1 + $0x22c] sm:$0xf]
    %v164 = vld [vmem:[%s1 + $0x230] sm:$0xf]
    %v165 = vld [vmem:[%s1 + $0x234] sm:$0xf]
    %v166 = vld [vmem:[%s1 + $0x238] sm:$0xf]
    %v167 = vld [vmem:[%s1 + $0x23c] sm:$0xf]
    %v168 = vld [vmem:[%s1 + $0x240] sm:$0xf]
    %v169 = vld [vmem:[%s1 + $0x244] sm:$0xf]
    %v170 = vld [vmem:[%s1 + $0x248] sm:$0xf]
    %v171 = vld [vmem:[%s1 + $0x24c] sm:$0xf]
    %v172 = vld [vmem:[%s1 + $0x250] sm:$0xf]
    %v173 = vld [vmem:[%s1 + $0x254] sm:$0xf]
    %v174 = vld [vmem:[%s1 + $0x258] sm:$0xf]
    %v175 = vld [vmem:[%s1 + $0x25c] sm:$0xf]
    %v176 = vld [vmem:[%s1 + $0x260] sm:$0xf]
    %v177 = vld [vmem:[%s1 + $0x264] sm:$0xf]
    %v178 = vld [vmem:[%s1 + $0x268] sm:$0xf]
    %v179 = vld [vmem:[%s1 + $0x26c] sm:$0xf]
    %v180 = vld [vmem:[%s1 + $0x270] sm:$0xf]
    %v181 = vld [vmem:[%s1 + $0x274] sm:$0xf]
    %v182 = vld [vmem:[%s1 + $0x278] sm:$0xf]
    %v183 = vld [vmem:[%s1 + $0x27c] sm:$0xf]
    %v184 = vld [vmem:[%s1 + $0x280] sm:$0xf]
    %v185 = vld [vmem:[%s1 + $0x284] sm:$0xf]
    %v186 = vld [vmem:[%s1 + $0x288] sm:$0xf]
    %v187 = vld [vmem:[%s1 + $0x28c] sm:$0xf]
    %v188 = vld [vmem:[%s1 + $0x290] sm:$0xf]
    %v189 = vld [vmem:[%s1 + $0x294] sm:$0xf]
    %v190 = vld [vmem:[%s1 + $0x298] sm:$0xf]
    %v191 = vld [vmem:[%s1 + $0x29c] sm:$0xf]
    %v192 = vld [vmem:[%s1 + $0x2a0] sm:$0xf]
    %v193 = vld [vmem:[%s1 + $0x2a4] sm:$0xf]
    %v194 = vld [vmem:[%s1 + $0x2a8] sm:$0xf]
    %v195 = vld [vmem:[%s1 + $0x2ac] sm:$0xf]
    %v196 = vld [vmem:[%s1 + $0x2b0] sm:$0xf]
    %v197 = vld [vmem:[%s1 + $0x2b4] sm:$0xf]
    %v198 = vld [vmem:[%s1 + $0x2b8] sm:$0xf]
    %v199 = vld [vmem:[%s1 + $0x2bc] sm:$0xf]
    %v200 = vld [vmem:[%s1 + $0x2c0] sm:$0xf]
    %v201 = vld [vmem:[%s1 + $0x2c4] sm:$0xf]
    %v202 = vld [vmem:[%s1 + $0x2c8] sm:$0xf]
    %v203 = vld [vmem:[%s1 + $0x2cc] sm:$0xf]
    %v204 = vld [vmem:[%s1 + $0x2d0] sm:$0xf]
    %v205 = vld [vmem:[%s1 + $0x2d4] sm:$0xf]
    %v206 = vld [vmem:[%s1 + $0x2d8] sm:$0xf]
    %v207 = vld [vmem:[%s1 + $0x2dc] sm:$0xf]
    %v208 = vld [vmem:[%s1 + $0x2e0] sm:$0xf]
    %v209 = vld [vmem:[%s1 + $0x2e4] sm:$0xf]
    %v210 = vld [vmem:[%s1 + $0x2e8] sm:$0xf]
    %v211 = vld [vmem:[%s1 + $0x2ec] sm:$0xf]
    %v212 = vld [vmem:[%s1 + $0x2f0] sm:$0xf]
    %v213 = vld [vmem:[%s1 + $0x2f4] sm:$0xf]
    %v214 = vld [vmem:[%s1 + $0x2f8] sm:$0xf]
    %v215 = vld [vmem:[%s1 + $0x2fc] sm:$0xf]
    %v216 = vld [vmem:[%s1 + $0x300] sm:$0xf]
    %v217 = vld [vmem:[%s1 + $0x304] sm:$0xf]
    %v218 = vld [vmem:[%s1 + $0x308] sm:$0xf]
    %v219 = vld [vmem:[%s1 + $0x30c] sm:$0xf]
    %v220 = vld [vmem:[%s1 + $0x310] sm:$0xf]
    %v221 = vld [vmem:[%s1 + $0x314] sm:$0xf]
    %v222 = vld [vmem:[%s1 + $0x318] sm:$0xf]
    %v223 = vld [vmem:[%s1 + $0x31c] sm:$0xf]
    %v224 = vld [vmem:[%s2] sm:$0x1]
    %v226 = vlaneseq
    %v227 = vshrl.u32 %v226, 7
    %v228 = vsub.s32 0, %v227
    %v229 = vrot.slane %v224, %v228
    %v233 = vcombine.high %v22, %v22
    %v235 = vunpack.c.l.s4 1966171168
    %v236 = vunpack.c.0.s8 %v235
    %v237 = vlaneseq
    %v238 = vshrl.u32 %v237, 7
    %v239 = vsub.s32 %v236, %v238
    %v240 = vrot.slane %v22, %v239
    %v242 = vunpack.c.l.s4 1966171168
    %v243 = vunpack.c.0.s8 %v242
    %v244 = vlaneseq
    %v245 = vshrl.u32 %v244, 7
    %v246 = vsub.s32 %v243, %v245
    %v247 = vrot.slane %v233, %v246
    %v248 = vcombine.high %v240, %v240
    %v249 = vcombine.high %v247, %v247
    %v251 = vunpack.c.l.s4 1966171168
    %v252 = vunpack.c.0.s8 %v251
    %v253 = vlaneseq
    %v254 = vshrl.u32 %v253, 7
    %v255 = vsub.s32 %v252, %v254
    %v256 = vrot.slane %v240, %v255
    %v258 = vunpack.c.l.s4 1966171168
    %v259 = vunpack.c.0.s8 %v258
    %v260 = vlaneseq
    %v261 = vshrl.u32 %v260, 7
    %v262 = vsub.s32 %v259, %v261
    %v263 = vrot.slane %v247, %v262
    %v265 = vunpack.c.l.s4 1966171168
    %v266 = vunpack.c.0.s8 %v265
    %v267 = vlaneseq
    %v268 = vshrl.u32 %v267, 7
    %v269 = vsub.s32 %v266, %v268
    %v270 = vrot.slane %v248, %v269
    %v272 = vunpack.c.l.s4 1966171168
    %v273 = vunpack.c.0.s8 %v272
    %v274 = vlaneseq
    %v275 = vshrl.u32 %v274, 7
    %v276 = vsub.s32 %v273, %v275
    %v277 = vrot.slane %v249, %v276
    %v278 = vcombine.high %v256, %v256
    %v279 = vcombine.high %v263, %v263
    %v280 = vcombine.high %v270, %v270
    %v281 = vcombine.high %v277, %v277
    %v282 = vcombine.high %v23, %v23
    %v284 = vunpack.c.l.s4 1966171168
    %v285 = vunpack.c.0.s8 %v284
    %v286 = vlaneseq
    %v287 = vshrl.u32 %v286, 7
    %v288 = vsub.s32 %v285, %v287
    %v289 = vrot.slane %v23, %v288
    %v291 = vunpack.c.l.s4 1966171168
    %v292 = vunpack.c.0.s8 %v291
    %v293 = vlaneseq
    %v294 = vshrl.u32 %v293, 7
    %v295 = vsub.s32 %v292, %v294
    %v296 = vrot.slane %v282, %v295
    %v297 = vcombine.high %v289, %v289
    %v299 = vunpack.c.l.s4 1966171168
    %v300 = vunpack.c.0.s8 %v299
    %v301 = vlaneseq
    %v302 = vshrl.u32 %v301, 7
    %v303 = vsub.s32 %v300, %v302
    %v304 = vrot.slane %v289, %v303
    %v306 = vunpack.c.l.s4 1966171168
    %v307 = vunpack.c.0.s8 %v306
    %v308 = vlaneseq
    %v309 = vshrl.u32 %v308, 7
    %v310 = vsub.s32 %v307, %v309
    %v311 = vrot.slane %v296, %v310
    %v313 = vunpack.c.l.s4 1966171168
    %v314 = vunpack.c.0.s8 %v313
    %v315 = vlaneseq
    %v316 = vshrl.u32 %v315, 7
    %v317 = vsub.s32 %v314, %v316
    %v318 = vrot.slane %v297, %v317
    %v319 = vcombine.high %v304, %v304
    %v320 = vcombine.high %v318, %v318
    %v533 = vunpack.c.l.b16 %v24
    %v534 = vunpack.c.l.b16 %v25
    %v535 = vunpack.c.l.b16 %v26
    %v536 = vunpack.c.l.b16 %v27
    %v537 = vunpack.c.l.b16 %v28
    %v538 = vunpack.c.l.b16 %v29
    %v539 = vunpack.c.l.b16 %v30
    %v540 = vunpack.c.l.b16 %v31
    %v541 = vunpack.c.l.b16 %v32
    %v542 = vunpack.c.l.b16 %v33
    %v543 = vunpack.c.l.b16 %v34
    %v544 = vunpack.c.l.b16 %v35
    %v545 = vunpack.c.l.b16 %v36
    %v546 = vunpack.c.l.b16 %v37
    %v547 = vunpack.c.l.b16 %v38
    %v548 = vunpack.c.l.b16 %v39
    %v549 = vunpack.c.l.b16 %v40
    %v550 = vunpack.c.l.b16 %v41
    %v551 = vunpack.c.l.b16 %v42
    %v552 = vunpack.c.l.b16 %v43
    %v553 = vunpack.c.l.b16 %v44
    %v554 = vunpack.c.l.b16 %v45
    %v555 = vunpack.c.l.b16 %v46
    %v556 = vunpack.c.l.b16 %v47
    %v557 = vunpack.c.l.b16 %v48
    %v558 = vunpack.c.l.b16 %v49
    %v559 = vunpack.c.l.b16 %v50
    %v560 = vunpack.c.l.b16 %v51
    %v561 = vunpack.c.l.b16 %v52
    %v562 = vunpack.c.l.b16 %v53
    %v563 = vunpack.c.l.b16 %v54
    %v564 = vunpack.c.l.b16 %v55
    %v565 = vunpack.c.l.b16 %v56
    %v566 = vunpack.c.l.b16 %v57
    %v567 = vunpack.c.l.b16 %v58
    %v568 = vunpack.c.l.b16 %v59
    %v569 = vunpack.c.l.b16 %v60
    %v570 = vunpack.c.l.b16 %v61
    %v571 = vunpack.c.l.b16 %v62
    %v572 = vunpack.c.l.b16 %v63
    %v573 = vunpack.c.l.b16 %v64
    %v574 = vunpack.c.l.b16 %v65
    %v575 = vunpack.c.l.b16 %v66
    %v576 = vunpack.c.l.b16 %v67
    %v577 = vunpack.c.l.b16 %v68
    %v578 = vunpack.c.l.b16 %v69
    %v579 = vunpack.c.l.b16 %v70
    %v580 = vunpack.c.l.b16 %v71
    %v581 = vunpack.c.l.b16 %v72
    %v582 = vunpack.c.l.b16 %v73
    %v583 = vunpack.c.l.b16 %v74
    %v584 = vunpack.c.l.b16 %v75
    %v585 = vunpack.c.l.b16 %v76
    %v586 = vunpack.c.l.b16 %v77
    %v587 = vunpack.c.l.b16 %v78
    %v588 = vunpack.c.l.b16 %v79
    %v589 = vunpack.c.l.b16 %v80
    %v590 = vunpack.c.l.b16 %v81
    %v591 = vunpack.c.l.b16 %v82
    %v592 = vunpack.c.l.b16 %v83
    %v593 = vunpack.c.l.b16 %v84
    %v594 = vunpack.c.l.b16 %v85
    %v595 = vunpack.c.l.b16 %v86
    %v596 = vunpack.c.l.b16 %v87
    %v597 = vunpack.c.l.b16 %v88
    %v598 = vunpack.c.l.b16 %v89
    %v599 = vunpack.c.l.b16 %v90
    %v600 = vunpack.c.l.b16 %v91
    %v601 = vunpack.c.l.b16 %v92
    %v602 = vunpack.c.l.b16 %v93
    %v603 = vunpack.c.l.b16 %v94
    %v604 = vunpack.c.l.b16 %v95
    %v605 = vunpack.c.l.b16 %v96
    %v606 = vunpack.c.l.b16 %v97
    %v607 = vunpack.c.l.b16 %v98
    %v608 = vunpack.c.l.b16 %v99
    %v609 = vunpack.c.l.b16 %v100
    %v610 = vunpack.c.l.b16 %v101
    %v611 = vunpack.c.l.b16 %v102
    %v612 = vunpack.c.l.b16 %v103
    %v613 = vunpack.c.l.b16 %v104
    %v614 = vunpack.c.l.b16 %v105
    %v615 = vunpack.c.l.b16 %v106
    %v616 = vunpack.c.l.b16 %v107
    %v617 = vunpack.c.l.b16 %v108
    %v618 = vunpack.c.l.b16 %v109
    %v619 = vunpack.c.l.b16 %v110
    %v620 = vunpack.c.l.b16 %v111
    %v621 = vunpack.c.l.b16 %v112
    %v622 = vunpack.c.l.b16 %v113
    %v623 = vunpack.c.l.b16 %v114
    %v624 = vunpack.c.l.b16 %v115
    %v625 = vunpack.c.l.b16 %v116
    %v626 = vunpack.c.l.b16 %v117
    %v627 = vunpack.c.l.b16 %v118
    %v628 = vunpack.c.l.b16 %v119
    %v629 = vunpack.c.l.b16 %v120
    %v630 = vunpack.c.l.b16 %v121
    %v631 = vunpack.c.l.b16 %v122
    %v632 = vunpack.c.l.b16 %v123
    %v633 = vunpack.c.l.b16 %v124
    %v634 = vunpack.c.l.b16 %v125
    %v635 = vunpack.c.l.b16 %v126
    %v636 = vunpack.c.l.b16 %v127
    %v637 = vunpack.c.l.b16 %v128
    %v638 = vunpack.c.l.b16 %v129
    %v639 = vunpack.c.l.b16 %v130
    %v640 = vunpack.c.l.b16 %v131
    %v641 = vunpack.c.l.b16 %v132
    %v642 = vunpack.c.l.b16 %v133
    %v643 = vunpack.c.l.b16 %v134
    %v644 = vunpack.c.l.b16 %v135
    %v645 = vunpack.c.l.b16 %v136
    %v646 = vunpack.c.l.b16 %v137
    %v647 = vunpack.c.l.b16 %v138
    %v648 = vunpack.c.l.b16 %v139
    %v649 = vunpack.c.l.b16 %v140
    %v650 = vunpack.c.l.b16 %v141
    %v651 = vunpack.c.l.b16 %v142
    %v652 = vunpack.c.l.b16 %v143
    %v653 = vunpack.c.l.b16 %v144
    %v654 = vunpack.c.l.b16 %v145
    %v655 = vunpack.c.l.b16 %v146
    %v656 = vunpack.c.l.b16 %v147
    %v657 = vunpack.c.l.b16 %v148
    %v658 = vunpack.c.l.b16 %v149
    %v659 = vunpack.c.l.b16 %v150
    %v660 = vunpack.c.l.b16 %v151
    %v661 = vunpack.c.l.b16 %v152
    %v662 = vunpack.c.l.b16 %v153
    %v663 = vunpack.c.l.b16 %v154
    %v664 = vunpack.c.l.b16 %v155
    %v665 = vunpack.c.l.b16 %v156
    %v666 = vunpack.c.l.b16 %v157
    %v667 = vunpack.c.l.b16 %v158
    %v668 = vunpack.c.l.b16 %v159
    %v669 = vunpack.c.l.b16 %v160
    %v670 = vunpack.c.l.b16 %v161
    %v671 = vunpack.c.l.b16 %v162
    %v672 = vunpack.c.l.b16 %v163
    %v673 = vunpack.c.l.b16 %v164
    %v674 = vunpack.c.l.b16 %v165
    %v675 = vunpack.c.l.b16 %v166
    %v676 = vunpack.c.l.b16 %v167
    %v677 = vunpack.c.l.b16 %v168
    %v678 = vunpack.c.l.b16 %v169
    %v679 = vunpack.c.l.b16 %v170
    %v680 = vunpack.c.l.b16 %v171
    %v681 = vunpack.c.l.b16 %v172
    %v682 = vunpack.c.l.b16 %v173
    %v683 = vunpack.c.l.b16 %v174
    %v684 = vunpack.c.l.b16 %v175
    %v685 = vunpack.c.l.b16 %v176
    %v686 = vunpack.c.l.b16 %v177
    %v687 = vunpack.c.l.b16 %v178
    %v688 = vunpack.c.l.b16 %v179
    %v689 = vunpack.c.l.b16 %v180
    %v690 = vunpack.c.l.b16 %v181
    %v691 = vunpack.c.l.b16 %v182
    %v692 = vunpack.c.l.b16 %v183
    %v693 = vunpack.c.l.b16 %v184
    %v694 = vunpack.c.l.b16 %v185
    %v695 = vunpack.c.l.b16 %v186
    %v696 = vunpack.c.l.b16 %v187
    %v697 = vunpack.c.l.b16 %v188
    %v698 = vunpack.c.l.b16 %v189
    %v699 = vunpack.c.l.b16 %v190
    %v700 = vunpack.c.l.b16 %v191
    %v701 = vunpack.c.l.b16 %v192
    %v702 = vunpack.c.l.b16 %v193
    %v703 = vunpack.c.l.b16 %v194
    %v704 = vunpack.c.l.b16 %v195
    %v705 = vunpack.c.l.b16 %v196
    %v706 = vunpack.c.l.b16 %v197
    %v707 = vunpack.c.l.b16 %v198
    %v708 = vunpack.c.l.b16 %v199
    %v709 = vunpack.c.l.b16 %v200
    %v710 = vunpack.c.l.b16 %v201
    %v711 = vunpack.c.l.b16 %v202
    %v712 = vunpack.c.l.b16 %v203
    %v713 = vunpack.c.l.b16 %v204
    %v714 = vunpack.c.l.b16 %v205
    %v715 = vunpack.c.l.b16 %v206
    %v716 = vunpack.c.l.b16 %v207
    %v717 = vunpack.c.l.b16 %v208
    %v718 = vunpack.c.l.b16 %v209
    %v719 = vunpack.c.l.b16 %v210
    %v720 = vunpack.c.l.b16 %v211
    %v721 = vunpack.c.l.b16 %v212
    %v722 = vunpack.c.l.b16 %v213
    %v723 = vunpack.c.l.b16 %v214
    %v724 = vunpack.c.l.b16 %v215
    %v725 = vunpack.c.l.b16 %v216
    %v726 = vunpack.c.l.b16 %v217
    %v727 = vunpack.c.l.b16 %v218
    %v728 = vunpack.c.l.b16 %v219
    %v729 = vunpack.c.l.b16 %v220
    %v730 = vunpack.c.l.b16 %v221
    %v731 = vunpack.c.l.b16 %v222
    %v732 = vunpack.c.l.b16 %v223
    %v733 = vpack.c.b16 %v534, %v533
    %v734 = vpack.c.b16 %v536, %v535
    %v735 = vpack.c.b16 %v538, %v537
    %v736 = vpack.c.b16 %v540, %v539
    %v737 = vpack.c.b16 %v542, %v541
    %v738 = vpack.c.b16 %v544, %v543
    %v739 = vpack.c.b16 %v546, %v545
    %v740 = vpack.c.b16 %v548, %v547
    %v741 = vpack.c.b16 %v550, %v549
    %v742 = vpack.c.b16 %v552, %v551
    %v743 = vpack.c.b16 %v554, %v553
    %v744 = vpack.c.b16 %v556, %v555
    %v745 = vpack.c.b16 %v558, %v557
    %v746 = vpack.c.b16 %v560, %v559
    %v747 = vpack.c.b16 %v562, %v561
    %v748 = vpack.c.b16 %v564, %v563
    %v749 = vpack.c.b16 %v566, %v565
    %v750 = vpack.c.b16 %v568, %v567
    %v751 = vpack.c.b16 %v570, %v569
    %v752 = vpack.c.b16 %v572, %v571
    %v753 = vpack.c.b16 %v574, %v573
    %v754 = vpack.c.b16 %v576, %v575
    %v755 = vpack.c.b16 %v578, %v577
    %v756 = vpack.c.b16 %v580, %v579
    %v757 = vpack.c.b16 %v582, %v581
    %v758 = vpack.c.b16 %v584, %v583
    %v759 = vpack.c.b16 %v586, %v585
    %v760 = vpack.c.b16 %v588, %v587
    %v761 = vpack.c.b16 %v590, %v589
    %v762 = vpack.c.b16 %v592, %v591
    %v763 = vpack.c.b16 %v594, %v593
    %v764 = vpack.c.b16 %v596, %v595
    %v765 = vpack.c.b16 %v598, %v597
    %v766 = vpack.c.b16 %v600, %v599
    %v767 = vpack.c.b16 %v602, %v601
    %v768 = vpack.c.b16 %v604, %v603
    %v769 = vpack.c.b16 %v606, %v605
    %v770 = vpack.c.b16 %v608, %v607
    %v771 = vpack.c.b16 %v610, %v609
    %v772 = vpack.c.b16 %v612, %v611
    %v773 = vpack.c.b16 %v614, %v613
    %v774 = vpack.c.b16 %v616, %v615
    %v775 = vpack.c.b16 %v618, %v617
    %v776 = vpack.c.b16 %v620, %v619
    %v777 = vpack.c.b16 %v622, %v621
    %v778 = vpack.c.b16 %v624, %v623
    %v779 = vpack.c.b16 %v626, %v625
    %v780 = vpack.c.b16 %v628, %v627
    %v781 = vpack.c.b16 %v630, %v629
    %v782 = vpack.c.b16 %v632, %v631
    %v783 = vpack.c.b16 %v634, %v633
    %v784 = vpack.c.b16 %v636, %v635
    %v785 = vpack.c.b16 %v638, %v637
    %v786 = vpack.c.b16 %v640, %v639
    %v787 = vpack.c.b16 %v642, %v641
    %v788 = vpack.c.b16 %v644, %v643
    %v789 = vpack.c.b16 %v646, %v645
    %v790 = vpack.c.b16 %v648, %v647
    %v791 = vpack.c.b16 %v650, %v649
    %v792 = vpack.c.b16 %v652, %v651
    %v793 = vpack.c.b16 %v654, %v653
    %v794 = vpack.c.b16 %v656, %v655
    %v795 = vpack.c.b16 %v658, %v657
    %v796 = vpack.c.b16 %v660, %v659
    %v797 = vpack.c.b16 %v662, %v661
    %v798 = vpack.c.b16 %v664, %v663
    %v799 = vpack.c.b16 %v666, %v665
    %v800 = vpack.c.b16 %v668, %v667
    %v801 = vpack.c.b16 %v670, %v669
    %v802 = vpack.c.b16 %v672, %v671
    %v803 = vpack.c.b16 %v674, %v673
    %v804 = vpack.c.b16 %v676, %v675
    %v805 = vpack.c.b16 %v678, %v677
    %v806 = vpack.c.b16 %v680, %v679
    %v807 = vpack.c.b16 %v682, %v681
    %v808 = vpack.c.b16 %v684, %v683
    %v809 = vpack.c.b16 %v686, %v685
    %v810 = vpack.c.b16 %v688, %v687
    %v811 = vpack.c.b16 %v690, %v689
    %v812 = vpack.c.b16 %v692, %v691
    %v813 = vpack.c.b16 %v694, %v693
    %v814 = vpack.c.b16 %v696, %v695
    %v815 = vpack.c.b16 %v698, %v697
    %v816 = vpack.c.b16 %v700, %v699
    %v817 = vpack.c.b16 %v702, %v701
    %v818 = vpack.c.b16 %v704, %v703
    %v819 = vpack.c.b16 %v706, %v705
    %v820 = vpack.c.b16 %v708, %v707
    %v821 = vpack.c.b16 %v710, %v709
    %v822 = vpack.c.b16 %v712, %v711
    %v823 = vpack.c.b16 %v714, %v713
    %v824 = vpack.c.b16 %v716, %v715
    %v825 = vpack.c.b16 %v718, %v717
    %v826 = vpack.c.b16 %v720, %v719
    %v827 = vpack.c.b16 %v722, %v721
    %v828 = vpack.c.b16 %v724, %v723
    %v829 = vpack.c.b16 %v726, %v725
    %v830 = vpack.c.b16 %v728, %v727
    %v831 = vpack.c.b16 %v730, %v729
    %v832 = vpack.c.b16 %v732, %v731
    %vm933 = vcmask 523264
    %v935 = vsel %vm933, %v311, 0
    %937 = vmatprep.subr.bf16.mxu0 0
    %938 = vmatpush1.bf16.msra.mxu0 %v740
    %939 = vmatprep.subr.bf16.mxu0 0
    %940 = vmatpush1.bf16.msra.mxu0 %v739
    %941 = vmatprep.subr.bf16.mxu0 0
    %942 = vmatpush1.bf16.msra.mxu0 %v738
    %943 = vmatprep.subr.bf16.mxu0 0
    %944 = vmatpush1.bf16.msra.mxu0 %v737
    %945 = vmatprep.subr.bf16.mxu0 0
    %946 = vmatpush1.bf16.msra.mxu0 %v736
    %947 = vmatprep.subr.bf16.mxu0 0
    %948 = vmatpush1.bf16.msra.mxu0 %v735
    %949 = vmatprep.subr.bf16.mxu0 0
    %950 = vmatpush1.bf16.msra.mxu0 %v734
    %951 = vmatprep.subr.bf16.mxu0 0
    %952 = vmatpush1.bf16.msra.mxu0 %v733
    %953 = vmatprep.subr.bf16.mxu0 0
    %954 = vmatpush2.bf16.msra.mxu0 %v748
    %955 = vmatprep.subr.bf16.mxu0 0
    %956 = vmatpush2.bf16.msra.mxu0 %v747
    %957 = vmatprep.subr.bf16.mxu0 0
    %958 = vmatpush2.bf16.msra.mxu0 %v746
    %959 = vmatprep.subr.bf16.mxu0 0
    %960 = vmatpush2.bf16.msra.mxu0 %v745
    %961 = vmatprep.subr.bf16.mxu0 0
    %962 = vmatpush2.bf16.msra.mxu0 %v744
    %963 = vmatprep.subr.bf16.mxu0 0
    %964 = vmatpush2.bf16.msra.mxu0 %v743
    %965 = vmatprep.subr.bf16.mxu0 0
    %966 = vmatpush2.bf16.msra.mxu0 %v742
    %967 = vmatprep.subr.bf16.mxu0 0
    %968 = vmatpush2.bf16.msra.mxu0 %v741
    %969 = vmatprep.mubr.bf16.mxu0 %v270
    %970 = vmatmul.mubr.bf16.gmra.mxu0 %v256
    %v971 = vpop.f32.mrf.mxu0
    %v972 = vadd.f32 %v229, %v971
    %v973 = vpop.f32.mrf.mxu0
    %v974 = vpop.f32.mrf.mxu0
    %v975 = vpop.f32.mrf.mxu0
    %976 = vdwg.mxu0
    %977 = vmatprep.subr.bf16.mxu0 0
    %978 = vmatpush1.bf16.msra.mxu0 %v756
    %979 = vmatprep.subr.bf16.mxu0 0
    %980 = vmatpush1.bf16.msra.mxu0 %v755
    %981 = vmatprep.subr.bf16.mxu0 0
    %982 = vmatpush1.bf16.msra.mxu0 %v754
    %983 = vmatprep.subr.bf16.mxu0 0
    %984 = vmatpush1.bf16.msra.mxu0 %v753
    %985 = vmatprep.subr.bf16.mxu0 0
    %986 = vmatpush1.bf16.msra.mxu0 %v752
    %987 = vmatprep.subr.bf16.mxu0 0
    %988 = vmatpush1.bf16.msra.mxu0 %v751
    %989 = vmatprep.subr.bf16.mxu0 0
    %990 = vmatpush1.bf16.msra.mxu0 %v750
    %991 = vmatprep.subr.bf16.mxu0 0
    %992 = vmatpush1.bf16.msra.mxu0 %v749
    %993 = vmatprep.subr.bf16.mxu0 0
    %994 = vmatpush2.bf16.msra.mxu0 %v764
    %995 = vmatprep.subr.bf16.mxu0 0
    %996 = vmatpush2.bf16.msra.mxu0 %v763
    %997 = vmatprep.subr.bf16.mxu0 0
    %998 = vmatpush2.bf16.msra.mxu0 %v762
    %999 = vmatprep.subr.bf16.mxu0 0
    %1000 = vmatpush2.bf16.msra.mxu0 %v761
    %1001 = vmatprep.subr.bf16.mxu0 0
    %1002 = vmatpush2.bf16.msra.mxu0 %v760
    %1003 = vmatprep.subr.bf16.mxu0 0
    %1004 = vmatpush2.bf16.msra.mxu0 %v759
    %1005 = vmatprep.subr.bf16.mxu0 0
    %1006 = vmatpush2.bf16.msra.mxu0 %v758
    %1007 = vmatprep.subr.bf16.mxu0 0
    %1008 = vmatpush2.bf16.msra.mxu0 %v757
    %1009 = vmatprep.mubr.bf16.mxu0 %v280
    %1010 = vmatmul.mubr.bf16.gmra.mxu0 %v278
    %v1011 = vpop.f32.mrf.mxu0
    %v1012 = vadd.f32 %v972, %v1011
    %v1013 = vpop.f32.mrf.mxu0
    %v1014 = vpop.f32.mrf.mxu0
    %v1015 = vpop.f32.mrf.mxu0
    %1016 = vdwg.mxu0
    %1017 = vmatprep.subr.bf16.mxu0 0
    %1018 = vmatpush1.bf16.msra.mxu0 %v772
    %1019 = vmatprep.subr.bf16.mxu0 0
    %1020 = vmatpush1.bf16.msra.mxu0 %v771
    %1021 = vmatprep.subr.bf16.mxu0 0
    %1022 = vmatpush1.bf16.msra.mxu0 %v770
    %1023 = vmatprep.subr.bf16.mxu0 0
    %1024 = vmatpush1.bf16.msra.mxu0 %v769
    %1025 = vmatprep.subr.bf16.mxu0 0
    %1026 = vmatpush1.bf16.msra.mxu0 %v768
    %1027 = vmatprep.subr.bf16.mxu0 0
    %1028 = vmatpush1.bf16.msra.mxu0 %v767
    %1029 = vmatprep.subr.bf16.mxu0 0
    %1030 = vmatpush1.bf16.msra.mxu0 %v766
    %1031 = vmatprep.subr.bf16.mxu0 0
    %1032 = vmatpush1.bf16.msra.mxu0 %v765
    %1033 = vmatprep.subr.bf16.mxu0 0
    %1034 = vmatpush2.bf16.msra.mxu0 %v780
    %1035 = vmatprep.subr.bf16.mxu0 0
    %1036 = vmatpush2.bf16.msra.mxu0 %v779
    %1037 = vmatprep.subr.bf16.mxu0 0
    %1038 = vmatpush2.bf16.msra.mxu0 %v778
    %1039 = vmatprep.subr.bf16.mxu0 0
    %1040 = vmatpush2.bf16.msra.mxu0 %v777
    %1041 = vmatprep.subr.bf16.mxu0 0
    %1042 = vmatpush2.bf16.msra.mxu0 %v776
    %1043 = vmatprep.subr.bf16.mxu0 0
    %1044 = vmatpush2.bf16.msra.mxu0 %v775
    %1045 = vmatprep.subr.bf16.mxu0 0
    %1046 = vmatpush2.bf16.msra.mxu0 %v774
    %1047 = vmatprep.subr.bf16.mxu0 0
    %1048 = vmatpush2.bf16.msra.mxu0 %v773
    %1049 = vmatprep.mubr.bf16.mxu0 %v277
    %1050 = vmatmul.mubr.bf16.gmra.mxu0 %v263
    %v1051 = vpop.f32.mrf.mxu0
    %v1052 = vadd.f32 %v1012, %v1051
    %v1053 = vpop.f32.mrf.mxu0
    %v1054 = vpop.f32.mrf.mxu0
    %v1055 = vpop.f32.mrf.mxu0
    %1056 = vdwg.mxu0
    %1057 = vmatprep.subr.bf16.mxu0 0
    %1058 = vmatpush1.bf16.msra.mxu0 %v788
    %1059 = vmatprep.subr.bf16.mxu0 0
    %1060 = vmatpush1.bf16.msra.mxu0 %v787
    %1061 = vmatprep.subr.bf16.mxu0 0
    %1062 = vmatpush1.bf16.msra.mxu0 %v786
    %1063 = vmatprep.subr.bf16.mxu0 0
    %1064 = vmatpush1.bf16.msra.mxu0 %v785
    %1065 = vmatprep.subr.bf16.mxu0 0
    %1066 = vmatpush1.bf16.msra.mxu0 %v784
    %1067 = vmatprep.subr.bf16.mxu0 0
    %1068 = vmatpush1.bf16.msra.mxu0 %v783
    %1069 = vmatprep.subr.bf16.mxu0 0
    %1070 = vmatpush1.bf16.msra.mxu0 %v782
    %1071 = vmatprep.subr.bf16.mxu0 0
    %1072 = vmatpush1.bf16.msra.mxu0 %v781
    %1073 = vmatprep.subr.bf16.mxu0 0
    %1074 = vmatpush2.bf16.msra.mxu0 %v796
    %1075 = vmatprep.subr.bf16.mxu0 0
    %1076 = vmatpush2.bf16.msra.mxu0 %v795
    %1077 = vmatprep.subr.bf16.mxu0 0
    %1078 = vmatpush2.bf16.msra.mxu0 %v794
    %1079 = vmatprep.subr.bf16.mxu0 0
    %1080 = vmatpush2.bf16.msra.mxu0 %v793
    %1081 = vmatprep.subr.bf16.mxu0 0
    %1082 = vmatpush2.bf16.msra.mxu0 %v792
    %1083 = vmatprep.subr.bf16.mxu0 0
    %1084 = vmatpush2.bf16.msra.mxu0 %v791
    %1085 = vmatprep.subr.bf16.mxu0 0
    %1086 = vmatpush2.bf16.msra.mxu0 %v790
    %1087 = vmatprep.subr.bf16.mxu0 0
    %1088 = vmatpush2.bf16.msra.mxu0 %v789
    %1089 = vmatprep.mubr.bf16.mxu0 %v281
    %1090 = vmatmul.mubr.bf16.gmra.mxu0 %v279
    %v1091 = vpop.f32.mrf.mxu0
    %v1092 = vadd.f32 %v1052, %v1091
    %v1093 = vpop.f32.mrf.mxu0
    %v1094 = vpop.f32.mrf.mxu0
    %v1095 = vpop.f32.mrf.mxu0
    %1096 = vdwg.mxu0
    %1097 = vmatprep.subr.bf16.mxu0 0
    %1098 = vmatpush1.bf16.msra.mxu0 %v804
    %1099 = vmatprep.subr.bf16.mxu0 0
    %1100 = vmatpush1.bf16.msra.mxu0 %v803
    %1101 = vmatprep.subr.bf16.mxu0 0
    %1102 = vmatpush1.bf16.msra.mxu0 %v802
    %1103 = vmatprep.subr.bf16.mxu0 0
    %1104 = vmatpush1.bf16.msra.mxu0 %v801
    %1105 = vmatprep.subr.bf16.mxu0 0
    %1106 = vmatpush1.bf16.msra.mxu0 %v800
    %1107 = vmatprep.subr.bf16.mxu0 0
    %1108 = vmatpush1.bf16.msra.mxu0 %v799
    %1109 = vmatprep.subr.bf16.mxu0 0
    %1110 = vmatpush1.bf16.msra.mxu0 %v798
    %1111 = vmatprep.subr.bf16.mxu0 0
    %1112 = vmatpush1.bf16.msra.mxu0 %v797
    %1113 = vmatprep.subr.bf16.mxu0 0
    %1114 = vmatpush2.bf16.msra.mxu0 %v812
    %1115 = vmatprep.subr.bf16.mxu0 0
    %1116 = vmatpush2.bf16.msra.mxu0 %v811
    %1117 = vmatprep.subr.bf16.mxu0 0
    %1118 = vmatpush2.bf16.msra.mxu0 %v810
    %1119 = vmatprep.subr.bf16.mxu0 0
    %1120 = vmatpush2.bf16.msra.mxu0 %v809
    %1121 = vmatprep.subr.bf16.mxu0 0
    %1122 = vmatpush2.bf16.msra.mxu0 %v808
    %1123 = vmatprep.subr.bf16.mxu0 0
    %1124 = vmatpush2.bf16.msra.mxu0 %v807
    %1125 = vmatprep.subr.bf16.mxu0 0
    %1126 = vmatpush2.bf16.msra.mxu0 %v806
    %1127 = vmatprep.subr.bf16.mxu0 0
    %1128 = vmatpush2.bf16.msra.mxu0 %v805
    %1129 = vmatprep.mubr.bf16.mxu0 %v318
    %1130 = vmatmul.mubr.bf16.gmra.mxu0 %v304
    %v1131 = vpop.f32.mrf.mxu0
    %v1132 = vadd.f32 %v1092, %v1131
    %v1133 = vpop.f32.mrf.mxu0
    %v1134 = vpop.f32.mrf.mxu0
    %v1135 = vpop.f32.mrf.mxu0
    %1136 = vdwg.mxu0
    %1137 = vmatprep.subr.bf16.mxu0 0
    %1138 = vmatpush1.bf16.msra.mxu0 %v820
    %1139 = vmatprep.subr.bf16.mxu0 0
    %1140 = vmatpush1.bf16.msra.mxu0 %v819
    %1141 = vmatprep.subr.bf16.mxu0 0
    %1142 = vmatpush1.bf16.msra.mxu0 %v818
    %1143 = vmatprep.subr.bf16.mxu0 0
    %1144 = vmatpush1.bf16.msra.mxu0 %v817
    %1145 = vmatprep.subr.bf16.mxu0 0
    %1146 = vmatpush1.bf16.msra.mxu0 %v816
    %1147 = vmatprep.subr.bf16.mxu0 0
    %1148 = vmatpush1.bf16.msra.mxu0 %v815
    %1149 = vmatprep.subr.bf16.mxu0 0
    %1150 = vmatpush1.bf16.msra.mxu0 %v814
    %1151 = vmatprep.subr.bf16.mxu0 0
    %1152 = vmatpush1.bf16.msra.mxu0 %v813
    %1153 = vmatprep.subr.bf16.mxu0 0
    %1154 = vmatpush2.bf16.msra.mxu0 %v828
    %1155 = vmatprep.subr.bf16.mxu0 0
    %1156 = vmatpush2.bf16.msra.mxu0 %v827
    %1157 = vmatprep.subr.bf16.mxu0 0
    %1158 = vmatpush2.bf16.msra.mxu0 %v826
    %1159 = vmatprep.subr.bf16.mxu0 0
    %1160 = vmatpush2.bf16.msra.mxu0 %v825
    %1161 = vmatprep.subr.bf16.mxu0 0
    %1162 = vmatpush2.bf16.msra.mxu0 %v824
    %1163 = vmatprep.subr.bf16.mxu0 0
    %1164 = vmatpush2.bf16.msra.mxu0 %v823
    %1165 = vmatprep.subr.bf16.mxu0 0
    %1166 = vmatpush2.bf16.msra.mxu0 %v822
    %1167 = vmatprep.subr.bf16.mxu0 0
    %1168 = vmatpush2.bf16.msra.mxu0 %v821
    %1169 = vmatprep.mubr.bf16.mxu0 %v320
    %1170 = vmatmul.mubr.bf16.gmra.mxu0 %v319
    %v1171 = vpop.f32.mrf.mxu0
    %v1172 = vadd.f32 %v1132, %v1171
    %v1173 = vpop.f32.mrf.mxu0
    %v1174 = vpop.f32.mrf.mxu0
    %v1175 = vpop.f32.mrf.mxu0
    %1176 = vdwg.mxu0
    %1177 = vmatprep.subr.bf16.mxu0 0
    %1178 = vmatpush1.bf16.msra.mxu0 0
    %1179 = vmatprep.subr.bf16.mxu0 0
    %1180 = vmatpush1.bf16.msra.mxu0 0
    %1181 = vmatprep.subr.bf16.mxu0 0
    %1182 = vmatpush1.bf16.msra.mxu0 0
    %1183 = vmatprep.subr.bf16.mxu0 0
    %1184 = vmatpush1.bf16.msra.mxu0 0
    %1185 = vmatprep.subr.bf16.mxu0 0
    %1186 = vmatpush1.bf16.msra.mxu0 %v832
    %1187 = vmatprep.subr.bf16.mxu0 0
    %1188 = vmatpush1.bf16.msra.mxu0 %v831
    %1189 = vmatprep.subr.bf16.mxu0 0
    %1190 = vmatpush1.bf16.msra.mxu0 %v830
    %1191 = vmatprep.subr.bf16.mxu0 0
    %1192 = vmatpush1.bf16.msra.mxu0 %v829
    %1193 = vmatprep.subr.bf16.mxu0 0
    %1194 = vmatpush2.bf16.msra.mxu0 0
    %1195 = vmatprep.subr.bf16.mxu0 0
    %1196 = vmatpush2.bf16.msra.mxu0 0
    %1197 = vmatprep.subr.bf16.mxu0 0
    %1198 = vmatpush2.bf16.msra.mxu0 0
    %1199 = vmatprep.subr.bf16.mxu0 0
    %1200 = vmatpush2.bf16.msra.mxu0 0
    %1201 = vmatprep.subr.bf16.mxu0 0
    %1202 = vmatpush2.bf16.msra.mxu0 0
    %1203 = vmatprep.subr.bf16.mxu0 0
    %1204 = vmatpush2.bf16.msra.mxu0 0
    %1205 = vmatprep.subr.bf16.mxu0 0
    %1206 = vmatpush2.bf16.msra.mxu0 0
    %1207 = vmatprep.subr.bf16.mxu0 0
    %1208 = vmatpush2.bf16.msra.mxu0 0
    %1209 = vmatprep.mubr.bf16.mxu0 0
    %1210 = vmatmul.mubr.bf16.gmra.mxu0 %v935
    %v1211 = vpop.f32.mrf.mxu0
    %v1212 = vadd.f32 %v1172, %v1211
    %v1213 = vpop.f32.mrf.mxu0
    %v1214 = vpop.f32.mrf.mxu0
    %v1215 = vpop.f32.mrf.mxu0
    %1216 = vdwg.mxu0
    %v1217 = vmax.f32 %v1212, 0.0
    %v1218 = vpack.c.bf16 %v1217, %v1217
    %v1219 = vld [vmem:[%s3] sm:$0xf]
    %v1220 = vld [vmem:[%s3 + $0x4] sm:$0xf]
    %v1221 = vld [vmem:[%s3 + $0x8] sm:$0xf]
    %v1222 = vld [vmem:[%s3 + $0xc] sm:$0xf]
    %v1223 = vld [vmem:[%s3 + $0x10] sm:$0xf]
    %v1224 = vld [vmem:[%s3 + $0x14] sm:$0xf]
    %v1225 = vld [vmem:[%s3 + $0x18] sm:$0xf]
    %v1226 = vld [vmem:[%s3 + $0x1c] sm:$0xf]
    %v1227 = vld [vmem:[%s3 + $0x20] sm:$0xf]
    %v1228 = vld [vmem:[%s3 + $0x24] sm:$0xf]
    %v1229 = vld [vmem:[%s3 + $0x28] sm:$0xf]
    %v1230 = vld [vmem:[%s3 + $0x2c] sm:$0xf]
    %v1231 = vld [vmem:[%s3 + $0x30] sm:$0xf]
    %v1232 = vld [vmem:[%s3 + $0x34] sm:$0xf]
    %v1233 = vld [vmem:[%s3 + $0x38] sm:$0xf]
    %v1234 = vld [vmem:[%s3 + $0x3c] sm:$0xf]
    %v1235 = vld [vmem:[%s4] sm:$0x1]
    %v1237 = vlaneseq
    %v1238 = vshrl.u32 %v1237, 7
    %v1239 = vsub.s32 0, %v1238
    %v1240 = vrot.slane %v1235, %v1239
    %v1258 = vunpack.c.l.b16 %v1219
    %v1259 = vunpack.c.l.b16 %v1220
    %v1260 = vunpack.c.l.b16 %v1221
    %v1261 = vunpack.c.l.b16 %v1222
    %v1262 = vunpack.c.l.b16 %v1223
    %v1263 = vunpack.c.l.b16 %v1224
    %v1264 = vunpack.c.l.b16 %v1225
    %v1265 = vunpack.c.l.b16 %v1226
    %v1266 = vunpack.c.l.b16 %v1227
    %v1267 = vunpack.c.l.b16 %v1228
    %v1268 = vunpack.c.l.b16 %v1229
    %v1269 = vunpack.c.l.b16 %v1230
    %v1270 = vunpack.c.l.b16 %v1231
    %v1271 = vunpack.c.l.b16 %v1232
    %v1272 = vunpack.c.l.b16 %v1233
    %v1273 = vunpack.c.l.b16 %v1234
    %v1274 = vpack.c.b16 %v1259, %v1258
    %v1275 = vpack.c.b16 %v1261, %v1260
    %v1276 = vpack.c.b16 %v1263, %v1262
    %v1277 = vpack.c.b16 %v1265, %v1264
    %v1278 = vpack.c.b16 %v1267, %v1266
    %v1279 = vpack.c.b16 %v1269, %v1268
    %v1280 = vpack.c.b16 %v1271, %v1270
    %v1281 = vpack.c.b16 %v1273, %v1272
    %1290 = vmatprep.subr.bf16.mxu0 0
    %1291 = vmatpush1.bf16.msra.mxu0 %v1281
    %1292 = vmatprep.subr.bf16.mxu0 0
    %1293 = vmatpush1.bf16.msra.mxu0 %v1280
    %1294 = vmatprep.subr.bf16.mxu0 0
    %1295 = vmatpush1.bf16.msra.mxu0 %v1279
    %1296 = vmatprep.subr.bf16.mxu0 0
    %1297 = vmatpush1.bf16.msra.mxu0 %v1278
    %1298 = vmatprep.subr.bf16.mxu0 0
    %1299 = vmatpush1.bf16.msra.mxu0 %v1277
    %1300 = vmatprep.subr.bf16.mxu0 0
    %1301 = vmatpush1.bf16.msra.mxu0 %v1276
    %1302 = vmatprep.subr.bf16.mxu0 0
    %1303 = vmatpush1.bf16.msra.mxu0 %v1275
    %1304 = vmatprep.subr.bf16.mxu0 0
    %1305 = vmatpush1.bf16.msra.mxu0 %v1274
    %1306 = vmatprep.subr.bf16.mxu0 0
    %1307 = vmatpush2.bf16.msra.mxu0 0
    %1308 = vmatprep.subr.bf16.mxu0 0
    %1309 = vmatpush2.bf16.msra.mxu0 0
    %1310 = vmatprep.subr.bf16.mxu0 0
    %1311 = vmatpush2.bf16.msra.mxu0 0
    %1312 = vmatprep.subr.bf16.mxu0 0
    %1313 = vmatpush2.bf16.msra.mxu0 0
    %1314 = vmatprep.subr.bf16.mxu0 0
    %1315 = vmatpush2.bf16.msra.mxu0 0
    %1316 = vmatprep.subr.bf16.mxu0 0
    %1317 = vmatpush2.bf16.msra.mxu0 0
    %1318 = vmatprep.subr.bf16.mxu0 0
    %1319 = vmatpush2.bf16.msra.mxu0 0
    %1320 = vmatprep.subr.bf16.mxu0 0
    %1321 = vmatpush2.bf16.msra.mxu0 0
    %1322 = vmatprep.mubr.bf16.mxu0 0
    %1323 = vmatmul.mubr.bf16.gmra.mxu0 %v1218
    %v1324 = vpop.f32.mrf.mxu0
    %v1325 = vadd.f32 %v1240, %v1324
    %v1326 = vpop.f32.mrf.mxu0
    %v1327 = vpop.f32.mrf.mxu0
    %v1328 = vpop.f32.mrf.mxu0
    %1329 = vdwg.mxu0
    %vm1330 = vcmask 1041408
    %v1331 = vsel %vm1330, %v1325, -inf
    %1332 = vmax.xlane.f32.xlu0 %v1331
    %v1333 = vpop.xlane.xlu0 %1332
    %v1334 = vsub.f32 %v1325, %v1333
    %v1335 = vmul.f32 %v1334, 1.442695
    %v1336 = vpow.pop %v1335
    %v1337 = vsel %vm1330, %v1336, 0.0
    %1338 = vadd.xlane.f32.xlu0 %v1337
    %v1339 = vpop.xlane.xlu0 %1338
    %v1340 = vlog2.pop %v1339
    %v1341 = vmul.f32 %v1340, 0.6931472
    %v1342 = vsub.f32 %v1334, %v1341
    %1343 = vst [vmem:[#allocation2] sm:$0x3] %v1342
    // Predicated region
    $region22: #{forward.5} parent=1 // pred_check
      _
    $region23: #{forward.5} parent=1 // pred_check_branch
      %1345 = sbr.rel (0) target = $region25
    $region24: #{forward.5} parent=1 // pred_region
      %s1347 = ssub.s32 32, 32
      %1348 = vsyncadd [#allocation3], %s1347
      %s1350 = sshll.u32 [#allocation2], 4
      %s1351 = int_to_ptr.vmem [resolvable:$true] %s1350
      %1353 = dma.vmem_to_hbm [thread:$0]  %s1351, 32, %s5, [#allocation3]
    $region25: #{forward.5} parent=1 // pred_fallthru
      _
    // Predicated region
    $region26: #{forward.5} parent=1 // pred_check
      _
    $region27: #{forward.5} parent=1 // pred_check_branch
      %1355 = sbr.rel (0) target = $region29
    $region28: #{forward.5} parent=1 // pred_region
      %1356 = dma.done [#allocation3], 32
    $region29: #{forward.5} parent=1 // pred_fallthru
      _
    %1357 = vsyncpa [#allocation3], 1

</llo_original>
